<compile_context>
chip_gen: v7x
topology: tpu7x:2x2x1
jax: 0.10.0
libtpu: 0.0.40
codegen_flags: <defaults>
</compile_context>

<pallas_src>
import math

import jax
import jax.numpy as jnp
from jax.experimental import pallas as pl
from jax.experimental.pallas import tpu as pltpu


# ---------------------------------------------------------------------------
# Fused kernel: 2-layer LSTM (last-timestep top-layer hidden) + output head
#   Linear -> LayerNorm -> GELU -> (Dropout=id)  x2  -> Linear -> L2 normalize
# Also emits the two "focus" activations acts[3] and acts[7].
# ---------------------------------------------------------------------------
def _topic_predictor_kernel(
    z_ref,
    wih0_ref, whh0_ref, b0_ref,
    wih1_ref, whh1_ref, b1_ref,
    hw1_ref, hb1_ref, hg1_ref, hbe1_ref,
    hw2_ref, hb2_ref, hg2_ref, hbe2_ref,
    hw3_ref, hb3_ref,
    res_ref, act3_ref, act7_ref,
):
    B, S, F = z_ref.shape
    H = whh0_ref.shape[0]
    G = 4 * H

    # ---- LSTM layer-0 input projection, hoisted out of the recurrence ----
    # One batched MXU call (B*S, F) @ (F, 4H) + b0; bias add folded in once.
    z2d = z_ref[...].reshape(B * S, F)
    gates_in0 = (
        jnp.dot(z2d, wih0_ref[...], preferred_element_type=jnp.float32)
        + b0_ref[...]
    ).reshape(B, S, G)

    b1 = b1_ref[...]  # (1, 4H) layer-1 combined bias (b_ih + b_hh)

    def lstm_cell(pre_gates, h, c, whh_ref):
        # pre_gates already contains x @ wih + b; add the recurrent term.
        gates = pre_gates + jnp.dot(
            h, whh_ref[...], preferred_element_type=jnp.float32
        )
        # Full-vreg activations (EUP), select tanh for the g-gate lanes.
        lane = jax.lax.broadcasted_iota(jnp.int32, gates.shape, 1)
        is_g = (lane >= 2 * H) & (lane < 3 * H)
        act = jnp.where(is_g, jnp.tanh(gates), jax.nn.sigmoid(gates))
        i = act[:, 0 * H:1 * H]
        f = act[:, 1 * H:2 * H]
        g = act[:, 2 * H:3 * H]
        o = act[:, 3 * H:4 * H]
        c_new = f * c + i * g
        h_new = o * jnp.tanh(c_new)
        return h_new, c_new

    h0 = jnp.zeros((B, H), jnp.float32)
    c0 = jnp.zeros((B, H), jnp.float32)
    h1 = jnp.zeros((B, H), jnp.float32)
    c1 = jnp.zeros((B, H), jnp.float32)

    # S is small and static -> unrolled time loop (recurrence is inherently serial).
    for t in range(S):
        h0, c0 = lstm_cell(gates_in0[:, t, :], h0, c0, whh0_ref)
        # Inter-layer LSTM dropout (p=0.1) is identity in eval mode.
        pre1 = (
            jnp.dot(h0, wih1_ref[...], preferred_element_type=jnp.float32) + b1
        )
        h1, c1 = lstm_cell(pre1, h1, c1, whh1_ref)

    # out[:, -1, :] of the top layer; trailing reducer Dropout is identity (eval).
    x = h1

    # ---- output head ----
    def layernorm(h, gamma, beta, eps=1e-5):
        mu = jnp.mean(h, axis=-1, keepdims=True)
        var = jnp.mean((h - mu) ** 2, axis=-1, keepdims=True)
        return (h - mu) * jax.lax.rsqrt(var + eps) * gamma + beta

    def gelu(h):
        # exact (erf-based) GELU, matching torch.nn.GELU default
        return 0.5 * h * (1.0 + jax.lax.erf(h * (1.0 / math.sqrt(2.0))))

    h = jnp.dot(x, hw1_ref[...], preferred_element_type=jnp.float32) + hb1_ref[...]
    h = gelu(layernorm(h, hg1_ref[...], hbe1_ref[...]))
    act3_ref[...] = h            # acts[3] (after Dropout, identity in eval)

    h = jnp.dot(h, hw2_ref[...], preferred_element_type=jnp.float32) + hb2_ref[...]
    h = gelu(layernorm(h, hg2_ref[...], hbe2_ref[...]))
    act7_ref[...] = h            # acts[7]

    r = jnp.dot(h, hw3_ref[...], preferred_element_type=jnp.float32) + hb3_ref[...]

    # torch.nn.functional.normalize(res): L2 along dim=1, eps=1e-12
    #   r / max(||r||, eps) == r * rsqrt(max(sum(r^2), eps^2))
    sumsq = jnp.sum(r * r, axis=-1, keepdims=True)
    res_ref[...] = r * jax.lax.rsqrt(jnp.maximum(sumsq, 1e-24))


# ---------------------------------------------------------------------------
# Wrapper
# ---------------------------------------------------------------------------
_VMEM = pl.BlockSpec(memory_space=pltpu.MemorySpace.VMEM)


def topic_predictor_forward(z, params):
    """Everything downstream of the RoBERTa hidden-state concat `z` (eval mode)."""
    B, _, F = z.shape
    F2 = params["hw2"].shape[1]
    OUT = params["hw3"].shape[1]

    args = (
        z,
        params["wih0"], params["whh0"], params["b0"],
        params["wih1"], params["whh1"], params["b1"],
        params["hw1"], params["hb1"], params["hg1"], params["hbe1"],
        params["hw2"], params["hb2"], params["hg2"], params["hbe2"],
        params["hw3"], params["hb3"],
    )

    # NOTE: at production shapes (S~512, F~4096, large B) tile z over S/B with a
    # grid + BlockSpecs and dimension_semantics=("parallel",...); at these toy
    # shapes a single grid-less invocation with whole-array VMEM residency is best.
    res, act3, act7 = pl.pallas_call(
        _topic_predictor_kernel,
        out_shape=(
            jax.ShapeDtypeStruct((B, OUT), jnp.float32),
            jax.ShapeDtypeStruct((B, F), jnp.float32),
            jax.ShapeDtypeStruct((B, F2), jnp.float32),
        ),
        in_specs=[_VMEM] * len(args),
        out_specs=(_VMEM, _VMEM, _VMEM),
    )(*args)

    focus_acts = [act3.reshape(-1), act7.reshape(-1)]  # acts[3].flatten(), acts[7].flatten()
    return res, focus_acts, z


# ---------------------------------------------------------------------------
# Deterministic parameter init (shapes per TopicPredictorModel.__init__)
# ---------------------------------------------------------------------------
def init_params(key, F, out_dim):
    H = F // 8          # ltcr_hidden_size
    F2 = F // 2
    kH = 1.0 / math.sqrt(H)
    kF = 1.0 / math.sqrt(F)
    kF2 = 1.0 / math.sqrt(F2)

    def u(k, shape, bound):
        return jax.random.uniform(k, shape, jnp.float32, -bound, bound)

    ks = jax.random.split(key, 14)
    return {
        # LSTM layer 0 (weights pre-transposed to (in, 4H); biases combined b_ih + b_hh)
        "wih0": u(ks[0], (F, 4 * H), kH),
        "whh0": u(ks[1], (H, 4 * H), kH),
        "b0":   u(ks[2], (1, 4 * H), kH) + u(ks[3], (1, 4 * H), kH),
        # LSTM layer 1
        "wih1": u(ks[4], (H, 4 * H), kH),
        "whh1": u(ks[5], (H, 4 * H), kH),
        "b1":   u(ks[6], (1, 4 * H), kH) + u(ks[7], (1, 4 * H), kH),
        # output head: Linear(H -> F), LayerNorm(F)
        "hw1": u(ks[8], (H, F), kH),
        "hb1": u(ks[9], (1, F), kH),
        "hg1": jnp.ones((1, F), jnp.float32),
        "hbe1": jnp.zeros((1, F), jnp.float32),
        # Linear(F -> F//2), LayerNorm(F//2)
        "hw2": u(ks[10], (F, F2), kF),
        "hb2": u(ks[11], (1, F2), kF),
        "hg2": jnp.ones((1, F2), jnp.float32),
        "hbe2": jnp.zeros((1, F2), jnp.float32),
        # Linear(F//2 -> out_dim)
        "hw3": u(ks[12], (F2, out_dim), kF2),
        "hb3": u(ks[13], (1, out_dim), kF2),
    }


if __name__ == "__main__":
    # Small shapes consistent with the module's forward:
    #   encoder_intermediate_dim D = 64, num_hidden_states NH = 4  ->  F = 256
    #   ltcr_hidden_size H = F // 8 = 32, output_dim = 16, batch = 2, seq = 8
    B, S, D, NH = 2, 8, 64, 4
    F = D * NH
    OUT_DIM = 16

    key = jax.random.PRNGKey(0)
    kz, kp = jax.random.split(key)

    # `z` stands in for the concatenated last-NH hidden states of the (adapter-
    # augmented) RoBERTa encoder, which needs a pretrained checkpoint.
    z = jax.random.normal(kz, (B, S, F), dtype=jnp.float32)
    params = init_params(kp, F, OUT_DIM)

    fwd = jax.jit(lambda zz: topic_predictor_forward(zz, params))
    res, focus_acts, z_out = fwd(z)
    jax.block_until_ready((res, focus_acts, z_out))

    assert res.shape == (B, OUT_DIM)
    assert focus_acts[0].shape == (B * F,)
    assert focus_acts[1].shape == (B * (F // 2),)
    assert z_out.shape == (B, S, F)
    # res is L2-normalized per row
    assert bool(jnp.all(jnp.abs(jnp.sum(res * res, axis=-1) - 1.0) < 1e-4))
    print("KERNEL_OK")
</pallas_src>

<mosaic_0001>
module attributes {stable_mosaic.version = 11 : i64} {
  func.func @_topic_predictor_kernel(%arg0: memref<2x8x256xf32, #tpu.memory_space<vmem>>, %arg1: memref<256x128xf32, #tpu.memory_space<vmem>>, %arg2: memref<32x128xf32, #tpu.memory_space<vmem>>, %arg3: memref<1x128xf32, #tpu.memory_space<vmem>>, %arg4: memref<32x128xf32, #tpu.memory_space<vmem>>, %arg5: memref<32x128xf32, #tpu.memory_space<vmem>>, %arg6: memref<1x128xf32, #tpu.memory_space<vmem>>, %arg7: memref<32x256xf32, #tpu.memory_space<vmem>>, %arg8: memref<1x256xf32, #tpu.memory_space<vmem>>, %arg9: memref<1x256xf32, #tpu.memory_space<vmem>>, %arg10: memref<1x256xf32, #tpu.memory_space<vmem>>, %arg11: memref<256x128xf32, #tpu.memory_space<vmem>>, %arg12: memref<1x128xf32, #tpu.memory_space<vmem>>, %arg13: memref<1x128xf32, #tpu.memory_space<vmem>>, %arg14: memref<1x128xf32, #tpu.memory_space<vmem>>, %arg15: memref<128x16xf32, #tpu.memory_space<vmem>>, %arg16: memref<1x16xf32, #tpu.memory_space<vmem>>, %arg17: memref<2x16xf32, #tpu.memory_space<vmem>>, %arg18: memref<2x256xf32, #tpu.memory_space<vmem>>, %arg19: memref<2x128xf32, #tpu.memory_space<vmem>>) attributes {dimension_semantics = [], scalar_prefetch = 0 : i64, scratch_operands = 0 : i64, tpu.core_type = #tpu.core_type<tc>} {
    %c0 = arith.constant 0 : index
    %c0_0 = arith.constant 0 : index
    %c0_1 = arith.constant 0 : index
    %0 = vector.load %arg0[%c0, %c0_0, %c0_1] : memref<2x8x256xf32, #tpu.memory_space<vmem>>, vector<2x8x256xf32>
    %1 = vector.shape_cast %0 : vector<2x8x256xf32> to vector<16x256xf32>
    %c0_2 = arith.constant 0 : index
    %c0_3 = arith.constant 0 : index
    %2 = vector.load %arg1[%c0_2, %c0_3] : memref<256x128xf32, #tpu.memory_space<vmem>>, vector<256x128xf32>
    %cst = arith.constant dense<0.000000e+00> : vector<16x128xf32>
    %3 = tpu.matmul %1, %2, %cst {dimension_numbers = #tpu.dot_dimension_numbers<[1], [0], [0], [1], [0, 0, 1, 1], [], []>} : vector<16x256xf32>, vector<256x128xf32>, vector<16x128xf32> -> vector<16x128xf32>
    %c0_4 = arith.constant 0 : index
    %c0_5 = arith.constant 0 : index
    %4 = vector.load %arg3[%c0_4, %c0_5] : memref<1x128xf32, #tpu.memory_space<vmem>>, vector<1x128xf32>
    %5 = vector.broadcast %4 : vector<1x128xf32> to vector<16x128xf32>
    %6 = arith.addf %3, %5 : vector<16x128xf32>
    %7 = vector.shape_cast %6 : vector<16x128xf32> to vector<2x8x128xf32>
    %c0_6 = arith.constant 0 : index
    %c0_7 = arith.constant 0 : index
    %8 = vector.load %arg6[%c0_6, %c0_7] : memref<1x128xf32, #tpu.memory_space<vmem>>, vector<1x128xf32>
    %cst_8 = arith.constant 0.000000e+00 : f32
    %9 = vector.broadcast %cst_8 : f32 to vector<2x32xf32>
    %cst_9 = arith.constant 0.000000e+00 : f32
    %10 = vector.broadcast %cst_9 : f32 to vector<2x32xf32>
    %cst_10 = arith.constant 0.000000e+00 : f32
    %11 = vector.broadcast %cst_10 : f32 to vector<2x32xf32>
    %cst_11 = arith.constant 0.000000e+00 : f32
    %12 = vector.broadcast %cst_11 : f32 to vector<2x32xf32>
    %13 = vector.extract_strided_slice %7 {offsets = [0, 0, 0], sizes = [2, 1, 128], strides = [1, 1, 1]} : vector<2x8x128xf32> to vector<2x1x128xf32>
    %14 = vector.shape_cast %13 : vector<2x1x128xf32> to vector<2x128xf32>
    %c0_12 = arith.constant 0 : index
    %c0_13 = arith.constant 0 : index
    %15 = vector.load %arg2[%c0_12, %c0_13] : memref<32x128xf32, #tpu.memory_space<vmem>>, vector<32x128xf32>
    %cst_14 = arith.constant dense<0.000000e+00> : vector<2x128xf32>
    %16 = tpu.matmul %9, %15, %cst_14 {dimension_numbers = #tpu.dot_dimension_numbers<[1], [0], [0], [1], [0, 0, 1, 1], [], []>} : vector<2x32xf32>, vector<32x128xf32>, vector<2x128xf32> -> vector<2x128xf32>
    %17 = arith.addf %14, %16 : vector<2x128xf32>
    %18 = tpu.iota {dimensions = array<i32: 1>} : vector<2x128xi32>
    %c64_i32 = arith.constant 64 : i32
    %19 = vector.broadcast %c64_i32 : i32 to vector<2x128xi32>
    %20 = arith.cmpi sge, %18, %19 : vector<2x128xi32>
    %c96_i32 = arith.constant 96 : i32
    %21 = vector.broadcast %c96_i32 : i32 to vector<2x128xi32>
    %22 = arith.cmpi slt, %18, %21 : vector<2x128xi32>
    %23 = arith.andi %20, %22 : vector<2x128xi1>
    %24 = math.tanh %17 : vector<2x128xf32>
    %25 = arith.negf %17 : vector<2x128xf32>
    %26 = math.exp %25 : vector<2x128xf32>
    %cst_15 = arith.constant 1.000000e+00 : f32
    %27 = vector.broadcast %cst_15 : f32 to vector<2x128xf32>
    %28 = arith.addf %27, %26 : vector<2x128xf32>
    %29 = arith.divf %27, %28 : vector<2x128xf32>
    %30 = arith.select %23, %24, %29 : vector<2x128xi1>, vector<2x128xf32>
    %31 = vector.extract_strided_slice %30 {offsets = [0, 0], sizes = [2, 32], strides = [1, 1]} : vector<2x128xf32> to vector<2x32xf32>
    %32 = vector.extract_strided_slice %30 {offsets = [0, 32], sizes = [2, 32], strides = [1, 1]} : vector<2x128xf32> to vector<2x32xf32>
    %33 = vector.extract_strided_slice %30 {offsets = [0, 64], sizes = [2, 32], strides = [1, 1]} : vector<2x128xf32> to vector<2x32xf32>
    %34 = vector.extract_strided_slice %30 {offsets = [0, 96], sizes = [2, 32], strides = [1, 1]} : vector<2x128xf32> to vector<2x32xf32>
    %35 = arith.mulf %32, %10 : vector<2x32xf32>
    %36 = arith.mulf %31, %33 : vector<2x32xf32>
    %37 = arith.addf %35, %36 : vector<2x32xf32>
    %38 = math.tanh %37 : vector<2x32xf32>
    %39 = arith.mulf %34, %38 : vector<2x32xf32>
    %c0_16 = arith.constant 0 : index
    %c0_17 = arith.constant 0 : index
    %40 = vector.load %arg4[%c0_16, %c0_17] : memref<32x128xf32, #tpu.memory_space<vmem>>, vector<32x128xf32>
    %cst_18 = arith.constant dense<0.000000e+00> : vector<2x128xf32>
    %41 = tpu.matmul %39, %40, %cst_18 {dimension_numbers = #tpu.dot_dimension_numbers<[1], [0], [0], [1], [0, 0, 1, 1], [], []>} : vector<2x32xf32>, vector<32x128xf32>, vector<2x128xf32> -> vector<2x128xf32>
    %42 = vector.broadcast %8 : vector<1x128xf32> to vector<2x128xf32>
    %43 = arith.addf %41, %42 : vector<2x128xf32>
    %c0_19 = arith.constant 0 : index
    %c0_20 = arith.constant 0 : index
    %44 = vector.load %arg5[%c0_19, %c0_20] : memref<32x128xf32, #tpu.memory_space<vmem>>, vector<32x128xf32>
    %cst_21 = arith.constant dense<0.000000e+00> : vector<2x128xf32>
    %45 = tpu.matmul %11, %44, %cst_21 {dimension_numbers = #tpu.dot_dimension_numbers<[1], [0], [0], [1], [0, 0, 1, 1], [], []>} : vector<2x32xf32>, vector<32x128xf32>, vector<2x128xf32> -> vector<2x128xf32>
    %46 = arith.addf %43, %45 : vector<2x128xf32>
    %47 = tpu.iota {dimensions = array<i32: 1>} : vector<2x128xi32>
    %c64_i32_22 = arith.constant 64 : i32
    %48 = vector.broadcast %c64_i32_22 : i32 to vector<2x128xi32>
    %49 = arith.cmpi sge, %47, %48 : vector<2x128xi32>
    %c96_i32_23 = arith.constant 96 : i32
    %50 = vector.broadcast %c96_i32_23 : i32 to vector<2x128xi32>
    %51 = arith.cmpi slt, %47, %50 : vector<2x128xi32>
    %52 = arith.andi %49, %51 : vector<2x128xi1>
    %53 = math.tanh %46 : vector<2x128xf32>
    %54 = arith.negf %46 : vector<2x128xf32>
    %55 = math.exp %54 : vector<2x128xf32>
    %cst_24 = arith.constant 1.000000e+00 : f32
    %56 = vector.broadcast %cst_24 : f32 to vector<2x128xf32>
    %57 = arith.addf %56, %55 : vector<2x128xf32>
    %58 = arith.divf %56, %57 : vector<2x128xf32>
    %59 = arith.select %52, %53, %58 : vector<2x128xi1>, vector<2x128xf32>
    %60 = vector.extract_strided_slice %59 {offsets = [0, 0], sizes = [2, 32], strides = [1, 1]} : vector<2x128xf32> to vector<2x32xf32>
    %61 = vector.extract_strided_slice %59 {offsets = [0, 32], sizes = [2, 32], strides = [1, 1]} : vector<2x128xf32> to vector<2x32xf32>
    %62 = vector.extract_strided_slice %59 {offsets = [0, 64], sizes = [2, 32], strides = [1, 1]} : vector<2x128xf32> to vector<2x32xf32>
    %63 = vector.extract_strided_slice %59 {offsets = [0, 96], sizes = [2, 32], strides = [1, 1]} : vector<2x128xf32> to vector<2x32xf32>
    %64 = arith.mulf %61, %12 : vector<2x32xf32>
    %65 = arith.mulf %60, %62 : vector<2x32xf32>
    %66 = arith.addf %64, %65 : vector<2x32xf32>
    %67 = math.tanh %66 : vector<2x32xf32>
    %68 = arith.mulf %63, %67 : vector<2x32xf32>
    %69 = vector.extract_strided_slice %7 {offsets = [0, 1, 0], sizes = [2, 1, 128], strides = [1, 1, 1]} : vector<2x8x128xf32> to vector<2x1x128xf32>
    %70 = vector.shape_cast %69 : vector<2x1x128xf32> to vector<2x128xf32>
    %c0_25 = arith.constant 0 : index
    %c0_26 = arith.constant 0 : index
    %71 = vector.load %arg2[%c0_25, %c0_26] : memref<32x128xf32, #tpu.memory_space<vmem>>, vector<32x128xf32>
    %cst_27 = arith.constant dense<0.000000e+00> : vector<2x128xf32>
    %72 = tpu.matmul %39, %71, %cst_27 {dimension_numbers = #tpu.dot_dimension_numbers<[1], [0], [0], [1], [0, 0, 1, 1], [], []>} : vector<2x32xf32>, vector<32x128xf32>, vector<2x128xf32> -> vector<2x128xf32>
    %73 = arith.addf %70, %72 : vector<2x128xf32>
    %74 = tpu.iota {dimensions = array<i32: 1>} : vector<2x128xi32>
    %c64_i32_28 = arith.constant 64 : i32
    %75 = vector.broadcast %c64_i32_28 : i32 to vector<2x128xi32>
    %76 = arith.cmpi sge, %74, %75 : vector<2x128xi32>
    %c96_i32_29 = arith.constant 96 : i32
    %77 = vector.broadcast %c96_i32_29 : i32 to vector<2x128xi32>
    %78 = arith.cmpi slt, %74, %77 : vector<2x128xi32>
    %79 = arith.andi %76, %78 : vector<2x128xi1>
    %80 = math.tanh %73 : vector<2x128xf32>
    %81 = arith.negf %73 : vector<2x128xf32>
    %82 = math.exp %81 : vector<2x128xf32>
    %cst_30 = arith.constant 1.000000e+00 : f32
    %83 = vector.broadcast %cst_30 : f32 to vector<2x128xf32>
    %84 = arith.addf %83, %82 : vector<2x128xf32>
    %85 = arith.divf %83, %84 : vector<2x128xf32>
    %86 = arith.select %79, %80, %85 : vector<2x128xi1>, vector<2x128xf32>
    %87 = vector.extract_strided_slice %86 {offsets = [0, 0], sizes = [2, 32], strides = [1, 1]} : vector<2x128xf32> to vector<2x32xf32>
    %88 = vector.extract_strided_slice %86 {offsets = [0, 32], sizes = [2, 32], strides = [1, 1]} : vector<2x128xf32> to vector<2x32xf32>
    %89 = vector.extract_strided_slice %86 {offsets = [0, 64], sizes = [2, 32], strides = [1, 1]} : vector<2x128xf32> to vector<2x32xf32>
    %90 = vector.extract_strided_slice %86 {offsets = [0, 96], sizes = [2, 32], strides = [1, 1]} : vector<2x128xf32> to vector<2x32xf32>
    %91 = arith.mulf %88, %37 : vector<2x32xf32>
    %92 = arith.mulf %87, %89 : vector<2x32xf32>
    %93 = arith.addf %91, %92 : vector<2x32xf32>
    %94 = math.tanh %93 : vector<2x32xf32>
    %95 = arith.mulf %90, %94 : vector<2x32xf32>
    %c0_31 = arith.constant 0 : index
    %c0_32 = arith.constant 0 : index
    %96 = vector.load %arg4[%c0_31, %c0_32] : memref<32x128xf32, #tpu.memory_space<vmem>>, vector<32x128xf32>
    %cst_33 = arith.constant dense<0.000000e+00> : vector<2x128xf32>
    %97 = tpu.matmul %95, %96, %cst_33 {dimension_numbers = #tpu.dot_dimension_numbers<[1], [0], [0], [1], [0, 0, 1, 1], [], []>} : vector<2x32xf32>, vector<32x128xf32>, vector<2x128xf32> -> vector<2x128xf32>
    %98 = vector.broadcast %8 : vector<1x128xf32> to vector<2x128xf32>
    %99 = arith.addf %97, %98 : vector<2x128xf32>
    %c0_34 = arith.constant 0 : index
    %c0_35 = arith.constant 0 : index
    %100 = vector.load %arg5[%c0_34, %c0_35] : memref<32x128xf32, #tpu.memory_space<vmem>>, vector<32x128xf32>
    %cst_36 = arith.constant dense<0.000000e+00> : vector<2x128xf32>
    %101 = tpu.matmul %68, %100, %cst_36 {dimension_numbers = #tpu.dot_dimension_numbers<[1], [0], [0], [1], [0, 0, 1, 1], [], []>} : vector<2x32xf32>, vector<32x128xf32>, vector<2x128xf32> -> vector<2x128xf32>
    %102 = arith.addf %99, %101 : vector<2x128xf32>
    %103 = tpu.iota {dimensions = array<i32: 1>} : vector<2x128xi32>
    %c64_i32_37 = arith.constant 64 : i32
    %104 = vector.broadcast %c64_i32_37 : i32 to vector<2x128xi32>
    %105 = arith.cmpi sge, %103, %104 : vector<2x128xi32>
    %c96_i32_38 = arith.constant 96 : i32
    %106 = vector.broadcast %c96_i32_38 : i32 to vector<2x128xi32>
    %107 = arith.cmpi slt, %103, %106 : vector<2x128xi32>
    %108 = arith.andi %105, %107 : vector<2x128xi1>
    %109 = math.tanh %102 : vector<2x128xf32>
    %110 = arith.negf %102 : vector<2x128xf32>
    %111 = math.exp %110 : vector<2x128xf32>
    %cst_39 = arith.constant 1.000000e+00 : f32
    %112 = vector.broadcast %cst_39 : f32 to vector<2x128xf32>
    %113 = arith.addf %112, %111 : vector<2x128xf32>
    %114 = arith.divf %112, %113 : vector<2x128xf32>
    %115 = arith.select %108, %109, %114 : vector<2x128xi1>, vector<2x128xf32>
    %116 = vector.extract_strided_slice %115 {offsets = [0, 0], sizes = [2, 32], strides = [1, 1]} : vector<2x128xf32> to vector<2x32xf32>
    %117 = vector.extract_strided_slice %115 {offsets = [0, 32], sizes = [2, 32], strides = [1, 1]} : vector<2x128xf32> to vector<2x32xf32>
    %118 = vector.extract_strided_slice %115 {offsets = [0, 64], sizes = [2, 32], strides = [1, 1]} : vector<2x128xf32> to vector<2x32xf32>
    %119 = vector.extract_strided_slice %115 {offsets = [0, 96], sizes = [2, 32], strides = [1, 1]} : vector<2x128xf32> to vector<2x32xf32>
    %120 = arith.mulf %117, %66 : vector<2x32xf32>
    %121 = arith.mulf %116, %118 : vector<2x32xf32>
    %122 = arith.addf %120, %121 : vector<2x32xf32>
    %123 = math.tanh %122 : vector<2x32xf32>
    %124 = arith.mulf %119, %123 : vector<2x32xf32>
    %125 = vector.extract_strided_slice %7 {offsets = [0, 2, 0], sizes = [2, 1, 128], strides = [1, 1, 1]} : vector<2x8x128xf32> to vector<2x1x128xf32>
    %126 = vector.shape_cast %125 : vector<2x1x128xf32> to vector<2x128xf32>
    %c0_40 = arith.constant 0 : index
    %c0_41 = arith.constant 0 : index
    %127 = vector.load %arg2[%c0_40, %c0_41] : memref<32x128xf32, #tpu.memory_space<vmem>>, vector<32x128xf32>
    %cst_42 = arith.constant dense<0.000000e+00> : vector<2x128xf32>
    %128 = tpu.matmul %95, %127, %cst_42 {dimension_numbers = #tpu.dot_dimension_numbers<[1], [0], [0], [1], [0, 0, 1, 1], [], []>} : vector<2x32xf32>, vector<32x128xf32>, vector<2x128xf32> -> vector<2x128xf32>
    %129 = arith.addf %126, %128 : vector<2x128xf32>
    %130 = tpu.iota {dimensions = array<i32: 1>} : vector<2x128xi32>
    %c64_i32_43 = arith.constant 64 : i32
    %131 = vector.broadcast %c64_i32_43 : i32 to vector<2x128xi32>
    %132 = arith.cmpi sge, %130, %131 : vector<2x128xi32>
    %c96_i32_44 = arith.constant 96 : i32
    %133 = vector.broadcast %c96_i32_44 : i32 to vector<2x128xi32>
    %134 = arith.cmpi slt, %130, %133 : vector<2x128xi32>
    %135 = arith.andi %132, %134 : vector<2x128xi1>
    %136 = math.tanh %129 : vector<2x128xf32>
    %137 = arith.negf %129 : vector<2x128xf32>
    %138 = math.exp %137 : vector<2x128xf32>
    %cst_45 = arith.constant 1.000000e+00 : f32
    %139 = vector.broadcast %cst_45 : f32 to vector<2x128xf32>
    %140 = arith.addf %139, %138 : vector<2x128xf32>
    %141 = arith.divf %139, %140 : vector<2x128xf32>
    %142 = arith.select %135, %136, %141 : vector<2x128xi1>, vector<2x128xf32>
    %143 = vector.extract_strided_slice %142 {offsets = [0, 0], sizes = [2, 32], strides = [1, 1]} : vector<2x128xf32> to vector<2x32xf32>
    %144 = vector.extract_strided_slice %142 {offsets = [0, 32], sizes = [2, 32], strides = [1, 1]} : vector<2x128xf32> to vector<2x32xf32>
    %145 = vector.extract_strided_slice %142 {offsets = [0, 64], sizes = [2, 32], strides = [1, 1]} : vector<2x128xf32> to vector<2x32xf32>
    %146 = vector.extract_strided_slice %142 {offsets = [0, 96], sizes = [2, 32], strides = [1, 1]} : vector<2x128xf32> to vector<2x32xf32>
    %147 = arith.mulf %144, %93 : vector<2x32xf32>
    %148 = arith.mulf %143, %145 : vector<2x32xf32>
    %149 = arith.addf %147, %148 : vector<2x32xf32>
    %150 = math.tanh %149 : vector<2x32xf32>
    %151 = arith.mulf %146, %150 : vector<2x32xf32>
    %c0_46 = arith.constant 0 : index
    %c0_47 = arith.constant 0 : index
    %152 = vector.load %arg4[%c0_46, %c0_47] : memref<32x128xf32, #tpu.memory_space<vmem>>, vector<32x128xf32>
    %cst_48 = arith.constant dense<0.000000e+00> : vector<2x128xf32>
    %153 = tpu.matmul %151, %152, %cst_48 {dimension_numbers = #tpu.dot_dimension_numbers<[1], [0], [0], [1], [0, 0, 1, 1], [], []>} : vector<2x32xf32>, vector<32x128xf32>, vector<2x128xf32> -> vector<2x128xf32>
    %154 = vector.broadcast %8 : vector<1x128xf32> to vector<2x128xf32>
    %155 = arith.addf %153, %154 : vector<2x128xf32>
    %c0_49 = arith.constant 0 : index
    %c0_50 = arith.constant 0 : index
    %156 = vector.load %arg5[%c0_49, %c0_50] : memref<32x128xf32, #tpu.memory_space<vmem>>, vector<32x128xf32>
    %cst_51 = arith.constant dense<0.000000e+00> : vector<2x128xf32>
    %157 = tpu.matmul %124, %156, %cst_51 {dimension_numbers = #tpu.dot_dimension_numbers<[1], [0], [0], [1], [0, 0, 1, 1], [], []>} : vector<2x32xf32>, vector<32x128xf32>, vector<2x128xf32> -> vector<2x128xf32>
    %158 = arith.addf %155, %157 : vector<2x128xf32>
    %159 = tpu.iota {dimensions = array<i32: 1>} : vector<2x128xi32>
    %c64_i32_52 = arith.constant 64 : i32
    %160 = vector.broadcast %c64_i32_52 : i32 to vector<2x128xi32>
    %161 = arith.cmpi sge, %159, %160 : vector<2x128xi32>
    %c96_i32_53 = arith.constant 96 : i32
    %162 = vector.broadcast %c96_i32_53 : i32 to vector<2x128xi32>
    %163 = arith.cmpi slt, %159, %162 : vector<2x128xi32>
    %164 = arith.andi %161, %163 : vector<2x128xi1>
    %165 = math.tanh %158 : vector<2x128xf32>
    %166 = arith.negf %158 : vector<2x128xf32>
    %167 = math.exp %166 : vector<2x128xf32>
    %cst_54 = arith.constant 1.000000e+00 : f32
    %168 = vector.broadcast %cst_54 : f32 to vector<2x128xf32>
    %169 = arith.addf %168, %167 : vector<2x128xf32>
    %170 = arith.divf %168, %169 : vector<2x128xf32>
    %171 = arith.select %164, %165, %170 : vector<2x128xi1>, vector<2x128xf32>
    %172 = vector.extract_strided_slice %171 {offsets = [0, 0], sizes = [2, 32], strides = [1, 1]} : vector<2x128xf32> to vector<2x32xf32>
    %173 = vector.extract_strided_slice %171 {offsets = [0, 32], sizes = [2, 32], strides = [1, 1]} : vector<2x128xf32> to vector<2x32xf32>
    %174 = vector.extract_strided_slice %171 {offsets = [0, 64], sizes = [2, 32], strides = [1, 1]} : vector<2x128xf32> to vector<2x32xf32>
    %175 = vector.extract_strided_slice %171 {offsets = [0, 96], sizes = [2, 32], strides = [1, 1]} : vector<2x128xf32> to vector<2x32xf32>
    %176 = arith.mulf %173, %122 : vector<2x32xf32>
    %177 = arith.mulf %172, %174 : vector<2x32xf32>
    %178 = arith.addf %176, %177 : vector<2x32xf32>
    %179 = math.tanh %178 : vector<2x32xf32>
    %180 = arith.mulf %175, %179 : vector<2x32xf32>
    %181 = vector.extract_strided_slice %7 {offsets = [0, 3, 0], sizes = [2, 1, 128], strides = [1, 1, 1]} : vector<2x8x128xf32> to vector<2x1x128xf32>
    %182 = vector.shape_cast %181 : vector<2x1x128xf32> to vector<2x128xf32>
    %c0_55 = arith.constant 0 : index
    %c0_56 = arith.constant 0 : index
    %183 = vector.load %arg2[%c0_55, %c0_56] : memref<32x128xf32, #tpu.memory_space<vmem>>, vector<32x128xf32>
    %cst_57 = arith.constant dense<0.000000e+00> : vector<2x128xf32>
    %184 = tpu.matmul %151, %183, %cst_57 {dimension_numbers = #tpu.dot_dimension_numbers<[1], [0], [0], [1], [0, 0, 1, 1], [], []>} : vector<2x32xf32>, vector<32x128xf32>, vector<2x128xf32> -> vector<2x128xf32>
    %185 = arith.addf %182, %184 : vector<2x128xf32>
    %186 = tpu.iota {dimensions = array<i32: 1>} : vector<2x128xi32>
    %c64_i32_58 = arith.constant 64 : i32
    %187 = vector.broadcast %c64_i32_58 : i32 to vector<2x128xi32>
    %188 = arith.cmpi sge, %186, %187 : vector<2x128xi32>
    %c96_i32_59 = arith.constant 96 : i32
    %189 = vector.broadcast %c96_i32_59 : i32 to vector<2x128xi32>
    %190 = arith.cmpi slt, %186, %189 : vector<2x128xi32>
    %191 = arith.andi %188, %190 : vector<2x128xi1>
    %192 = math.tanh %185 : vector<2x128xf32>
    %193 = arith.negf %185 : vector<2x128xf32>
    %194 = math.exp %193 : vector<2x128xf32>
    %cst_60 = arith.constant 1.000000e+00 : f32
    %195 = vector.broadcast %cst_60 : f32 to vector<2x128xf32>
    %196 = arith.addf %195, %194 : vector<2x128xf32>
    %197 = arith.divf %195, %196 : vector<2x128xf32>
    %198 = arith.select %191, %192, %197 : vector<2x128xi1>, vector<2x128xf32>
    %199 = vector.extract_strided_slice %198 {offsets = [0, 0], sizes = [2, 32], strides = [1, 1]} : vector<2x128xf32> to vector<2x32xf32>
    %200 = vector.extract_strided_slice %198 {offsets = [0, 32], sizes = [2, 32], strides = [1, 1]} : vector<2x128xf32> to vector<2x32xf32>
    %201 = vector.extract_strided_slice %198 {offsets = [0, 64], sizes = [2, 32], strides = [1, 1]} : vector<2x128xf32> to vector<2x32xf32>
    %202 = vector.extract_strided_slice %198 {offsets = [0, 96], sizes = [2, 32], strides = [1, 1]} : vector<2x128xf32> to vector<2x32xf32>
    %203 = arith.mulf %200, %149 : vector<2x32xf32>
    %204 = arith.mulf %199, %201 : vector<2x32xf32>
    %205 = arith.addf %203, %204 : vector<2x32xf32>
    %206 = math.tanh %205 : vector<2x32xf32>
    %207 = arith.mulf %202, %206 : vector<2x32xf32>
    %c0_61 = arith.constant 0 : index
    %c0_62 = arith.constant 0 : index
    %208 = vector.load %arg4[%c0_61, %c0_62] : memref<32x128xf32, #tpu.memory_space<vmem>>, vector<32x128xf32>
    %cst_63 = arith.constant dense<0.000000e+00> : vector<2x128xf32>
    %209 = tpu.matmul %207, %208, %cst_63 {dimension_numbers = #tpu.dot_dimension_numbers<[1], [0], [0], [1], [0, 0, 1, 1], [], []>} : vector<2x32xf32>, vector<32x128xf32>, vector<2x128xf32> -> vector<2x128xf32>
    %210 = vector.broadcast %8 : vector<1x128xf32> to vector<2x128xf32>
    %211 = arith.addf %209, %210 : vector<2x128xf32>
    %c0_64 = arith.constant 0 : index
    %c0_65 = arith.constant 0 : index
    %212 = vector.load %arg5[%c0_64, %c0_65] : memref<32x128xf32, #tpu.memory_space<vmem>>, vector<32x128xf32>
    %cst_66 = arith.constant dense<0.000000e+00> : vector<2x128xf32>
    %213 = tpu.matmul %180, %212, %cst_66 {dimension_numbers = #tpu.dot_dimension_numbers<[1], [0], [0], [1], [0, 0, 1, 1], [], []>} : vector<2x32xf32>, vector<32x128xf32>, vector<2x128xf32> -> vector<2x128xf32>
    %214 = arith.addf %211, %213 : vector<2x128xf32>
    %215 = tpu.iota {dimensions = array<i32: 1>} : vector<2x128xi32>
    %c64_i32_67 = arith.constant 64 : i32
    %216 = vector.broadcast %c64_i32_67 : i32 to vector<2x128xi32>
    %217 = arith.cmpi sge, %215, %216 : vector<2x128xi32>
    %c96_i32_68 = arith.constant 96 : i32
    %218 = vector.broadcast %c96_i32_68 : i32 to vector<2x128xi32>
    %219 = arith.cmpi slt, %215, %218 : vector<2x128xi32>
    %220 = arith.andi %217, %219 : vector<2x128xi1>
    %221 = math.tanh %214 : vector<2x128xf32>
    %222 = arith.negf %214 : vector<2x128xf32>
    %223 = math.exp %222 : vector<2x128xf32>
    %cst_69 = arith.constant 1.000000e+00 : f32
    %224 = vector.broadcast %cst_69 : f32 to vector<2x128xf32>
    %225 = arith.addf %224, %223 : vector<2x128xf32>
    %226 = arith.divf %224, %225 : vector<2x128xf32>
    %227 = arith.select %220, %221, %226 : vector<2x128xi1>, vector<2x128xf32>
    %228 = vector.extract_strided_slice %227 {offsets = [0, 0], sizes = [2, 32], strides = [1, 1]} : vector<2x128xf32> to vector<2x32xf32>
    %229 = vector.extract_strided_slice %227 {offsets = [0, 32], sizes = [2, 32], strides = [1, 1]} : vector<2x128xf32> to vector<2x32xf32>
    %230 = vector.extract_strided_slice %227 {offsets = [0, 64], sizes = [2, 32], strides = [1, 1]} : vector<2x128xf32> to vector<2x32xf32>
    %231 = vector.extract_strided_slice %227 {offsets = [0, 96], sizes = [2, 32], strides = [1, 1]} : vector<2x128xf32> to vector<2x32xf32>
    %232 = arith.mulf %229, %178 : vector<2x32xf32>
    %233 = arith.mulf %228, %230 : vector<2x32xf32>
    %234 = arith.addf %232, %233 : vector<2x32xf32>
    %235 = math.tanh %234 : vector<2x32xf32>
    %236 = arith.mulf %231, %235 : vector<2x32xf32>
    %237 = vector.extract_strided_slice %7 {offsets = [0, 4, 0], sizes = [2, 1, 128], strides = [1, 1, 1]} : vector<2x8x128xf32> to vector<2x1x128xf32>
    %238 = vector.shape_cast %237 : vector<2x1x128xf32> to vector<2x128xf32>
    %c0_70 = arith.constant 0 : index
    %c0_71 = arith.constant 0 : index
    %239 = vector.load %arg2[%c0_70, %c0_71] : memref<32x128xf32, #tpu.memory_space<vmem>>, vector<32x128xf32>
    %cst_72 = arith.constant dense<0.000000e+00> : vector<2x128xf32>
    %240 = tpu.matmul %207, %239, %cst_72 {dimension_numbers = #tpu.dot_dimension_numbers<[1], [0], [0], [1], [0, 0, 1, 1], [], []>} : vector<2x32xf32>, vector<32x128xf32>, vector<2x128xf32> -> vector<2x128xf32>
    %241 = arith.addf %238, %240 : vector<2x128xf32>
    %242 = tpu.iota {dimensions = array<i32: 1>} : vector<2x128xi32>
    %c64_i32_73 = arith.constant 64 : i32
    %243 = vector.broadcast %c64_i32_73 : i32 to vector<2x128xi32>
    %244 = arith.cmpi sge, %242, %243 : vector<2x128xi32>
    %c96_i32_74 = arith.constant 96 : i32
    %245 = vector.broadcast %c96_i32_74 : i32 to vector<2x128xi32>
    %246 = arith.cmpi slt, %242, %245 : vector<2x128xi32>
    %247 = arith.andi %244, %246 : vector<2x128xi1>
    %248 = math.tanh %241 : vector<2x128xf32>
    %249 = arith.negf %241 : vector<2x128xf32>
    %250 = math.exp %249 : vector<2x128xf32>
    %cst_75 = arith.constant 1.000000e+00 : f32
    %251 = vector.broadcast %cst_75 : f32 to vector<2x128xf32>
    %252 = arith.addf %251, %250 : vector<2x128xf32>
    %253 = arith.divf %251, %252 : vector<2x128xf32>
    %254 = arith.select %247, %248, %253 : vector<2x128xi1>, vector<2x128xf32>
    %255 = vector.extract_strided_slice %254 {offsets = [0, 0], sizes = [2, 32], strides = [1, 1]} : vector<2x128xf32> to vector<2x32xf32>
    %256 = vector.extract_strided_slice %254 {offsets = [0, 32], sizes = [2, 32], strides = [1, 1]} : vector<2x128xf32> to vector<2x32xf32>
    %257 = vector.extract_strided_slice %254 {offsets = [0, 64], sizes = [2, 32], strides = [1, 1]} : vector<2x128xf32> to vector<2x32xf32>
    %258 = vector.extract_strided_slice %254 {offsets = [0, 96], sizes = [2, 32], strides = [1, 1]} : vector<2x128xf32> to vector<2x32xf32>
    %259 = arith.mulf %256, %205 : vector<2x32xf32>
    %260 = arith.mulf %255, %257 : vector<2x32xf32>
    %261 = arith.addf %259, %260 : vector<2x32xf32>
    %262 = math.tanh %261 : vector<2x32xf32>
    %263 = arith.mulf %258, %262 : vector<2x32xf32>
    %c0_76 = arith.constant 0 : index
    %c0_77 = arith.constant 0 : index
    %264 = vector.load %arg4[%c0_76, %c0_77] : memref<32x128xf32, #tpu.memory_space<vmem>>, vector<32x128xf32>
    %cst_78 = arith.constant dense<0.000000e+00> : vector<2x128xf32>
    %265 = tpu.matmul %263, %264, %cst_78 {dimension_numbers = #tpu.dot_dimension_numbers<[1], [0], [0], [1], [0, 0, 1, 1], [], []>} : vector<2x32xf32>, vector<32x128xf32>, vector<2x128xf32> -> vector<2x128xf32>
    %266 = vector.broadcast %8 : vector<1x128xf32> to vector<2x128xf32>
    %267 = arith.addf %265, %266 : vector<2x128xf32>
    %c0_79 = arith.constant 0 : index
    %c0_80 = arith.constant 0 : index
    %268 = vector.load %arg5[%c0_79, %c0_80] : memref<32x128xf32, #tpu.memory_space<vmem>>, vector<32x128xf32>
    %cst_81 = arith.constant dense<0.000000e+00> : vector<2x128xf32>
    %269 = tpu.matmul %236, %268, %cst_81 {dimension_numbers = #tpu.dot_dimension_numbers<[1], [0], [0], [1], [0, 0, 1, 1], [], []>} : vector<2x32xf32>, vector<32x128xf32>, vector<2x128xf32> -> vector<2x128xf32>
    %270 = arith.addf %267, %269 : vector<2x128xf32>
    %271 = tpu.iota {dimensions = array<i32: 1>} : vector<2x128xi32>
    %c64_i32_82 = arith.constant 64 : i32
    %272 = vector.broadcast %c64_i32_82 : i32 to vector<2x128xi32>
    %273 = arith.cmpi sge, %271, %272 : vector<2x128xi32>
    %c96_i32_83 = arith.constant 96 : i32
    %274 = vector.broadcast %c96_i32_83 : i32 to vector<2x128xi32>
    %275 = arith.cmpi slt, %271, %274 : vector<2x128xi32>
    %276 = arith.andi %273, %275 : vector<2x128xi1>
    %277 = math.tanh %270 : vector<2x128xf32>
    %278 = arith.negf %270 : vector<2x128xf32>
    %279 = math.exp %278 : vector<2x128xf32>
    %cst_84 = arith.constant 1.000000e+00 : f32
    %280 = vector.broadcast %cst_84 : f32 to vector<2x128xf32>
    %281 = arith.addf %280, %279 : vector<2x128xf32>
    %282 = arith.divf %280, %281 : vector<2x128xf32>
    %283 = arith.select %276, %277, %282 : vector<2x128xi1>, vector<2x128xf32>
    %284 = vector.extract_strided_slice %283 {offsets = [0, 0], sizes = [2, 32], strides = [1, 1]} : vector<2x128xf32> to vector<2x32xf32>
    %285 = vector.extract_strided_slice %283 {offsets = [0, 32], sizes = [2, 32], strides = [1, 1]} : vector<2x128xf32> to vector<2x32xf32>
    %286 = vector.extract_strided_slice %283 {offsets = [0, 64], sizes = [2, 32], strides = [1, 1]} : vector<2x128xf32> to vector<2x32xf32>
    %287 = vector.extract_strided_slice %283 {offsets = [0, 96], sizes = [2, 32], strides = [1, 1]} : vector<2x128xf32> to vector<2x32xf32>
    %288 = arith.mulf %285, %234 : vector<2x32xf32>
    %289 = arith.mulf %284, %286 : vector<2x32xf32>
    %290 = arith.addf %288, %289 : vector<2x32xf32>
    %291 = math.tanh %290 : vector<2x32xf32>
    %292 = arith.mulf %287, %291 : vector<2x32xf32>
    %293 = vector.extract_strided_slice %7 {offsets = [0, 5, 0], sizes = [2, 1, 128], strides = [1, 1, 1]} : vector<2x8x128xf32> to vector<2x1x128xf32>
    %294 = vector.shape_cast %293 : vector<2x1x128xf32> to vector<2x128xf32>
    %c0_85 = arith.constant 0 : index
    %c0_86 = arith.constant 0 : index
    %295 = vector.load %arg2[%c0_85, %c0_86] : memref<32x128xf32, #tpu.memory_space<vmem>>, vector<32x128xf32>
    %cst_87 = arith.constant dense<0.000000e+00> : vector<2x128xf32>
    %296 = tpu.matmul %263, %295, %cst_87 {dimension_numbers = #tpu.dot_dimension_numbers<[1], [0], [0], [1], [0, 0, 1, 1], [], []>} : vector<2x32xf32>, vector<32x128xf32>, vector<2x128xf32> -> vector<2x128xf32>
    %297 = arith.addf %294, %296 : vector<2x128xf32>
    %298 = tpu.iota {dimensions = array<i32: 1>} : vector<2x128xi32>
    %c64_i32_88 = arith.constant 64 : i32
    %299 = vector.broadcast %c64_i32_88 : i32 to vector<2x128xi32>
    %300 = arith.cmpi sge, %298, %299 : vector<2x128xi32>
    %c96_i32_89 = arith.constant 96 : i32
    %301 = vector.broadcast %c96_i32_89 : i32 to vector<2x128xi32>
    %302 = arith.cmpi slt, %298, %301 : vector<2x128xi32>
    %303 = arith.andi %300, %302 : vector<2x128xi1>
    %304 = math.tanh %297 : vector<2x128xf32>
    %305 = arith.negf %297 : vector<2x128xf32>
    %306 = math.exp %305 : vector<2x128xf32>
    %cst_90 = arith.constant 1.000000e+00 : f32
    %307 = vector.broadcast %cst_90 : f32 to vector<2x128xf32>
    %308 = arith.addf %307, %306 : vector<2x128xf32>
    %309 = arith.divf %307, %308 : vector<2x128xf32>
    %310 = arith.select %303, %304, %309 : vector<2x128xi1>, vector<2x128xf32>
    %311 = vector.extract_strided_slice %310 {offsets = [0, 0], sizes = [2, 32], strides = [1, 1]} : vector<2x128xf32> to vector<2x32xf32>
    %312 = vector.extract_strided_slice %310 {offsets = [0, 32], sizes = [2, 32], strides = [1, 1]} : vector<2x128xf32> to vector<2x32xf32>
    %313 = vector.extract_strided_slice %310 {offsets = [0, 64], sizes = [2, 32], strides = [1, 1]} : vector<2x128xf32> to vector<2x32xf32>
    %314 = vector.extract_strided_slice %310 {offsets = [0, 96], sizes = [2, 32], strides = [1, 1]} : vector<2x128xf32> to vector<2x32xf32>
    %315 = arith.mulf %312, %261 : vector<2x32xf32>
    %316 = arith.mulf %311, %313 : vector<2x32xf32>
    %317 = arith.addf %315, %316 : vector<2x32xf32>
    %318 = math.tanh %317 : vector<2x32xf32>
    %319 = arith.mulf %314, %318 : vector<2x32xf32>
    %c0_91 = arith.constant 0 : index
    %c0_92 = arith.constant 0 : index
    %320 = vector.load %arg4[%c0_91, %c0_92] : memref<32x128xf32, #tpu.memory_space<vmem>>, vector<32x128xf32>
    %cst_93 = arith.constant dense<0.000000e+00> : vector<2x128xf32>
    %321 = tpu.matmul %319, %320, %cst_93 {dimension_numbers = #tpu.dot_dimension_numbers<[1], [0], [0], [1], [0, 0, 1, 1], [], []>} : vector<2x32xf32>, vector<32x128xf32>, vector<2x128xf32> -> vector<2x128xf32>
    %322 = vector.broadcast %8 : vector<1x128xf32> to vector<2x128xf32>
    %323 = arith.addf %321, %322 : vector<2x128xf32>
    %c0_94 = arith.constant 0 : index
    %c0_95 = arith.constant 0 : index
    %324 = vector.load %arg5[%c0_94, %c0_95] : memref<32x128xf32, #tpu.memory_space<vmem>>, vector<32x128xf32>
    %cst_96 = arith.constant dense<0.000000e+00> : vector<2x128xf32>
    %325 = tpu.matmul %292, %324, %cst_96 {dimension_numbers = #tpu.dot_dimension_numbers<[1], [0], [0], [1], [0, 0, 1, 1], [], []>} : vector<2x32xf32>, vector<32x128xf32>, vector<2x128xf32> -> vector<2x128xf32>
    %326 = arith.addf %323, %325 : vector<2x128xf32>
    %327 = tpu.iota {dimensions = array<i32: 1>} : vector<2x128xi32>
    %c64_i32_97 = arith.constant 64 : i32
    %328 = vector.broadcast %c64_i32_97 : i32 to vector<2x128xi32>
    %329 = arith.cmpi sge, %327, %328 : vector<2x128xi32>
    %c96_i32_98 = arith.constant 96 : i32
    %330 = vector.broadcast %c96_i32_98 : i32 to vector<2x128xi32>
    %331 = arith.cmpi slt, %327, %330 : vector<2x128xi32>
    %332 = arith.andi %329, %331 : vector<2x128xi1>
    %333 = math.tanh %326 : vector<2x128xf32>
    %334 = arith.negf %326 : vector<2x128xf32>
    %335 = math.exp %334 : vector<2x128xf32>
    %cst_99 = arith.constant 1.000000e+00 : f32
    %336 = vector.broadcast %cst_99 : f32 to vector<2x128xf32>
    %337 = arith.addf %336, %335 : vector<2x128xf32>
    %338 = arith.divf %336, %337 : vector<2x128xf32>
    %339 = arith.select %332, %333, %338 : vector<2x128xi1>, vector<2x128xf32>
    %340 = vector.extract_strided_slice %339 {offsets = [0, 0], sizes = [2, 32], strides = [1, 1]} : vector<2x128xf32> to vector<2x32xf32>
    %341 = vector.extract_strided_slice %339 {offsets = [0, 32], sizes = [2, 32], strides = [1, 1]} : vector<2x128xf32> to vector<2x32xf32>
    %342 = vector.extract_strided_slice %339 {offsets = [0, 64], sizes = [2, 32], strides = [1, 1]} : vector<2x128xf32> to vector<2x32xf32>
    %343 = vector.extract_strided_slice %339 {offsets = [0, 96], sizes = [2, 32], strides = [1, 1]} : vector<2x128xf32> to vector<2x32xf32>
    %344 = arith.mulf %341, %290 : vector<2x32xf32>
    %345 = arith.mulf %340, %342 : vector<2x32xf32>
    %346 = arith.addf %344, %345 : vector<2x32xf32>
    %347 = math.tanh %346 : vector<2x32xf32>
    %348 = arith.mulf %343, %347 : vector<2x32xf32>
    %349 = vector.extract_strided_slice %7 {offsets = [0, 6, 0], sizes = [2, 1, 128], strides = [1, 1, 1]} : vector<2x8x128xf32> to vector<2x1x128xf32>
    %350 = vector.shape_cast %349 : vector<2x1x128xf32> to vector<2x128xf32>
    %c0_100 = arith.constant 0 : index
    %c0_101 = arith.constant 0 : index
    %351 = vector.load %arg2[%c0_100, %c0_101] : memref<32x128xf32, #tpu.memory_space<vmem>>, vector<32x128xf32>
    %cst_102 = arith.constant dense<0.000000e+00> : vector<2x128xf32>
    %352 = tpu.matmul %319, %351, %cst_102 {dimension_numbers = #tpu.dot_dimension_numbers<[1], [0], [0], [1], [0, 0, 1, 1], [], []>} : vector<2x32xf32>, vector<32x128xf32>, vector<2x128xf32> -> vector<2x128xf32>
    %353 = arith.addf %350, %352 : vector<2x128xf32>
    %354 = tpu.iota {dimensions = array<i32: 1>} : vector<2x128xi32>
    %c64_i32_103 = arith.constant 64 : i32
    %355 = vector.broadcast %c64_i32_103 : i32 to vector<2x128xi32>
    %356 = arith.cmpi sge, %354, %355 : vector<2x128xi32>
    %c96_i32_104 = arith.constant 96 : i32
    %357 = vector.broadcast %c96_i32_104 : i32 to vector<2x128xi32>
    %358 = arith.cmpi slt, %354, %357 : vector<2x128xi32>
    %359 = arith.andi %356, %358 : vector<2x128xi1>
    %360 = math.tanh %353 : vector<2x128xf32>
    %361 = arith.negf %353 : vector<2x128xf32>
    %362 = math.exp %361 : vector<2x128xf32>
    %cst_105 = arith.constant 1.000000e+00 : f32
    %363 = vector.broadcast %cst_105 : f32 to vector<2x128xf32>
    %364 = arith.addf %363, %362 : vector<2x128xf32>
    %365 = arith.divf %363, %364 : vector<2x128xf32>
    %366 = arith.select %359, %360, %365 : vector<2x128xi1>, vector<2x128xf32>
    %367 = vector.extract_strided_slice %366 {offsets = [0, 0], sizes = [2, 32], strides = [1, 1]} : vector<2x128xf32> to vector<2x32xf32>
    %368 = vector.extract_strided_slice %366 {offsets = [0, 32], sizes = [2, 32], strides = [1, 1]} : vector<2x128xf32> to vector<2x32xf32>
    %369 = vector.extract_strided_slice %366 {offsets = [0, 64], sizes = [2, 32], strides = [1, 1]} : vector<2x128xf32> to vector<2x32xf32>
    %370 = vector.extract_strided_slice %366 {offsets = [0, 96], sizes = [2, 32], strides = [1, 1]} : vector<2x128xf32> to vector<2x32xf32>
    %371 = arith.mulf %368, %317 : vector<2x32xf32>
    %372 = arith.mulf %367, %369 : vector<2x32xf32>
    %373 = arith.addf %371, %372 : vector<2x32xf32>
    %374 = math.tanh %373 : vector<2x32xf32>
    %375 = arith.mulf %370, %374 : vector<2x32xf32>
    %c0_106 = arith.constant 0 : index
    %c0_107 = arith.constant 0 : index
    %376 = vector.load %arg4[%c0_106, %c0_107] : memref<32x128xf32, #tpu.memory_space<vmem>>, vector<32x128xf32>
    %cst_108 = arith.constant dense<0.000000e+00> : vector<2x128xf32>
    %377 = tpu.matmul %375, %376, %cst_108 {dimension_numbers = #tpu.dot_dimension_numbers<[1], [0], [0], [1], [0, 0, 1, 1], [], []>} : vector<2x32xf32>, vector<32x128xf32>, vector<2x128xf32> -> vector<2x128xf32>
    %378 = vector.broadcast %8 : vector<1x128xf32> to vector<2x128xf32>
    %379 = arith.addf %377, %378 : vector<2x128xf32>
    %c0_109 = arith.constant 0 : index
    %c0_110 = arith.constant 0 : index
    %380 = vector.load %arg5[%c0_109, %c0_110] : memref<32x128xf32, #tpu.memory_space<vmem>>, vector<32x128xf32>
    %cst_111 = arith.constant dense<0.000000e+00> : vector<2x128xf32>
    %381 = tpu.matmul %348, %380, %cst_111 {dimension_numbers = #tpu.dot_dimension_numbers<[1], [0], [0], [1], [0, 0, 1, 1], [], []>} : vector<2x32xf32>, vector<32x128xf32>, vector<2x128xf32> -> vector<2x128xf32>
    %382 = arith.addf %379, %381 : vector<2x128xf32>
    %383 = tpu.iota {dimensions = array<i32: 1>} : vector<2x128xi32>
    %c64_i32_112 = arith.constant 64 : i32
    %384 = vector.broadcast %c64_i32_112 : i32 to vector<2x128xi32>
    %385 = arith.cmpi sge, %383, %384 : vector<2x128xi32>
    %c96_i32_113 = arith.constant 96 : i32
    %386 = vector.broadcast %c96_i32_113 : i32 to vector<2x128xi32>
    %387 = arith.cmpi slt, %383, %386 : vector<2x128xi32>
    %388 = arith.andi %385, %387 : vector<2x128xi1>
    %389 = math.tanh %382 : vector<2x128xf32>
    %390 = arith.negf %382 : vector<2x128xf32>
    %391 = math.exp %390 : vector<2x128xf32>
    %cst_114 = arith.constant 1.000000e+00 : f32
    %392 = vector.broadcast %cst_114 : f32 to vector<2x128xf32>
    %393 = arith.addf %392, %391 : vector<2x128xf32>
    %394 = arith.divf %392, %393 : vector<2x128xf32>
    %395 = arith.select %388, %389, %394 : vector<2x128xi1>, vector<2x128xf32>
    %396 = vector.extract_strided_slice %395 {offsets = [0, 0], sizes = [2, 32], strides = [1, 1]} : vector<2x128xf32> to vector<2x32xf32>
    %397 = vector.extract_strided_slice %395 {offsets = [0, 32], sizes = [2, 32], strides = [1, 1]} : vector<2x128xf32> to vector<2x32xf32>
    %398 = vector.extract_strided_slice %395 {offsets = [0, 64], sizes = [2, 32], strides = [1, 1]} : vector<2x128xf32> to vector<2x32xf32>
    %399 = vector.extract_strided_slice %395 {offsets = [0, 96], sizes = [2, 32], strides = [1, 1]} : vector<2x128xf32> to vector<2x32xf32>
    %400 = arith.mulf %397, %346 : vector<2x32xf32>
    %401 = arith.mulf %396, %398 : vector<2x32xf32>
    %402 = arith.addf %400, %401 : vector<2x32xf32>
    %403 = math.tanh %402 : vector<2x32xf32>
    %404 = arith.mulf %399, %403 : vector<2x32xf32>
    %405 = vector.extract_strided_slice %7 {offsets = [0, 7, 0], sizes = [2, 1, 128], strides = [1, 1, 1]} : vector<2x8x128xf32> to vector<2x1x128xf32>
    %406 = vector.shape_cast %405 : vector<2x1x128xf32> to vector<2x128xf32>
    %c0_115 = arith.constant 0 : index
    %c0_116 = arith.constant 0 : index
    %407 = vector.load %arg2[%c0_115, %c0_116] : memref<32x128xf32, #tpu.memory_space<vmem>>, vector<32x128xf32>
    %cst_117 = arith.constant dense<0.000000e+00> : vector<2x128xf32>
    %408 = tpu.matmul %375, %407, %cst_117 {dimension_numbers = #tpu.dot_dimension_numbers<[1], [0], [0], [1], [0, 0, 1, 1], [], []>} : vector<2x32xf32>, vector<32x128xf32>, vector<2x128xf32> -> vector<2x128xf32>
    %409 = arith.addf %406, %408 : vector<2x128xf32>
    %410 = tpu.iota {dimensions = array<i32: 1>} : vector<2x128xi32>
    %c64_i32_118 = arith.constant 64 : i32
    %411 = vector.broadcast %c64_i32_118 : i32 to vector<2x128xi32>
    %412 = arith.cmpi sge, %410, %411 : vector<2x128xi32>
    %c96_i32_119 = arith.constant 96 : i32
    %413 = vector.broadcast %c96_i32_119 : i32 to vector<2x128xi32>
    %414 = arith.cmpi slt, %410, %413 : vector<2x128xi32>
    %415 = arith.andi %412, %414 : vector<2x128xi1>
    %416 = math.tanh %409 : vector<2x128xf32>
    %417 = arith.negf %409 : vector<2x128xf32>
    %418 = math.exp %417 : vector<2x128xf32>
    %cst_120 = arith.constant 1.000000e+00 : f32
    %419 = vector.broadcast %cst_120 : f32 to vector<2x128xf32>
    %420 = arith.addf %419, %418 : vector<2x128xf32>
    %421 = arith.divf %419, %420 : vector<2x128xf32>
    %422 = arith.select %415, %416, %421 : vector<2x128xi1>, vector<2x128xf32>
    %423 = vector.extract_strided_slice %422 {offsets = [0, 0], sizes = [2, 32], strides = [1, 1]} : vector<2x128xf32> to vector<2x32xf32>
    %424 = vector.extract_strided_slice %422 {offsets = [0, 32], sizes = [2, 32], strides = [1, 1]} : vector<2x128xf32> to vector<2x32xf32>
    %425 = vector.extract_strided_slice %422 {offsets = [0, 64], sizes = [2, 32], strides = [1, 1]} : vector<2x128xf32> to vector<2x32xf32>
    %426 = vector.extract_strided_slice %422 {offsets = [0, 96], sizes = [2, 32], strides = [1, 1]} : vector<2x128xf32> to vector<2x32xf32>
    %427 = arith.mulf %424, %373 : vector<2x32xf32>
    %428 = arith.mulf %423, %425 : vector<2x32xf32>
    %429 = arith.addf %427, %428 : vector<2x32xf32>
    %430 = math.tanh %429 : vector<2x32xf32>
    %431 = arith.mulf %426, %430 : vector<2x32xf32>
    %c0_121 = arith.constant 0 : index
    %c0_122 = arith.constant 0 : index
    %432 = vector.load %arg4[%c0_121, %c0_122] : memref<32x128xf32, #tpu.memory_space<vmem>>, vector<32x128xf32>
    %cst_123 = arith.constant dense<0.000000e+00> : vector<2x128xf32>
    %433 = tpu.matmul %431, %432, %cst_123 {dimension_numbers = #tpu.dot_dimension_numbers<[1], [0], [0], [1], [0, 0, 1, 1], [], []>} : vector<2x32xf32>, vector<32x128xf32>, vector<2x128xf32> -> vector<2x128xf32>
    %434 = vector.broadcast %8 : vector<1x128xf32> to vector<2x128xf32>
    %435 = arith.addf %433, %434 : vector<2x128xf32>
    %c0_124 = arith.constant 0 : index
    %c0_125 = arith.constant 0 : index
    %436 = vector.load %arg5[%c0_124, %c0_125] : memref<32x128xf32, #tpu.memory_space<vmem>>, vector<32x128xf32>
    %cst_126 = arith.constant dense<0.000000e+00> : vector<2x128xf32>
    %437 = tpu.matmul %404, %436, %cst_126 {dimension_numbers = #tpu.dot_dimension_numbers<[1], [0], [0], [1], [0, 0, 1, 1], [], []>} : vector<2x32xf32>, vector<32x128xf32>, vector<2x128xf32> -> vector<2x128xf32>
    %438 = arith.addf %435, %437 : vector<2x128xf32>
    %439 = tpu.iota {dimensions = array<i32: 1>} : vector<2x128xi32>
    %c64_i32_127 = arith.constant 64 : i32
    %440 = vector.broadcast %c64_i32_127 : i32 to vector<2x128xi32>
    %441 = arith.cmpi sge, %439, %440 : vector<2x128xi32>
    %c96_i32_128 = arith.constant 96 : i32
    %442 = vector.broadcast %c96_i32_128 : i32 to vector<2x128xi32>
    %443 = arith.cmpi slt, %439, %442 : vector<2x128xi32>
    %444 = arith.andi %441, %443 : vector<2x128xi1>
    %445 = math.tanh %438 : vector<2x128xf32>
    %446 = arith.negf %438 : vector<2x128xf32>
    %447 = math.exp %446 : vector<2x128xf32>
    %cst_129 = arith.constant 1.000000e+00 : f32
    %448 = vector.broadcast %cst_129 : f32 to vector<2x128xf32>
    %449 = arith.addf %448, %447 : vector<2x128xf32>
    %450 = arith.divf %448, %449 : vector<2x128xf32>
    %451 = arith.select %444, %445, %450 : vector<2x128xi1>, vector<2x128xf32>
    %452 = vector.extract_strided_slice %451 {offsets = [0, 0], sizes = [2, 32], strides = [1, 1]} : vector<2x128xf32> to vector<2x32xf32>
    %453 = vector.extract_strided_slice %451 {offsets = [0, 32], sizes = [2, 32], strides = [1, 1]} : vector<2x128xf32> to vector<2x32xf32>
    %454 = vector.extract_strided_slice %451 {offsets = [0, 64], sizes = [2, 32], strides = [1, 1]} : vector<2x128xf32> to vector<2x32xf32>
    %455 = vector.extract_strided_slice %451 {offsets = [0, 96], sizes = [2, 32], strides = [1, 1]} : vector<2x128xf32> to vector<2x32xf32>
    %456 = arith.mulf %453, %402 : vector<2x32xf32>
    %457 = arith.mulf %452, %454 : vector<2x32xf32>
    %458 = arith.addf %456, %457 : vector<2x32xf32>
    %459 = math.tanh %458 : vector<2x32xf32>
    %460 = arith.mulf %455, %459 : vector<2x32xf32>
    %c0_130 = arith.constant 0 : index
    %c0_131 = arith.constant 0 : index
    %461 = vector.load %arg7[%c0_130, %c0_131] : memref<32x256xf32, #tpu.memory_space<vmem>>, vector<32x256xf32>
    %cst_132 = arith.constant dense<0.000000e+00> : vector<2x256xf32>
    %462 = tpu.matmul %460, %461, %cst_132 {dimension_numbers = #tpu.dot_dimension_numbers<[1], [0], [0], [1], [0, 0, 1, 1], [], []>} : vector<2x32xf32>, vector<32x256xf32>, vector<2x256xf32> -> vector<2x256xf32>
    %c0_133 = arith.constant 0 : index
    %c0_134 = arith.constant 0 : index
    %463 = vector.load %arg8[%c0_133, %c0_134] : memref<1x256xf32, #tpu.memory_space<vmem>>, vector<1x256xf32>
    %464 = vector.broadcast %463 : vector<1x256xf32> to vector<2x256xf32>
    %465 = arith.addf %462, %464 : vector<2x256xf32>
    %c0_135 = arith.constant 0 : index
    %c0_136 = arith.constant 0 : index
    %466 = vector.load %arg9[%c0_135, %c0_136] : memref<1x256xf32, #tpu.memory_space<vmem>>, vector<1x256xf32>
    %c0_137 = arith.constant 0 : index
    %c0_138 = arith.constant 0 : index
    %467 = vector.load %arg10[%c0_137, %c0_138] : memref<1x256xf32, #tpu.memory_space<vmem>>, vector<1x256xf32>
    %cst_139 = arith.constant dense<0.000000e+00> : vector<2xf32>
    %468 = vector.multi_reduction <add>, %465, %cst_139 [1] : vector<2x256xf32> to vector<2xf32>
    %469 = vector.shape_cast %468 : vector<2xf32> to vector<2x1xf32>
    %cst_140 = arith.constant 2.560000e+02 : f32
    %470 = vector.broadcast %cst_140 : f32 to vector<2x1xf32>
    %471 = arith.divf %469, %470 : vector<2x1xf32>
    %472 = vector.broadcast %471 : vector<2x1xf32> to vector<2x256xf32>
    %473 = arith.subf %465, %472 : vector<2x256xf32>
    %474 = arith.mulf %473, %473 : vector<2x256xf32>
    %cst_141 = arith.constant dense<0.000000e+00> : vector<2xf32>
    %475 = vector.multi_reduction <add>, %474, %cst_141 [1] : vector<2x256xf32> to vector<2xf32>
    %476 = vector.shape_cast %475 : vector<2xf32> to vector<2x1xf32>
    %cst_142 = arith.constant 2.560000e+02 : f32
    %477 = vector.broadcast %cst_142 : f32 to vector<2x1xf32>
    %478 = arith.divf %476, %477 : vector<2x1xf32>
    %479 = vector.broadcast %471 : vector<2x1xf32> to vector<2x256xf32>
    %480 = arith.subf %465, %479 : vector<2x256xf32>
    %cst_143 = arith.constant 9.99999974E-6 : f32
    %481 = vector.broadcast %cst_143 : f32 to vector<2x1xf32>
    %482 = arith.addf %478, %481 : vector<2x1xf32>
    %483 = math.rsqrt %482 : vector<2x1xf32>
    %484 = vector.broadcast %483 : vector<2x1xf32> to vector<2x256xf32>
    %485 = arith.mulf %480, %484 : vector<2x256xf32>
    %486 = vector.broadcast %466 : vector<1x256xf32> to vector<2x256xf32>
    %487 = arith.mulf %485, %486 : vector<2x256xf32>
    %488 = vector.broadcast %467 : vector<1x256xf32> to vector<2x256xf32>
    %489 = arith.addf %487, %488 : vector<2x256xf32>
    %cst_144 = arith.constant 5.000000e-01 : f32
    %490 = vector.broadcast %cst_144 : f32 to vector<2x256xf32>
    %491 = arith.mulf %490, %489 : vector<2x256xf32>
    %cst_145 = arith.constant 0.707106769 : f32
    %492 = vector.broadcast %cst_145 : f32 to vector<2x256xf32>
    %493 = arith.mulf %489, %492 : vector<2x256xf32>
    %494 = math.erf %493 : vector<2x256xf32>
    %cst_146 = arith.constant 1.000000e+00 : f32
    %495 = vector.broadcast %cst_146 : f32 to vector<2x256xf32>
    %496 = arith.addf %495, %494 : vector<2x256xf32>
    %497 = arith.mulf %491, %496 : vector<2x256xf32>
    %c0_147 = arith.constant 0 : index
    %c0_148 = arith.constant 0 : index
    %498 = vector.load %arg18[%c0_147, %c0_148] : memref<2x256xf32, #tpu.memory_space<vmem>>, vector<2x256xf32>
    tpu.vector_store %arg18[%c0_147, %c0_148], %497 {strides = array<i32>} : memref<2x256xf32, #tpu.memory_space<vmem>>, vector<2x256xf32>,
    %c0_149 = arith.constant 0 : index
    %c0_150 = arith.constant 0 : index
    %499 = vector.load %arg11[%c0_149, %c0_150] : memref<256x128xf32, #tpu.memory_space<vmem>>, vector<256x128xf32>
    %cst_151 = arith.constant dense<0.000000e+00> : vector<2x128xf32>
    %500 = tpu.matmul %497, %499, %cst_151 {dimension_numbers = #tpu.dot_dimension_numbers<[1], [0], [0], [1], [0, 0, 1, 1], [], []>} : vector<2x256xf32>, vector<256x128xf32>, vector<2x128xf32> -> vector<2x128xf32>
    %c0_152 = arith.constant 0 : index
    %c0_153 = arith.constant 0 : index
    %501 = vector.load %arg12[%c0_152, %c0_153] : memref<1x128xf32, #tpu.memory_space<vmem>>, vector<1x128xf32>
    %502 = vector.broadcast %501 : vector<1x128xf32> to vector<2x128xf32>
    %503 = arith.addf %500, %502 : vector<2x128xf32>
    %c0_154 = arith.constant 0 : index
    %c0_155 = arith.constant 0 : index
    %504 = vector.load %arg13[%c0_154, %c0_155] : memref<1x128xf32, #tpu.memory_space<vmem>>, vector<1x128xf32>
    %c0_156 = arith.constant 0 : index
    %c0_157 = arith.constant 0 : index
    %505 = vector.load %arg14[%c0_156, %c0_157] : memref<1x128xf32, #tpu.memory_space<vmem>>, vector<1x128xf32>
    %cst_158 = arith.constant dense<0.000000e+00> : vector<2xf32>
    %506 = vector.multi_reduction <add>, %503, %cst_158 [1] : vector<2x128xf32> to vector<2xf32>
    %507 = vector.shape_cast %506 : vector<2xf32> to vector<2x1xf32>
    %cst_159 = arith.constant 1.280000e+02 : f32
    %508 = vector.broadcast %cst_159 : f32 to vector<2x1xf32>
    %509 = arith.divf %507, %508 : vector<2x1xf32>
    %510 = vector.broadcast %509 : vector<2x1xf32> to vector<2x128xf32>
    %511 = arith.subf %503, %510 : vector<2x128xf32>
    %512 = arith.mulf %511, %511 : vector<2x128xf32>
    %cst_160 = arith.constant dense<0.000000e+00> : vector<2xf32>
    %513 = vector.multi_reduction <add>, %512, %cst_160 [1] : vector<2x128xf32> to vector<2xf32>
    %514 = vector.shape_cast %513 : vector<2xf32> to vector<2x1xf32>
    %cst_161 = arith.constant 1.280000e+02 : f32
    %515 = vector.broadcast %cst_161 : f32 to vector<2x1xf32>
    %516 = arith.divf %514, %515 : vector<2x1xf32>
    %517 = vector.broadcast %509 : vector<2x1xf32> to vector<2x128xf32>
    %518 = arith.subf %503, %517 : vector<2x128xf32>
    %cst_162 = arith.constant 9.99999974E-6 : f32
    %519 = vector.broadcast %cst_162 : f32 to vector<2x1xf32>
    %520 = arith.addf %516, %519 : vector<2x1xf32>
    %521 = math.rsqrt %520 : vector<2x1xf32>
    %522 = vector.broadcast %521 : vector<2x1xf32> to vector<2x128xf32>
    %523 = arith.mulf %518, %522 : vector<2x128xf32>
    %524 = vector.broadcast %504 : vector<1x128xf32> to vector<2x128xf32>
    %525 = arith.mulf %523, %524 : vector<2x128xf32>
    %526 = vector.broadcast %505 : vector<1x128xf32> to vector<2x128xf32>
    %527 = arith.addf %525, %526 : vector<2x128xf32>
    %cst_163 = arith.constant 5.000000e-01 : f32
    %528 = vector.broadcast %cst_163 : f32 to vector<2x128xf32>
    %529 = arith.mulf %528, %527 : vector<2x128xf32>
    %cst_164 = arith.constant 0.707106769 : f32
    %530 = vector.broadcast %cst_164 : f32 to vector<2x128xf32>
    %531 = arith.mulf %527, %530 : vector<2x128xf32>
    %532 = math.erf %531 : vector<2x128xf32>
    %cst_165 = arith.constant 1.000000e+00 : f32
    %533 = vector.broadcast %cst_165 : f32 to vector<2x128xf32>
    %534 = arith.addf %533, %532 : vector<2x128xf32>
    %535 = arith.mulf %529, %534 : vector<2x128xf32>
    %c0_166 = arith.constant 0 : index
    %c0_167 = arith.constant 0 : index
    %536 = vector.load %arg19[%c0_166, %c0_167] : memref<2x128xf32, #tpu.memory_space<vmem>>, vector<2x128xf32>
    tpu.vector_store %arg19[%c0_166, %c0_167], %535 {strides = array<i32>} : memref<2x128xf32, #tpu.memory_space<vmem>>, vector<2x128xf32>,
    %c0_168 = arith.constant 0 : index
    %c0_169 = arith.constant 0 : index
    %537 = vector.load %arg15[%c0_168, %c0_169] : memref<128x16xf32, #tpu.memory_space<vmem>>, vector<128x16xf32>
    %cst_170 = arith.constant dense<0.000000e+00> : vector<2x16xf32>
    %538 = tpu.matmul %535, %537, %cst_170 {dimension_numbers = #tpu.dot_dimension_numbers<[1], [0], [0], [1], [0, 0, 1, 1], [], []>} : vector<2x128xf32>, vector<128x16xf32>, vector<2x16xf32> -> vector<2x16xf32>
    %c0_171 = arith.constant 0 : index
    %c0_172 = arith.constant 0 : index
    %539 = vector.load %arg16[%c0_171, %c0_172] : memref<1x16xf32, #tpu.memory_space<vmem>>, vector<1x16xf32>
    %540 = vector.broadcast %539 : vector<1x16xf32> to vector<2x16xf32>
    %541 = arith.addf %538, %540 : vector<2x16xf32>
    %542 = arith.mulf %541, %541 : vector<2x16xf32>
    %cst_173 = arith.constant dense<0.000000e+00> : vector<2xf32>
    %543 = vector.multi_reduction <add>, %542, %cst_173 [1] : vector<2x16xf32> to vector<2xf32>
    %544 = vector.shape_cast %543 : vector<2xf32> to vector<2x1xf32>
    %cst_174 = arith.constant 1.000000e-24 : f32
    %545 = vector.broadcast %cst_174 : f32 to vector<2x1xf32>
    %546 = arith.maximumf %544, %545 : vector<2x1xf32>
    %547 = math.rsqrt %546 : vector<2x1xf32>
    %548 = vector.broadcast %547 : vector<2x1xf32> to vector<2x16xf32>
    %549 = arith.mulf %541, %548 : vector<2x16xf32>
    %c0_175 = arith.constant 0 : index
    %c0_176 = arith.constant 0 : index
    %550 = vector.load %arg17[%c0_175, %c0_176] : memref<2x16xf32, #tpu.memory_space<vmem>>, vector<2x16xf32>
    tpu.vector_store %arg17[%c0_175, %c0_176], %549 {strides = array<i32>} : memref<2x16xf32, #tpu.memory_space<vmem>>, vector<2x16xf32>,
    return
  }
}

</mosaic_0001>

<llo_original>
// kernel: _lambda_.1
$region0: #{_lambda_.1}
  #allocation0 [shape = 'u32[]', space=smem, size = 0x4, offset = 0x4, fixed_abs, tag = 'smem constant byte address 0x4 - core index']
  #allocation1 [shape = 'u32[144,128]{1,0:T(1,128)}', space=vmem, size = 0x12000, scoped, tag = 'internal scratch']
  %s0 = inlined_call_operand.hbm [shape: f32[2,8,256], index: 0, kind: input, shape index: {}]
  %s1 = inlined_call_operand.hbm [shape: f32[256,128], index: 1, kind: input, shape index: {}]
  %s2 = inlined_call_operand.hbm [shape: f32[32,128], index: 2, kind: input, shape index: {}]
  %s3 = inlined_call_operand.vmem [shape: f32[1,128], index: 3, kind: input, shape index: {}]
  %s4 = inlined_call_operand.hbm [shape: f32[32,128], index: 4, kind: input, shape index: {}]
  %s5 = inlined_call_operand.vmem [shape: f32[32,128], index: 5, kind: input, shape index: {}]
  %s6 = inlined_call_operand.vmem [shape: f32[1,128], index: 6, kind: input, shape index: {}]
  %s7 = inlined_call_operand.hbm [shape: f32[32,256], index: 7, kind: input, shape index: {}]
  %s8 = inlined_call_operand.vmem [shape: f32[1,256], index: 8, kind: input, shape index: {}]
  %s9 = inlined_call_operand.vmem [shape: f32[1,256], index: 9, kind: input, shape index: {}]
  %s10 = inlined_call_operand.vmem [shape: f32[1,256], index: 10, kind: input, shape index: {}]
  %s11 = inlined_call_operand.hbm [shape: f32[256,128], index: 11, kind: input, shape index: {}]
  %s12 = inlined_call_operand.vmem [shape: f32[1,128], index: 12, kind: input, shape index: {}]
  %s13 = inlined_call_operand.vmem [shape: f32[1,128], index: 13, kind: input, shape index: {}]
  %s14 = inlined_call_operand.vmem [shape: f32[1,128], index: 14, kind: input, shape index: {}]
  %s15 = inlined_call_operand.hbm [shape: f32[128,16], index: 15, kind: input, shape index: {}]
  %s16 = inlined_call_operand.vmem [shape: f32[1,16], index: 16, kind: input, shape index: {}]
  %s17 = inlined_call_operand.hbm [shape: f32[2,16], index: 17, kind: output, shape index: {0}]
  %s18 = inlined_call_operand.vmem [shape: f32[2,256], index: 18, kind: output, shape index: {1}]
  %s19 = inlined_call_operand.hbm [shape: f32[2,128], index: 19, kind: output, shape index: {2}]
  %20 = xla_tuple %s17, %s18, %s19
  %s21 = sld [smem:[#allocation0]]
  $region122: #{_lambda_.1} parent=0
    _
  %s23 = ssub.s32 1, %s21
  %s24 = scalar_select 0, %s23, %s21
  $region1: #{_lambda_.1} parent=0
    #allocation2 [shape = 'u8[16384]{0}', space=vmem, size = 0x4000, scoped, tag = 'input window, operand 0, single buffered']
    #allocation3 [shape = 's32[1]{0}', space=sflag, size = 0x4, scoped, tag = 'scoped memory for _lambda_.1']
    #allocation4 [shape = 's32[1]{0}', space=sflag, size = 0x4, scoped, tag = 'scoped memory for _lambda_.1']
    #allocation5 [shape = 'u8[131072]{0}', space=vmem, size = 0x20000, scoped, tag = 'input window, operand 1, single buffered']
    #allocation6 [shape = 's32[1]{0}', space=sflag, size = 0x4, scoped, tag = 'scoped memory for _lambda_.1']
    #allocation7 [shape = 'u8[16384]{0}', space=vmem, size = 0x4000, scoped, tag = 'input window, operand 2, single buffered']
    #allocation8 [shape = 'u8[16384]{0}', space=vmem, size = 0x4000, scoped, tag = 'input window, operand 4, single buffered']
    #allocation9 [shape = 's32[1]{0}', space=sflag, size = 0x4, scoped, tag = 'scoped memory for _lambda_.1']
    #allocation10 [shape = 'u8[32768]{0}', space=vmem, size = 0x8000, scoped, tag = 'input window, operand 7, single buffered']
    #allocation11 [shape = 'u8[131072]{0}', space=vmem, size = 0x20000, scoped, tag = 'input window, operand 11, single buffered']
    #allocation12 [shape = 's32[1]{0}', space=sflag, size = 0x4, scoped, tag = 'scoped memory for _lambda_.1']
    #allocation13 [shape = 'u8[65536]{0}', space=vmem, size = 0x10000, scoped, tag = 'input window, operand 15, single buffered']
    #allocation14 [shape = 'u8[1024]{0}', space=vmem, size = 0x400, scoped, tag = 'output window, operand 0, single buffered']
    #allocation15 [shape = 'u8[1024]{0}', space=vmem, size = 0x400, scoped, tag = 'output window, operand 2, single buffered']
    #allocation16 [shape = 's32[1]{0}', space=sflag, size = 0x4, scoped, tag = 'scoped memory for _lambda_.1']
    %25 = vsyncpa [#allocation3], 0
    %26 = vsyncpa [#allocation6], 0
    %27 = vsyncpa [#allocation9], 0
    %28 = vsyncpa [#allocation12], 0
    %29 = vsyncpa [#allocation4], 0
    %30 = vsyncpa [#allocation16], 0
    // Predicated region
    $region2: #{_lambda_.1} parent=1 // pred_check
      _
    $region3: #{_lambda_.1} parent=1 // pred_check_branch
      %32 = sbr.rel (0) target = $region5
    $region4: #{_lambda_.1} parent=1 // pred_region
      %s34 = ssub.s32 512, 512
      %35 = vsyncadd [#allocation3], %s34
      %s36 = sshll.u32 [#allocation2], 4
      %s37 = int_to_ptr.vmem [resolvable:$true] %s36
      %42 = dma.hbm_to_vmem [thread:$0]  %s0, 512, %s37, [#allocation3], 256, 256, 16
    $region5: #{_lambda_.1} parent=1 // pred_fallthru
      _
    // Predicated region
    $region6: #{_lambda_.1} parent=1 // pred_check
      _
    $region7: #{_lambda_.1} parent=1 // pred_check_branch
      %44 = sbr.rel (0) target = $region9
    $region8: #{_lambda_.1} parent=1 // pred_region
      %s46 = ssub.s32 4096, 4096
      %47 = vsyncadd [#allocation6], %s46
      %s48 = sshll.u32 [#allocation5], 4
      %s49 = int_to_ptr.vmem [resolvable:$true] %s48
      %54 = dma.hbm_to_vmem [thread:$0]  %s1, 4096, %s49, [#allocation6], 128, 128, 8
    $region9: #{_lambda_.1} parent=1 // pred_fallthru
      _
    // Predicated region
    $region10: #{_lambda_.1} parent=1 // pred_check
      _
    $region11: #{_lambda_.1} parent=1 // pred_check_branch
      %56 = sbr.rel (0) target = $region13
    $region12: #{_lambda_.1} parent=1 // pred_region
      %s58 = ssub.s32 512, 512
      %59 = vsyncadd [#allocation6], %s58
      %s60 = sshll.u32 [#allocation7], 4
      %s61 = int_to_ptr.vmem [resolvable:$true] %s60
      %66 = dma.hbm_to_vmem [thread:$0]  %s2, 512, %s61, [#allocation6], 128, 128, 8
    $region13: #{_lambda_.1} parent=1 // pred_fallthru
      _
    // Predicated region
    $region14: #{_lambda_.1} parent=1 // pred_check
      _
    $region15: #{_lambda_.1} parent=1 // pred_check_branch
      %68 = sbr.rel (0) target = $region17
    $region16: #{_lambda_.1} parent=1 // pred_region
      _
    $region17: #{_lambda_.1} parent=1 // pred_fallthru
      _
    // Predicated region
    $region18: #{_lambda_.1} parent=1 // pred_check
      _
    $region19: #{_lambda_.1} parent=1 // pred_check_branch
      %70 = sbr.rel (0) target = $region21
    $region20: #{_lambda_.1} parent=1 // pred_region
      %s72 = ssub.s32 512, 512
      %73 = vsyncadd [#allocation9], %s72
      %s74 = sshll.u32 [#allocation8], 4
      %s75 = int_to_ptr.vmem [resolvable:$true] %s74
      %80 = dma.hbm_to_vmem [thread:$0]  %s4, 512, %s75, [#allocation9], 128, 128, 8
    $region21: #{_lambda_.1} parent=1 // pred_fallthru
      _
    // Predicated region
    $region22: #{_lambda_.1} parent=1 // pred_check
      _
    $region23: #{_lambda_.1} parent=1 // pred_check_branch
      %82 = sbr.rel (0) target = $region25
    $region24: #{_lambda_.1} parent=1 // pred_region
      _
    $region25: #{_lambda_.1} parent=1 // pred_fallthru
      _
    // Predicated region
    $region26: #{_lambda_.1} parent=1 // pred_check
      _
    $region27: #{_lambda_.1} parent=1 // pred_check_branch
      %84 = sbr.rel (0) target = $region29
    $region28: #{_lambda_.1} parent=1 // pred_region
      _
    $region29: #{_lambda_.1} parent=1 // pred_fallthru
      _
    // Predicated region
    $region30: #{_lambda_.1} parent=1 // pred_check
      _
    $region31: #{_lambda_.1} parent=1 // pred_check_branch
      %86 = sbr.rel (0) target = $region33
    $region32: #{_lambda_.1} parent=1 // pred_region
      %s88 = ssub.s32 1024, 1024
      %89 = vsyncadd [#allocation9], %s88
      %s90 = sshll.u32 [#allocation10], 4
      %s91 = int_to_ptr.vmem [resolvable:$true] %s90
      %96 = dma.hbm_to_vmem [thread:$0]  %s7, 1024, %s91, [#allocation9], 256, 256, 16
    $region33: #{_lambda_.1} parent=1 // pred_fallthru
      _
    // Predicated region
    $region34: #{_lambda_.1} parent=1 // pred_check
      _
    $region35: #{_lambda_.1} parent=1 // pred_check_branch
      %98 = sbr.rel (0) target = $region37
    $region36: #{_lambda_.1} parent=1 // pred_region
      _
    $region37: #{_lambda_.1} parent=1 // pred_fallthru
      _
    // Predicated region
    $region38: #{_lambda_.1} parent=1 // pred_check
      _
    $region39: #{_lambda_.1} parent=1 // pred_check_branch
      %100 = sbr.rel (0) target = $region41
    $region40: #{_lambda_.1} parent=1 // pred_region
      _
    $region41: #{_lambda_.1} parent=1 // pred_fallthru
      _
    // Predicated region
    $region42: #{_lambda_.1} parent=1 // pred_check
      _
    $region43: #{_lambda_.1} parent=1 // pred_check_branch
      %102 = sbr.rel (0) target = $region45
    $region44: #{_lambda_.1} parent=1 // pred_region
      _
    $region45: #{_lambda_.1} parent=1 // pred_fallthru
      _
    // Predicated region
    $region46: #{_lambda_.1} parent=1 // pred_check
      _
    $region47: #{_lambda_.1} parent=1 // pred_check_branch
      %104 = sbr.rel (0) target = $region49
    $region48: #{_lambda_.1} parent=1 // pred_region
      %s106 = ssub.s32 4096, 4096
      %107 = vsyncadd [#allocation12], %s106
      %s108 = sshll.u32 [#allocation11], 4
      %s109 = int_to_ptr.vmem [resolvable:$true] %s108
      %114 = dma.hbm_to_vmem [thread:$0]  %s11, 4096, %s109, [#allocation12], 128, 128, 8
    $region49: #{_lambda_.1} parent=1 // pred_fallthru
      _
    // Predicated region
    $region50: #{_lambda_.1} parent=1 // pred_check
      _
    $region51: #{_lambda_.1} parent=1 // pred_check_branch
      %116 = sbr.rel (0) target = $region53
    $region52: #{_lambda_.1} parent=1 // pred_region
      _
    $region53: #{_lambda_.1} parent=1 // pred_fallthru
      _
    // Predicated region
    $region54: #{_lambda_.1} parent=1 // pred_check
      _
    $region55: #{_lambda_.1} parent=1 // pred_check_branch
      %118 = sbr.rel (0) target = $region57
    $region56: #{_lambda_.1} parent=1 // pred_region
      _
    $region57: #{_lambda_.1} parent=1 // pred_fallthru
      _
    // Predicated region
    $region58: #{_lambda_.1} parent=1 // pred_check
      _
    $region59: #{_lambda_.1} parent=1 // pred_check_branch
      %120 = sbr.rel (0) target = $region61
    $region60: #{_lambda_.1} parent=1 // pred_region
      _
    $region61: #{_lambda_.1} parent=1 // pred_fallthru
      _
    // Predicated region
    $region62: #{_lambda_.1} parent=1 // pred_check
      _
    $region63: #{_lambda_.1} parent=1 // pred_check_branch
      %122 = sbr.rel (0) target = $region65
    $region64: #{_lambda_.1} parent=1 // pred_region
      %s124 = ssub.s32 2048, 2048
      %125 = vsyncadd [#allocation12], %s124
      %s126 = sshll.u32 [#allocation13], 4
      %s127 = int_to_ptr.vmem [resolvable:$true] %s126
      %132 = dma.hbm_to_vmem [thread:$0]  %s15, 2048, %s127, [#allocation12], 128, 128, 8
    $region65: #{_lambda_.1} parent=1 // pred_fallthru
      _
    // Predicated region
    $region66: #{_lambda_.1} parent=1 // pred_check
      _
    $region67: #{_lambda_.1} parent=1 // pred_check_branch
      %134 = sbr.rel (0) target = $region69
    $region68: #{_lambda_.1} parent=1 // pred_region
      _
    $region69: #{_lambda_.1} parent=1 // pred_fallthru
      _
    // Predicated region
    $region70: #{_lambda_.1} parent=1 // pred_check
      _
    $region71: #{_lambda_.1} parent=1 // pred_check_branch
      %136 = sbr.rel (0) target = $region73
    $region72: #{_lambda_.1} parent=1 // pred_region
      %137 = dma.done [#allocation3], 512
    $region73: #{_lambda_.1} parent=1 // pred_fallthru
      _
    // Predicated region
    $region74: #{_lambda_.1} parent=1 // pred_check
      _
    $region75: #{_lambda_.1} parent=1 // pred_check_branch
      %139 = sbr.rel (0) target = $region77
    $region76: #{_lambda_.1} parent=1 // pred_region
      %140 = dma.done [#allocation6], 4096
    $region77: #{_lambda_.1} parent=1 // pred_fallthru
      _
    // Predicated region
    $region78: #{_lambda_.1} parent=1 // pred_check
      _
    $region79: #{_lambda_.1} parent=1 // pred_check_branch
      %142 = sbr.rel (0) target = $region81
    $region80: #{_lambda_.1} parent=1 // pred_region
      %143 = dma.done [#allocation6], 512
    $region81: #{_lambda_.1} parent=1 // pred_fallthru
      _
    // Predicated region
    $region82: #{_lambda_.1} parent=1 // pred_check
      _
    $region83: #{_lambda_.1} parent=1 // pred_check_branch
      %145 = sbr.rel (0) target = $region85
    $region84: #{_lambda_.1} parent=1 // pred_region
      %146 = dma.done [#allocation9], 512
    $region85: #{_lambda_.1} parent=1 // pred_fallthru
      _
    // Predicated region
    $region86: #{_lambda_.1} parent=1 // pred_check
      _
    $region87: #{_lambda_.1} parent=1 // pred_check_branch
      %148 = sbr.rel (0) target = $region89
    $region88: #{_lambda_.1} parent=1 // pred_region
      %149 = dma.done [#allocation9], 1024
    $region89: #{_lambda_.1} parent=1 // pred_fallthru
      _
    // Predicated region
    $region90: #{_lambda_.1} parent=1 // pred_check
      _
    $region91: #{_lambda_.1} parent=1 // pred_check_branch
      %151 = sbr.rel (0) target = $region93
    $region92: #{_lambda_.1} parent=1 // pred_region
      %152 = dma.done [#allocation12], 4096
    $region93: #{_lambda_.1} parent=1 // pred_fallthru
      _
    // Predicated region
    $region94: #{_lambda_.1} parent=1 // pred_check
      _
    $region95: #{_lambda_.1} parent=1 // pred_check_branch
      %154 = sbr.rel (0) target = $region97
    $region96: #{_lambda_.1} parent=1 // pred_region
      %155 = dma.done [#allocation12], 2048
    $region97: #{_lambda_.1} parent=1 // pred_fallthru
      _
    %v156 = vld [vmem:[#allocation2] sm:$0xff]
    %v157 = vld [vmem:[#allocation2 + $0x8] sm:$0xff]
    %v158 = vld [vmem:[#allocation2 + $0x10] sm:$0xff]
    %v159 = vld [vmem:[#allocation2 + $0x18] sm:$0xff]
    %v160 = vld [vmem:[#allocation5] sm:$0xff]
    %v161 = vld [vmem:[#allocation5 + $0x8] sm:$0xff]
    %v162 = vld [vmem:[#allocation5 + $0x10] sm:$0xff]
    %v163 = vld [vmem:[#allocation5 + $0x18] sm:$0xff]
    %v164 = vld [vmem:[#allocation5 + $0x20] sm:$0xff]
    %v165 = vld [vmem:[#allocation5 + $0x28] sm:$0xff]
    %v166 = vld [vmem:[#allocation5 + $0x30] sm:$0xff]
    %v167 = vld [vmem:[#allocation5 + $0x38] sm:$0xff]
    %v168 = vld [vmem:[#allocation5 + $0x40] sm:$0xff]
    %v169 = vld [vmem:[#allocation5 + $0x48] sm:$0xff]
    %v170 = vld [vmem:[#allocation5 + $0x50] sm:$0xff]
    %v171 = vld [vmem:[#allocation5 + $0x58] sm:$0xff]
    %v172 = vld [vmem:[#allocation5 + $0x60] sm:$0xff]
    %v173 = vld [vmem:[#allocation5 + $0x68] sm:$0xff]
    %v174 = vld [vmem:[#allocation5 + $0x70] sm:$0xff]
    %v175 = vld [vmem:[#allocation5 + $0x78] sm:$0xff]
    %v176 = vld [vmem:[#allocation5 + $0x80] sm:$0xff]
    %v177 = vld [vmem:[#allocation5 + $0x88] sm:$0xff]
    %v178 = vld [vmem:[#allocation5 + $0x90] sm:$0xff]
    %v179 = vld [vmem:[#allocation5 + $0x98] sm:$0xff]
    %v180 = vld [vmem:[#allocation5 + $0xa0] sm:$0xff]
    %v181 = vld [vmem:[#allocation5 + $0xa8] sm:$0xff]
    %v182 = vld [vmem:[#allocation5 + $0xb0] sm:$0xff]
    %v183 = vld [vmem:[#allocation5 + $0xb8] sm:$0xff]
    %v184 = vld [vmem:[#allocation5 + $0xc0] sm:$0xff]
    %v185 = vld [vmem:[#allocation5 + $0xc8] sm:$0xff]
    %v186 = vld [vmem:[#allocation5 + $0xd0] sm:$0xff]
    %v187 = vld [vmem:[#allocation5 + $0xd8] sm:$0xff]
    %v188 = vld [vmem:[#allocation5 + $0xe0] sm:$0xff]
    %v189 = vld [vmem:[#allocation5 + $0xe8] sm:$0xff]
    %v190 = vld [vmem:[#allocation5 + $0xf0] sm:$0xff]
    %v191 = vld [vmem:[#allocation5 + $0xf8] sm:$0xff]
    %v192 = vld [vmem:[%s3] sm:$0x1]
    %v194 = vlaneseq
    %v195 = vshrl.u32 %v194, 7
    %v196 = vsub.s32 0, %v195
    %v197 = vrot.slane %v192, %v196
    %199 = vmatprep.subr.mxu0 0.0
    %200 = vmatpush1.msra.mxu0 %v160
    %201 = vmatprep.subr.mxu0 0.0
    %202 = vmatpush1.msra.mxu0 %v161
    %203 = vmatprep.subr.mxu0 0.0
    %204 = vmatpush1.msra.mxu0 %v162
    %205 = vmatprep.subr.mxu0 0.0
    %206 = vmatpush1.msra.mxu0 %v163
    %207 = vmatprep.subr.mxu0 0.0
    %208 = vmatpush1.msra.mxu0 %v164
    %209 = vmatprep.subr.mxu0 0.0
    %210 = vmatpush1.msra.mxu0 %v165
    %211 = vmatprep.subr.mxu0 0.0
    %212 = vmatpush1.msra.mxu0 %v166
    %213 = vmatprep.subr.mxu0 0.0
    %214 = vmatpush1.msra.mxu0 %v167
    %215 = vmatprep.subr.mxu0 0.0
    %216 = vmatpush1.msra.mxu0 %v168
    %217 = vmatprep.subr.mxu0 0.0
    %218 = vmatpush1.msra.mxu0 %v169
    %219 = vmatprep.subr.mxu0 0.0
    %220 = vmatpush1.msra.mxu0 %v170
    %221 = vmatprep.subr.mxu0 0.0
    %222 = vmatpush1.msra.mxu0 %v171
    %223 = vmatprep.subr.mxu0 0.0
    %224 = vmatpush1.msra.mxu0 %v172
    %225 = vmatprep.subr.mxu0 0.0
    %226 = vmatpush1.msra.mxu0 %v173
    %227 = vmatprep.subr.mxu0 0.0
    %228 = vmatpush1.msra.mxu0 %v174
    %229 = vmatprep.subr.mxu0 0.0
    %230 = vmatpush1.msra.mxu0 %v175
    %231 = vmatprep.subr.mxu0 0.0
    %232 = vmatpush1.msra.mxu0 %v176
    %233 = vmatprep.subr.mxu0 0.0
    %234 = vmatpush1.msra.mxu0 %v177
    %235 = vmatprep.subr.mxu0 0.0
    %236 = vmatpush1.msra.mxu0 %v178
    %237 = vmatprep.subr.mxu0 0.0
    %238 = vmatpush1.msra.mxu0 %v179
    %239 = vmatprep.subr.mxu0 0.0
    %240 = vmatpush1.msra.mxu0 %v180
    %241 = vmatprep.subr.mxu0 0.0
    %242 = vmatpush1.msra.mxu0 %v181
    %243 = vmatprep.subr.mxu0 0.0
    %244 = vmatpush1.msra.mxu0 %v182
    %245 = vmatprep.subr.mxu0 0.0
    %246 = vmatpush1.msra.mxu0 %v183
    %247 = vmatprep.subr.mxu0 0.0
    %248 = vmatpush1.msra.mxu0 %v184
    %249 = vmatprep.subr.mxu0 0.0
    %250 = vmatpush1.msra.mxu0 %v185
    %251 = vmatprep.subr.mxu0 0.0
    %252 = vmatpush1.msra.mxu0 %v186
    %253 = vmatprep.subr.mxu0 0.0
    %254 = vmatpush1.msra.mxu0 %v187
    %255 = vmatprep.subr.mxu0 0.0
    %256 = vmatpush1.msra.mxu0 %v188
    %257 = vmatprep.subr.mxu0 0.0
    %258 = vmatpush1.msra.mxu0 %v189
    %259 = vmatprep.subr.mxu0 0.0
    %260 = vmatpush1.msra.mxu0 %v190
    %261 = vmatprep.subr.mxu0 0.0
    %262 = vmatpush1.msra.mxu0 %v191
    %263 = vmatprep.mubr.f32.mxu0 %v157
    %264 = vmatmul.mubr.f32.gmra.mrb[0].mxu0 %v156
    %v265 = vpop.f32.mrb[0].mxu0
    %v266 = vadd.f32 %v197, %v265
    %v267 = vpop.f32.mrb[0].mxu0
    %268 = vmatprep.mubr.f32.mxu0 %v159
    %269 = vmatmul.mubr.f32.gmra.mrb[0].mxu0 %v158
    %v270 = vpop.f32.mrb[0].mxu0
    %v271 = vadd.f32 %v197, %v270
    %v272 = vpop.f32.mrb[0].mxu0
    %273 = vdwg.mxu0
    %v274 = vld [vmem:[%s6] sm:$0x1]
    %v275 = vld [vmem:[#allocation7] sm:$0xff]
    %v276 = vld [vmem:[#allocation7 + $0x8] sm:$0xff]
    %v277 = vld [vmem:[#allocation7 + $0x10] sm:$0xff]
    %v278 = vld [vmem:[#allocation7 + $0x18] sm:$0xff]
    %vm279 = vcmask 261120
    %v281 = vsel %vm279, 0.0, 0
    %283 = vmatprep.subr.mxu0 0.0
    %284 = vmatpush1.msra.mxu0 %v275
    %285 = vmatprep.subr.mxu0 0.0
    %286 = vmatpush1.msra.mxu0 %v276
    %287 = vmatprep.subr.mxu0 0.0
    %288 = vmatpush1.msra.mxu0 %v277
    %289 = vmatprep.subr.mxu0 0.0
    %290 = vmatpush1.msra.mxu0 %v278
    %291 = vmatprep.subr.mxu0 0.0
    %292 = vmatpush1.msra.mxu0 0.0
    %293 = vmatprep.subr.mxu0 0.0
    %294 = vmatpush1.msra.mxu0 0.0
    %295 = vmatprep.subr.mxu0 0.0
    %296 = vmatpush1.msra.mxu0 0.0
    %297 = vmatprep.subr.mxu0 0.0
    %298 = vmatpush1.msra.mxu0 0.0
    %299 = vmatprep.subr.mxu0 0.0
    %300 = vmatpush1.msra.mxu0 0.0
    %301 = vmatprep.subr.mxu0 0.0
    %302 = vmatpush1.msra.mxu0 0.0
    %303 = vmatprep.subr.mxu0 0.0
    %304 = vmatpush1.msra.mxu0 0.0
    %305 = vmatprep.subr.mxu0 0.0
    %306 = vmatpush1.msra.mxu0 0.0
    %307 = vmatprep.subr.mxu0 0.0
    %308 = vmatpush1.msra.mxu0 0.0
    %309 = vmatprep.subr.mxu0 0.0
    %310 = vmatpush1.msra.mxu0 0.0
    %311 = vmatprep.subr.mxu0 0.0
    %312 = vmatpush1.msra.mxu0 0.0
    %313 = vmatprep.subr.mxu0 0.0
    %314 = vmatpush1.msra.mxu0 0.0
    %315 = vmatprep.subr.mxu0 0.0
    %316 = vmatpush1.msra.mxu0 0.0
    %317 = vmatprep.subr.mxu0 0.0
    %318 = vmatpush1.msra.mxu0 0.0
    %319 = vmatprep.subr.mxu0 0.0
    %320 = vmatpush1.msra.mxu0 0.0
    %321 = vmatprep.subr.mxu0 0.0
    %322 = vmatpush1.msra.mxu0 0.0
    %323 = vmatprep.subr.mxu0 0.0
    %324 = vmatpush1.msra.mxu0 0.0
    %325 = vmatprep.subr.mxu0 0.0
    %326 = vmatpush1.msra.mxu0 0.0
    %327 = vmatprep.subr.mxu0 0.0
    %328 = vmatpush1.msra.mxu0 0.0
    %329 = vmatprep.subr.mxu0 0.0
    %330 = vmatpush1.msra.mxu0 0.0
    %331 = vmatprep.subr.mxu0 0.0
    %332 = vmatpush1.msra.mxu0 0.0
    %333 = vmatprep.subr.mxu0 0.0
    %334 = vmatpush1.msra.mxu0 0.0
    %335 = vmatprep.subr.mxu0 0.0
    %336 = vmatpush1.msra.mxu0 0.0
    %337 = vmatprep.subr.mxu0 0.0
    %338 = vmatpush1.msra.mxu0 0.0
    %339 = vmatprep.subr.mxu0 0.0
    %340 = vmatpush1.msra.mxu0 0.0
    %341 = vmatprep.subr.mxu0 0.0
    %342 = vmatpush1.msra.mxu0 0.0
    %343 = vmatprep.subr.mxu0 0.0
    %344 = vmatpush1.msra.mxu0 0.0
    %345 = vmatprep.subr.mxu0 0.0
    %346 = vmatpush1.msra.mxu0 0.0
    %347 = vmatprep.mubr.f32.mxu0 0.0
    %348 = vmatmul.mubr.f32.gmra.mrb[0].mxu0 %v281
    %v349 = vpop.f32.mrb[0].mxu0
    %v350 = vadd.f32 0.0, %v349
    %v351 = vpop.f32.mrb[0].mxu0
    %352 = vdwg.mxu0
    %v354 = vrot.slane %v350, 1
    %v357 = vadd.f32 %v266, %v350
    %v358 = vadd.f32 %v271, %v354
    %v359 = vlaneseq
    %v360 = vand.u32 %v359, 127
    %vm361 = vcmp.ge.s32.totalorder %v360, 64
    %vm362 = vcmp.lt.s32.totalorder %v360, 96
    %vm363 = vmand %vm361, %vm362
    %v364 = vtanh.pop %v357
    %v365 = vtanh.pop %v358
    %v366 = vxor.u32 %v357, 2147483648
    %v367 = vxor.u32 %v358, 2147483648
    %v368 = vmul.f32 %v366, 1.442695
    %v369 = vpow.pop %v368
    %v370 = vmul.f32 %v367, 1.442695
    %v371 = vpow.pop %v370
    %v372 = vadd.f32 %v369, 1.0
    %v373 = vadd.f32 %v371, 1.0
    %v374 = vrcp.pop %v372
    %v375 = vmul.f32 1.0, %v374
    %v376 = vrcp.pop %v373
    %v377 = vmul.f32 1.0, %v376
    %v380 = vrot.slane %v365, 7
    %vm381 = vcmask 1041409
    %v382 = vsel %vm381, %v380, %v364
    %v386 = vrot.slane %v377, 7
    %v387 = vsel %vm381, %v386, %v375
    %v389 = vsel %vm363, %v382, %v387
    %v390 = vmul.f32 %v389, 0.0
    %392 = vrot.lane.b32.xlu0 %v389, 64
    %v393 = vpop.permute.xlu0 %392
    %v395 = vmul.f32 %v389, %v393
    %397 = vrot.lane.b32.xlu0 %v395, 32
    %v398 = vpop.permute.xlu0 %397
    %v400 = vadd.f32 %v390, %v398
    %v401 = vtanh.pop %v400
    %403 = vrot.lane.b32.xlu0 %v401, 64
    %v404 = vpop.permute.xlu0 %403
    %v406 = vmul.f32 %v389, %v404
    %v407 = vld [vmem:[#allocation8] sm:$0xff]
    %v408 = vld [vmem:[#allocation8 + $0x8] sm:$0xff]
    %v409 = vld [vmem:[#allocation8 + $0x10] sm:$0xff]
    %v410 = vld [vmem:[#allocation8 + $0x18] sm:$0xff]
    %v412 = vlaneseq
    %v413 = vshrl.u32 %v412, 7
    %v414 = vsub.s32 0, %v413
    %v415 = vrot.slane %v274, %v414
    %418 = vrot.lane.b32.xlu0 %v406, 32
    %v419 = vpop.permute.xlu0 %418
    %v420 = vsel %vm279, %v419, 0
    %422 = vmatprep.subr.mxu0 0.0
    %423 = vmatpush1.msra.mxu0 %v407
    %424 = vmatprep.subr.mxu0 0.0
    %425 = vmatpush1.msra.mxu0 %v408
    %426 = vmatprep.subr.mxu0 0.0
    %427 = vmatpush1.msra.mxu0 %v409
    %428 = vmatprep.subr.mxu0 0.0
    %429 = vmatpush1.msra.mxu0 %v410
    %430 = vmatprep.subr.mxu0 0.0
    %431 = vmatpush1.msra.mxu0 0.0
    %432 = vmatprep.subr.mxu0 0.0
    %433 = vmatpush1.msra.mxu0 0.0
    %434 = vmatprep.subr.mxu0 0.0
    %435 = vmatpush1.msra.mxu0 0.0
    %436 = vmatprep.subr.mxu0 0.0
    %437 = vmatpush1.msra.mxu0 0.0
    %438 = vmatprep.subr.mxu0 0.0
    %439 = vmatpush1.msra.mxu0 0.0
    %440 = vmatprep.subr.mxu0 0.0
    %441 = vmatpush1.msra.mxu0 0.0
    %442 = vmatprep.subr.mxu0 0.0
    %443 = vmatpush1.msra.mxu0 0.0
    %444 = vmatprep.subr.mxu0 0.0
    %445 = vmatpush1.msra.mxu0 0.0
    %446 = vmatprep.subr.mxu0 0.0
    %447 = vmatpush1.msra.mxu0 0.0
    %448 = vmatprep.subr.mxu0 0.0
    %449 = vmatpush1.msra.mxu0 0.0
    %450 = vmatprep.subr.mxu0 0.0
    %451 = vmatpush1.msra.mxu0 0.0
    %452 = vmatprep.subr.mxu0 0.0
    %453 = vmatpush1.msra.mxu0 0.0
    %454 = vmatprep.subr.mxu0 0.0
    %455 = vmatpush1.msra.mxu0 0.0
    %456 = vmatprep.subr.mxu0 0.0
    %457 = vmatpush1.msra.mxu0 0.0
    %458 = vmatprep.subr.mxu0 0.0
    %459 = vmatpush1.msra.mxu0 0.0
    %460 = vmatprep.subr.mxu0 0.0
    %461 = vmatpush1.msra.mxu0 0.0
    %462 = vmatprep.subr.mxu0 0.0
    %463 = vmatpush1.msra.mxu0 0.0
    %464 = vmatprep.subr.mxu0 0.0
    %465 = vmatpush1.msra.mxu0 0.0
    %466 = vmatprep.subr.mxu0 0.0
    %467 = vmatpush1.msra.mxu0 0.0
    %468 = vmatprep.subr.mxu0 0.0
    %469 = vmatpush1.msra.mxu0 0.0
    %470 = vmatprep.subr.mxu0 0.0
    %471 = vmatpush1.msra.mxu0 0.0
    %472 = vmatprep.subr.mxu0 0.0
    %473 = vmatpush1.msra.mxu0 0.0
    %474 = vmatprep.subr.mxu0 0.0
    %475 = vmatpush1.msra.mxu0 0.0
    %476 = vmatprep.subr.mxu0 0.0
    %477 = vmatpush1.msra.mxu0 0.0
    %478 = vmatprep.subr.mxu0 0.0
    %479 = vmatpush1.msra.mxu0 0.0
    %480 = vmatprep.subr.mxu0 0.0
    %481 = vmatpush1.msra.mxu0 0.0
    %482 = vmatprep.subr.mxu0 0.0
    %483 = vmatpush1.msra.mxu0 0.0
    %484 = vmatprep.subr.mxu0 0.0
    %485 = vmatpush1.msra.mxu0 0.0
    %486 = vmatprep.mubr.f32.mxu0 0.0
    %487 = vmatmul.mubr.f32.gmra.mrb[0].mxu0 %v420
    %v488 = vpop.f32.mrb[0].mxu0
    %v489 = vadd.f32 %v415, %v488
    %v490 = vpop.f32.mrb[0].mxu0
    %491 = vdwg.mxu0
    %v492 = vld [vmem:[%s5] sm:$0xff]
    %v493 = vld [vmem:[%s5 + $0x8] sm:$0xff]
    %v494 = vld [vmem:[%s5 + $0x10] sm:$0xff]
    %v495 = vld [vmem:[%s5 + $0x18] sm:$0xff]
    %496 = vmatprep.subr.mxu0 0.0
    %497 = vmatpush1.msra.mxu0 %v492
    %498 = vmatprep.subr.mxu0 0.0
    %499 = vmatpush1.msra.mxu0 %v493
    %500 = vmatprep.subr.mxu0 0.0
    %501 = vmatpush1.msra.mxu0 %v494
    %502 = vmatprep.subr.mxu0 0.0
    %503 = vmatpush1.msra.mxu0 %v495
    %504 = vmatprep.subr.mxu0 0.0
    %505 = vmatpush1.msra.mxu0 0.0
    %506 = vmatprep.subr.mxu0 0.0
    %507 = vmatpush1.msra.mxu0 0.0
    %508 = vmatprep.subr.mxu0 0.0
    %509 = vmatpush1.msra.mxu0 0.0
    %510 = vmatprep.subr.mxu0 0.0
    %511 = vmatpush1.msra.mxu0 0.0
    %512 = vmatprep.subr.mxu0 0.0
    %513 = vmatpush1.msra.mxu0 0.0
    %514 = vmatprep.subr.mxu0 0.0
    %515 = vmatpush1.msra.mxu0 0.0
    %516 = vmatprep.subr.mxu0 0.0
    %517 = vmatpush1.msra.mxu0 0.0
    %518 = vmatprep.subr.mxu0 0.0
    %519 = vmatpush1.msra.mxu0 0.0
    %520 = vmatprep.subr.mxu0 0.0
    %521 = vmatpush1.msra.mxu0 0.0
    %522 = vmatprep.subr.mxu0 0.0
    %523 = vmatpush1.msra.mxu0 0.0
    %524 = vmatprep.subr.mxu0 0.0
    %525 = vmatpush1.msra.mxu0 0.0
    %526 = vmatprep.subr.mxu0 0.0
    %527 = vmatpush1.msra.mxu0 0.0
    %528 = vmatprep.subr.mxu0 0.0
    %529 = vmatpush1.msra.mxu0 0.0
    %530 = vmatprep.subr.mxu0 0.0
    %531 = vmatpush1.msra.mxu0 0.0
    %532 = vmatprep.subr.mxu0 0.0
    %533 = vmatpush1.msra.mxu0 0.0
    %534 = vmatprep.subr.mxu0 0.0
    %535 = vmatpush1.msra.mxu0 0.0
    %536 = vmatprep.subr.mxu0 0.0
    %537 = vmatpush1.msra.mxu0 0.0
    %538 = vmatprep.subr.mxu0 0.0
    %539 = vmatpush1.msra.mxu0 0.0
    %540 = vmatprep.subr.mxu0 0.0
    %541 = vmatpush1.msra.mxu0 0.0
    %542 = vmatprep.subr.mxu0 0.0
    %543 = vmatpush1.msra.mxu0 0.0
    %544 = vmatprep.subr.mxu0 0.0
    %545 = vmatpush1.msra.mxu0 0.0
    %546 = vmatprep.subr.mxu0 0.0
    %547 = vmatpush1.msra.mxu0 0.0
    %548 = vmatprep.subr.mxu0 0.0
    %549 = vmatpush1.msra.mxu0 0.0
    %550 = vmatprep.subr.mxu0 0.0
    %551 = vmatpush1.msra.mxu0 0.0
    %552 = vmatprep.subr.mxu0 0.0
    %553 = vmatpush1.msra.mxu0 0.0
    %554 = vmatprep.subr.mxu0 0.0
    %555 = vmatpush1.msra.mxu0 0.0
    %556 = vmatprep.subr.mxu0 0.0
    %557 = vmatpush1.msra.mxu0 0.0
    %558 = vmatprep.subr.mxu0 0.0
    %559 = vmatpush1.msra.mxu0 0.0
    %560 = vmatprep.mubr.f32.mxu0 0.0
    %561 = vmatmul.mubr.f32.gmra.mrb[0].mxu0 %v281
    %v562 = vpop.f32.mrb[0].mxu0
    %v563 = vadd.f32 0.0, %v562
    %v564 = vpop.f32.mrb[0].mxu0
    %565 = vdwg.mxu0
    %v566 = vadd.f32 %v489, %v563
    %v567 = vtanh.pop %v566
    %v568 = vxor.u32 %v566, 2147483648
    %v569 = vmul.f32 %v568, 1.442695
    %v570 = vpow.pop %v569
    %v571 = vadd.f32 %v570, 1.0
    %v572 = vrcp.pop %v571
    %v573 = vmul.f32 1.0, %v572
    %v574 = vsel %vm363, %v567, %v573
    %v575 = vmul.f32 %v574, 0.0
    %577 = vrot.lane.b32.xlu0 %v574, 64
    %v578 = vpop.permute.xlu0 %577
    %v580 = vmul.f32 %v574, %v578
    %582 = vrot.lane.b32.xlu0 %v580, 32
    %v583 = vpop.permute.xlu0 %582
    %v585 = vadd.f32 %v575, %v583
    %v586 = vtanh.pop %v585
    %588 = vrot.lane.b32.xlu0 %v586, 64
    %v589 = vpop.permute.xlu0 %588
    %v591 = vmul.f32 %v574, %v589
    %592 = vmatprep.subr.mxu0 0.0
    %593 = vmatpush1.msra.mxu0 %v275
    %594 = vmatprep.subr.mxu0 0.0
    %595 = vmatpush1.msra.mxu0 %v276
    %596 = vmatprep.subr.mxu0 0.0
    %597 = vmatpush1.msra.mxu0 %v277
    %598 = vmatprep.subr.mxu0 0.0
    %599 = vmatpush1.msra.mxu0 %v278
    %600 = vmatprep.subr.mxu0 0.0
    %601 = vmatpush1.msra.mxu0 0.0
    %602 = vmatprep.subr.mxu0 0.0
    %603 = vmatpush1.msra.mxu0 0.0
    %604 = vmatprep.subr.mxu0 0.0
    %605 = vmatpush1.msra.mxu0 0.0
    %606 = vmatprep.subr.mxu0 0.0
    %607 = vmatpush1.msra.mxu0 0.0
    %608 = vmatprep.subr.mxu0 0.0
    %609 = vmatpush1.msra.mxu0 0.0
    %610 = vmatprep.subr.mxu0 0.0
    %611 = vmatpush1.msra.mxu0 0.0
    %612 = vmatprep.subr.mxu0 0.0
    %613 = vmatpush1.msra.mxu0 0.0
    %614 = vmatprep.subr.mxu0 0.0
    %615 = vmatpush1.msra.mxu0 0.0
    %616 = vmatprep.subr.mxu0 0.0
    %617 = vmatpush1.msra.mxu0 0.0
    %618 = vmatprep.subr.mxu0 0.0
    %619 = vmatpush1.msra.mxu0 0.0
    %620 = vmatprep.subr.mxu0 0.0
    %621 = vmatpush1.msra.mxu0 0.0
    %622 = vmatprep.subr.mxu0 0.0
    %623 = vmatpush1.msra.mxu0 0.0
    %624 = vmatprep.subr.mxu0 0.0
    %625 = vmatpush1.msra.mxu0 0.0
    %626 = vmatprep.subr.mxu0 0.0
    %627 = vmatpush1.msra.mxu0 0.0
    %628 = vmatprep.subr.mxu0 0.0
    %629 = vmatpush1.msra.mxu0 0.0
    %630 = vmatprep.subr.mxu0 0.0
    %631 = vmatpush1.msra.mxu0 0.0
    %632 = vmatprep.subr.mxu0 0.0
    %633 = vmatpush1.msra.mxu0 0.0
    %634 = vmatprep.subr.mxu0 0.0
    %635 = vmatpush1.msra.mxu0 0.0
    %636 = vmatprep.subr.mxu0 0.0
    %637 = vmatpush1.msra.mxu0 0.0
    %638 = vmatprep.subr.mxu0 0.0
    %639 = vmatpush1.msra.mxu0 0.0
    %640 = vmatprep.subr.mxu0 0.0
    %641 = vmatpush1.msra.mxu0 0.0
    %642 = vmatprep.subr.mxu0 0.0
    %643 = vmatpush1.msra.mxu0 0.0
    %644 = vmatprep.subr.mxu0 0.0
    %645 = vmatpush1.msra.mxu0 0.0
    %646 = vmatprep.subr.mxu0 0.0
    %647 = vmatpush1.msra.mxu0 0.0
    %648 = vmatprep.subr.mxu0 0.0
    %649 = vmatpush1.msra.mxu0 0.0
    %650 = vmatprep.subr.mxu0 0.0
    %651 = vmatpush1.msra.mxu0 0.0
    %652 = vmatprep.subr.mxu0 0.0
    %653 = vmatpush1.msra.mxu0 0.0
    %654 = vmatprep.subr.mxu0 0.0
    %655 = vmatpush1.msra.mxu0 0.0
    %656 = vmatprep.mubr.f32.mxu0 0.0
    %657 = vmatmul.mubr.f32.gmra.mrb[0].mxu0 %v420
    %v658 = vpop.f32.mrb[0].mxu0
    %v659 = vadd.f32 0.0, %v658
    %v660 = vpop.f32.mrb[0].mxu0
    %661 = vdwg.mxu0
    %v663 = vrot.slane %v659, 7
    %v666 = vadd.f32 %v266, %v663
    %v667 = vadd.f32 %v271, %v659
    %v668 = vtanh.pop %v666
    %v669 = vtanh.pop %v667
    %v670 = vxor.u32 %v666, 2147483648
    %v671 = vxor.u32 %v667, 2147483648
    %v672 = vmul.f32 %v670, 1.442695
    %v673 = vpow.pop %v672
    %v674 = vmul.f32 %v671, 1.442695
    %v675 = vpow.pop %v674
    %v676 = vadd.f32 %v673, 1.0
    %v677 = vadd.f32 %v675, 1.0
    %v678 = vrcp.pop %v676
    %v679 = vmul.f32 1.0, %v678
    %v680 = vrcp.pop %v677
    %v681 = vmul.f32 1.0, %v680
    %v684 = vrot.slane %v668, 1
    %v685 = vsel %vm381, %v669, %v684
    %v689 = vrot.slane %v679, 1
    %v690 = vsel %vm381, %v681, %v689
    %v692 = vsel %vm363, %v685, %v690
    %v693 = vmul.f32 %v692, %v400
    %695 = vrot.lane.b32.xlu0 %v692, 64
    %v696 = vpop.permute.xlu0 %695
    %v698 = vmul.f32 %v692, %v696
    %700 = vrot.lane.b32.xlu0 %v698, 32
    %v701 = vpop.permute.xlu0 %700
    %v703 = vadd.f32 %v693, %v701
    %v704 = vtanh.pop %v703
    %706 = vrot.lane.b32.xlu0 %v704, 64
    %v707 = vpop.permute.xlu0 %706
    %v709 = vmul.f32 %v692, %v707
    %711 = vrot.lane.b32.xlu0 %v709, 32
    %v712 = vpop.permute.xlu0 %711
    %v713 = vsel %vm279, %v712, 0
    %715 = vmatprep.subr.mxu0 0.0
    %716 = vmatpush1.msra.mxu0 %v407
    %717 = vmatprep.subr.mxu0 0.0
    %718 = vmatpush1.msra.mxu0 %v408
    %719 = vmatprep.subr.mxu0 0.0
    %720 = vmatpush1.msra.mxu0 %v409
    %721 = vmatprep.subr.mxu0 0.0
    %722 = vmatpush1.msra.mxu0 %v410
    %723 = vmatprep.subr.mxu0 0.0
    %724 = vmatpush1.msra.mxu0 0.0
    %725 = vmatprep.subr.mxu0 0.0
    %726 = vmatpush1.msra.mxu0 0.0
    %727 = vmatprep.subr.mxu0 0.0
    %728 = vmatpush1.msra.mxu0 0.0
    %729 = vmatprep.subr.mxu0 0.0
    %730 = vmatpush1.msra.mxu0 0.0
    %731 = vmatprep.subr.mxu0 0.0
    %732 = vmatpush1.msra.mxu0 0.0
    %733 = vmatprep.subr.mxu0 0.0
    %734 = vmatpush1.msra.mxu0 0.0
    %735 = vmatprep.subr.mxu0 0.0
    %736 = vmatpush1.msra.mxu0 0.0
    %737 = vmatprep.subr.mxu0 0.0
    %738 = vmatpush1.msra.mxu0 0.0
    %739 = vmatprep.subr.mxu0 0.0
    %740 = vmatpush1.msra.mxu0 0.0
    %741 = vmatprep.subr.mxu0 0.0
    %742 = vmatpush1.msra.mxu0 0.0
    %743 = vmatprep.subr.mxu0 0.0
    %744 = vmatpush1.msra.mxu0 0.0
    %745 = vmatprep.subr.mxu0 0.0
    %746 = vmatpush1.msra.mxu0 0.0
    %747 = vmatprep.subr.mxu0 0.0
    %748 = vmatpush1.msra.mxu0 0.0
    %749 = vmatprep.subr.mxu0 0.0
    %750 = vmatpush1.msra.mxu0 0.0
    %751 = vmatprep.subr.mxu0 0.0
    %752 = vmatpush1.msra.mxu0 0.0
    %753 = vmatprep.subr.mxu0 0.0
    %754 = vmatpush1.msra.mxu0 0.0
    %755 = vmatprep.subr.mxu0 0.0
    %756 = vmatpush1.msra.mxu0 0.0
    %757 = vmatprep.subr.mxu0 0.0
    %758 = vmatpush1.msra.mxu0 0.0
    %759 = vmatprep.subr.mxu0 0.0
    %760 = vmatpush1.msra.mxu0 0.0
    %761 = vmatprep.subr.mxu0 0.0
    %762 = vmatpush1.msra.mxu0 0.0
    %763 = vmatprep.subr.mxu0 0.0
    %764 = vmatpush1.msra.mxu0 0.0
    %765 = vmatprep.subr.mxu0 0.0
    %766 = vmatpush1.msra.mxu0 0.0
    %767 = vmatprep.subr.mxu0 0.0
    %768 = vmatpush1.msra.mxu0 0.0
    %769 = vmatprep.subr.mxu0 0.0
    %770 = vmatpush1.msra.mxu0 0.0
    %771 = vmatprep.subr.mxu0 0.0
    %772 = vmatpush1.msra.mxu0 0.0
    %773 = vmatprep.subr.mxu0 0.0
    %774 = vmatpush1.msra.mxu0 0.0
    %775 = vmatprep.subr.mxu0 0.0
    %776 = vmatpush1.msra.mxu0 0.0
    %777 = vmatprep.subr.mxu0 0.0
    %778 = vmatpush1.msra.mxu0 0.0
    %779 = vmatprep.mubr.f32.mxu0 0.0
    %780 = vmatmul.mubr.f32.gmra.mrb[0].mxu0 %v713
    %v781 = vpop.f32.mrb[0].mxu0
    %v782 = vadd.f32 %v415, %v781
    %v783 = vpop.f32.mrb[0].mxu0
    %784 = vdwg.mxu0
    %786 = vrot.lane.b32.xlu0 %v591, 32
    %v787 = vpop.permute.xlu0 %786
    %v788 = vsel %vm279, %v787, 0
    %790 = vmatprep.subr.mxu0 0.0
    %791 = vmatpush1.msra.mxu0 %v492
    %792 = vmatprep.subr.mxu0 0.0
    %793 = vmatpush1.msra.mxu0 %v493
    %794 = vmatprep.subr.mxu0 0.0
    %795 = vmatpush1.msra.mxu0 %v494
    %796 = vmatprep.subr.mxu0 0.0
    %797 = vmatpush1.msra.mxu0 %v495
    %798 = vmatprep.subr.mxu0 0.0
    %799 = vmatpush1.msra.mxu0 0.0
    %800 = vmatprep.subr.mxu0 0.0
    %801 = vmatpush1.msra.mxu0 0.0
    %802 = vmatprep.subr.mxu0 0.0
    %803 = vmatpush1.msra.mxu0 0.0
    %804 = vmatprep.subr.mxu0 0.0
    %805 = vmatpush1.msra.mxu0 0.0
    %806 = vmatprep.subr.mxu0 0.0
    %807 = vmatpush1.msra.mxu0 0.0
    %808 = vmatprep.subr.mxu0 0.0
    %809 = vmatpush1.msra.mxu0 0.0
    %810 = vmatprep.subr.mxu0 0.0
    %811 = vmatpush1.msra.mxu0 0.0
    %812 = vmatprep.subr.mxu0 0.0
    %813 = vmatpush1.msra.mxu0 0.0
    %814 = vmatprep.subr.mxu0 0.0
    %815 = vmatpush1.msra.mxu0 0.0
    %816 = vmatprep.subr.mxu0 0.0
    %817 = vmatpush1.msra.mxu0 0.0
    %818 = vmatprep.subr.mxu0 0.0
    %819 = vmatpush1.msra.mxu0 0.0
    %820 = vmatprep.subr.mxu0 0.0
    %821 = vmatpush1.msra.mxu0 0.0
    %822 = vmatprep.subr.mxu0 0.0
    %823 = vmatpush1.msra.mxu0 0.0
    %824 = vmatprep.subr.mxu0 0.0
    %825 = vmatpush1.msra.mxu0 0.0
    %826 = vmatprep.subr.mxu0 0.0
    %827 = vmatpush1.msra.mxu0 0.0
    %828 = vmatprep.subr.mxu0 0.0
    %829 = vmatpush1.msra.mxu0 0.0
    %830 = vmatprep.subr.mxu0 0.0
    %831 = vmatpush1.msra.mxu0 0.0
    %832 = vmatprep.subr.mxu0 0.0
    %833 = vmatpush1.msra.mxu0 0.0
    %834 = vmatprep.subr.mxu0 0.0
    %835 = vmatpush1.msra.mxu0 0.0
    %836 = vmatprep.subr.mxu0 0.0
    %837 = vmatpush1.msra.mxu0 0.0
    %838 = vmatprep.subr.mxu0 0.0
    %839 = vmatpush1.msra.mxu0 0.0
    %840 = vmatprep.subr.mxu0 0.0
    %841 = vmatpush1.msra.mxu0 0.0
    %842 = vmatprep.subr.mxu0 0.0
    %843 = vmatpush1.msra.mxu0 0.0
    %844 = vmatprep.subr.mxu0 0.0
    %845 = vmatpush1.msra.mxu0 0.0
    %846 = vmatprep.subr.mxu0 0.0
    %847 = vmatpush1.msra.mxu0 0.0
    %848 = vmatprep.subr.mxu0 0.0
    %849 = vmatpush1.msra.mxu0 0.0
    %850 = vmatprep.subr.mxu0 0.0
    %851 = vmatpush1.msra.mxu0 0.0
    %852 = vmatprep.subr.mxu0 0.0
    %853 = vmatpush1.msra.mxu0 0.0
    %854 = vmatprep.mubr.f32.mxu0 0.0
    %855 = vmatmul.mubr.f32.gmra.mrb[0].mxu0 %v788
    %v856 = vpop.f32.mrb[0].mxu0
    %v857 = vadd.f32 0.0, %v856
    %v858 = vpop.f32.mrb[0].mxu0
    %859 = vdwg.mxu0
    %v860 = vadd.f32 %v782, %v857
    %v861 = vtanh.pop %v860
    %v862 = vxor.u32 %v860, 2147483648
    %v863 = vmul.f32 %v862, 1.442695
    %v864 = vpow.pop %v863
    %v865 = vadd.f32 %v864, 1.0
    %v866 = vrcp.pop %v865
    %v867 = vmul.f32 1.0, %v866
    %v868 = vsel %vm363, %v861, %v867
    %v869 = vmul.f32 %v868, %v585
    %871 = vrot.lane.b32.xlu0 %v868, 64
    %v872 = vpop.permute.xlu0 %871
    %v874 = vmul.f32 %v868, %v872
    %876 = vrot.lane.b32.xlu0 %v874, 32
    %v877 = vpop.permute.xlu0 %876
    %v879 = vadd.f32 %v869, %v877
    %v880 = vtanh.pop %v879
    %882 = vrot.lane.b32.xlu0 %v880, 64
    %v883 = vpop.permute.xlu0 %882
    %v885 = vmul.f32 %v868, %v883
    %886 = vmatprep.subr.mxu0 0.0
    %887 = vmatpush1.msra.mxu0 %v275
    %888 = vmatprep.subr.mxu0 0.0
    %889 = vmatpush1.msra.mxu0 %v276
    %890 = vmatprep.subr.mxu0 0.0
    %891 = vmatpush1.msra.mxu0 %v277
    %892 = vmatprep.subr.mxu0 0.0
    %893 = vmatpush1.msra.mxu0 %v278
    %894 = vmatprep.subr.mxu0 0.0
    %895 = vmatpush1.msra.mxu0 0.0
    %896 = vmatprep.subr.mxu0 0.0
    %897 = vmatpush1.msra.mxu0 0.0
    %898 = vmatprep.subr.mxu0 0.0
    %899 = vmatpush1.msra.mxu0 0.0
    %900 = vmatprep.subr.mxu0 0.0
    %901 = vmatpush1.msra.mxu0 0.0
    %902 = vmatprep.subr.mxu0 0.0
    %903 = vmatpush1.msra.mxu0 0.0
    %904 = vmatprep.subr.mxu0 0.0
    %905 = vmatpush1.msra.mxu0 0.0
    %906 = vmatprep.subr.mxu0 0.0
    %907 = vmatpush1.msra.mxu0 0.0
    %908 = vmatprep.subr.mxu0 0.0
    %909 = vmatpush1.msra.mxu0 0.0
    %910 = vmatprep.subr.mxu0 0.0
    %911 = vmatpush1.msra.mxu0 0.0
    %912 = vmatprep.subr.mxu0 0.0
    %913 = vmatpush1.msra.mxu0 0.0
    %914 = vmatprep.subr.mxu0 0.0
    %915 = vmatpush1.msra.mxu0 0.0
    %916 = vmatprep.subr.mxu0 0.0
    %917 = vmatpush1.msra.mxu0 0.0
    %918 = vmatprep.subr.mxu0 0.0
    %919 = vmatpush1.msra.mxu0 0.0
    %920 = vmatprep.subr.mxu0 0.0
    %921 = vmatpush1.msra.mxu0 0.0
    %922 = vmatprep.subr.mxu0 0.0
    %923 = vmatpush1.msra.mxu0 0.0
    %924 = vmatprep.subr.mxu0 0.0
    %925 = vmatpush1.msra.mxu0 0.0
    %926 = vmatprep.subr.mxu0 0.0
    %927 = vmatpush1.msra.mxu0 0.0
    %928 = vmatprep.subr.mxu0 0.0
    %929 = vmatpush1.msra.mxu0 0.0
    %930 = vmatprep.subr.mxu0 0.0
    %931 = vmatpush1.msra.mxu0 0.0
    %932 = vmatprep.subr.mxu0 0.0
    %933 = vmatpush1.msra.mxu0 0.0
    %934 = vmatprep.subr.mxu0 0.0
    %935 = vmatpush1.msra.mxu0 0.0
    %936 = vmatprep.subr.mxu0 0.0
    %937 = vmatpush1.msra.mxu0 0.0
    %938 = vmatprep.subr.mxu0 0.0
    %939 = vmatpush1.msra.mxu0 0.0
    %940 = vmatprep.subr.mxu0 0.0
    %941 = vmatpush1.msra.mxu0 0.0
    %942 = vmatprep.subr.mxu0 0.0
    %943 = vmatpush1.msra.mxu0 0.0
    %944 = vmatprep.subr.mxu0 0.0
    %945 = vmatpush1.msra.mxu0 0.0
    %946 = vmatprep.subr.mxu0 0.0
    %947 = vmatpush1.msra.mxu0 0.0
    %948 = vmatprep.subr.mxu0 0.0
    %949 = vmatpush1.msra.mxu0 0.0
    %950 = vmatprep.mubr.f32.mxu0 0.0
    %951 = vmatmul.mubr.f32.gmra.mrb[0].mxu0 %v713
    %v952 = vpop.f32.mrb[0].mxu0
    %v953 = vadd.f32 0.0, %v952
    %v954 = vpop.f32.mrb[0].mxu0
    %955 = vdwg.mxu0
    %v957 = vrot.slane %v953, 6
    %v958 = vrot.slane %v953, 7
    %v961 = vadd.f32 %v266, %v957
    %v962 = vadd.f32 %v271, %v958
    %v963 = vtanh.pop %v961
    %v964 = vtanh.pop %v962
    %v965 = vxor.u32 %v961, 2147483648
    %v966 = vxor.u32 %v962, 2147483648
    %v967 = vmul.f32 %v965, 1.442695
    %v968 = vpow.pop %v967
    %v969 = vmul.f32 %v966, 1.442695
    %v970 = vpow.pop %v969
    %v971 = vadd.f32 %v968, 1.0
    %v972 = vadd.f32 %v970, 1.0
    %v973 = vrcp.pop %v971
    %v974 = vmul.f32 1.0, %v973
    %v975 = vrcp.pop %v972
    %v976 = vmul.f32 1.0, %v975
    %v979 = vrot.slane %v963, 2
    %v980 = vrot.slane %v964, 1
    %v981 = vsel %vm381, %v980, %v979
    %v985 = vrot.slane %v974, 2
    %v986 = vrot.slane %v976, 1
    %v987 = vsel %vm381, %v986, %v985
    %v989 = vsel %vm363, %v981, %v987
    %v990 = vmul.f32 %v989, %v703
    %992 = vrot.lane.b32.xlu0 %v989, 64
    %v993 = vpop.permute.xlu0 %992
    %v995 = vmul.f32 %v989, %v993
    %997 = vrot.lane.b32.xlu0 %v995, 32
    %v998 = vpop.permute.xlu0 %997
    %v1000 = vadd.f32 %v990, %v998
    %v1001 = vtanh.pop %v1000
    %1003 = vrot.lane.b32.xlu0 %v1001, 64
    %v1004 = vpop.permute.xlu0 %1003
    %v1006 = vmul.f32 %v989, %v1004
    %1008 = vrot.lane.b32.xlu0 %v1006, 32
    %v1009 = vpop.permute.xlu0 %1008
    %v1010 = vsel %vm279, %v1009, 0
    %1012 = vmatprep.subr.mxu0 0.0
    %1013 = vmatpush1.msra.mxu0 %v407
    %1014 = vmatprep.subr.mxu0 0.0
    %1015 = vmatpush1.msra.mxu0 %v408
    %1016 = vmatprep.subr.mxu0 0.0
    %1017 = vmatpush1.msra.mxu0 %v409
    %1018 = vmatprep.subr.mxu0 0.0
    %1019 = vmatpush1.msra.mxu0 %v410
    %1020 = vmatprep.subr.mxu0 0.0
    %1021 = vmatpush1.msra.mxu0 0.0
    %1022 = vmatprep.subr.mxu0 0.0
    %1023 = vmatpush1.msra.mxu0 0.0
    %1024 = vmatprep.subr.mxu0 0.0
    %1025 = vmatpush1.msra.mxu0 0.0
    %1026 = vmatprep.subr.mxu0 0.0
    %1027 = vmatpush1.msra.mxu0 0.0
    %1028 = vmatprep.subr.mxu0 0.0
    %1029 = vmatpush1.msra.mxu0 0.0
    %1030 = vmatprep.subr.mxu0 0.0
    %1031 = vmatpush1.msra.mxu0 0.0
    %1032 = vmatprep.subr.mxu0 0.0
    %1033 = vmatpush1.msra.mxu0 0.0
    %1034 = vmatprep.subr.mxu0 0.0
    %1035 = vmatpush1.msra.mxu0 0.0
    %1036 = vmatprep.subr.mxu0 0.0
    %1037 = vmatpush1.msra.mxu0 0.0
    %1038 = vmatprep.subr.mxu0 0.0
    %1039 = vmatpush1.msra.mxu0 0.0
    %1040 = vmatprep.subr.mxu0 0.0
    %1041 = vmatpush1.msra.mxu0 0.0
    %1042 = vmatprep.subr.mxu0 0.0
    %1043 = vmatpush1.msra.mxu0 0.0
    %1044 = vmatprep.subr.mxu0 0.0
    %1045 = vmatpush1.msra.mxu0 0.0
    %1046 = vmatprep.subr.mxu0 0.0
    %1047 = vmatpush1.msra.mxu0 0.0
    %1048 = vmatprep.subr.mxu0 0.0
    %1049 = vmatpush1.msra.mxu0 0.0
    %1050 = vmatprep.subr.mxu0 0.0
    %1051 = vmatpush1.msra.mxu0 0.0
    %1052 = vmatprep.subr.mxu0 0.0
    %1053 = vmatpush1.msra.mxu0 0.0
    %1054 = vmatprep.subr.mxu0 0.0
    %1055 = vmatpush1.msra.mxu0 0.0
    %1056 = vmatprep.subr.mxu0 0.0
    %1057 = vmatpush1.msra.mxu0 0.0
    %1058 = vmatprep.subr.mxu0 0.0
    %1059 = vmatpush1.msra.mxu0 0.0
    %1060 = vmatprep.subr.mxu0 0.0
    %1061 = vmatpush1.msra.mxu0 0.0
    %1062 = vmatprep.subr.mxu0 0.0
    %1063 = vmatpush1.msra.mxu0 0.0
    %1064 = vmatprep.subr.mxu0 0.0
    %1065 = vmatpush1.msra.mxu0 0.0
    %1066 = vmatprep.subr.mxu0 0.0
    %1067 = vmatpush1.msra.mxu0 0.0
    %1068 = vmatprep.subr.mxu0 0.0
    %1069 = vmatpush1.msra.mxu0 0.0
    %1070 = vmatprep.subr.mxu0 0.0
    %1071 = vmatpush1.msra.mxu0 0.0
    %1072 = vmatprep.subr.mxu0 0.0
    %1073 = vmatpush1.msra.mxu0 0.0
    %1074 = vmatprep.subr.mxu0 0.0
    %1075 = vmatpush1.msra.mxu0 0.0
    %1076 = vmatprep.mubr.f32.mxu0 0.0
    %1077 = vmatmul.mubr.f32.gmra.mrb[0].mxu0 %v1010
    %v1078 = vpop.f32.mrb[0].mxu0
    %v1079 = vadd.f32 %v415, %v1078
    %v1080 = vpop.f32.mrb[0].mxu0
    %1081 = vdwg.mxu0
    %1083 = vrot.lane.b32.xlu0 %v885, 32
    %v1084 = vpop.permute.xlu0 %1083
    %v1085 = vsel %vm279, %v1084, 0
    %1087 = vmatprep.subr.mxu0 0.0
    %1088 = vmatpush1.msra.mxu0 %v492
    %1089 = vmatprep.subr.mxu0 0.0
    %1090 = vmatpush1.msra.mxu0 %v493
    %1091 = vmatprep.subr.mxu0 0.0
    %1092 = vmatpush1.msra.mxu0 %v494
    %1093 = vmatprep.subr.mxu0 0.0
    %1094 = vmatpush1.msra.mxu0 %v495
    %1095 = vmatprep.subr.mxu0 0.0
    %1096 = vmatpush1.msra.mxu0 0.0
    %1097 = vmatprep.subr.mxu0 0.0
    %1098 = vmatpush1.msra.mxu0 0.0
    %1099 = vmatprep.subr.mxu0 0.0
    %1100 = vmatpush1.msra.mxu0 0.0
    %1101 = vmatprep.subr.mxu0 0.0
    %1102 = vmatpush1.msra.mxu0 0.0
    %1103 = vmatprep.subr.mxu0 0.0
    %1104 = vmatpush1.msra.mxu0 0.0
    %1105 = vmatprep.subr.mxu0 0.0
    %1106 = vmatpush1.msra.mxu0 0.0
    %1107 = vmatprep.subr.mxu0 0.0
    %1108 = vmatpush1.msra.mxu0 0.0
    %1109 = vmatprep.subr.mxu0 0.0
    %1110 = vmatpush1.msra.mxu0 0.0
    %1111 = vmatprep.subr.mxu0 0.0
    %1112 = vmatpush1.msra.mxu0 0.0
    %1113 = vmatprep.subr.mxu0 0.0
    %1114 = vmatpush1.msra.mxu0 0.0
    %1115 = vmatprep.subr.mxu0 0.0
    %1116 = vmatpush1.msra.mxu0 0.0
    %1117 = vmatprep.subr.mxu0 0.0
    %1118 = vmatpush1.msra.mxu0 0.0
    %1119 = vmatprep.subr.mxu0 0.0
    %1120 = vmatpush1.msra.mxu0 0.0
    %1121 = vmatprep.subr.mxu0 0.0
    %1122 = vmatpush1.msra.mxu0 0.0
    %1123 = vmatprep.subr.mxu0 0.0
    %1124 = vmatpush1.msra.mxu0 0.0
    %1125 = vmatprep.subr.mxu0 0.0
    %1126 = vmatpush1.msra.mxu0 0.0
    %1127 = vmatprep.subr.mxu0 0.0
    %1128 = vmatpush1.msra.mxu0 0.0
    %1129 = vmatprep.subr.mxu0 0.0
    %1130 = vmatpush1.msra.mxu0 0.0
    %1131 = vmatprep.subr.mxu0 0.0
    %1132 = vmatpush1.msra.mxu0 0.0
    %1133 = vmatprep.subr.mxu0 0.0
    %1134 = vmatpush1.msra.mxu0 0.0
    %1135 = vmatprep.subr.mxu0 0.0
    %1136 = vmatpush1.msra.mxu0 0.0
    %1137 = vmatprep.subr.mxu0 0.0
    %1138 = vmatpush1.msra.mxu0 0.0
    %1139 = vmatprep.subr.mxu0 0.0
    %1140 = vmatpush1.msra.mxu0 0.0
    %1141 = vmatprep.subr.mxu0 0.0
    %1142 = vmatpush1.msra.mxu0 0.0
    %1143 = vmatprep.subr.mxu0 0.0
    %1144 = vmatpush1.msra.mxu0 0.0
    %1145 = vmatprep.subr.mxu0 0.0
    %1146 = vmatpush1.msra.mxu0 0.0
    %1147 = vmatprep.subr.mxu0 0.0
    %1148 = vmatpush1.msra.mxu0 0.0
    %1149 = vmatprep.subr.mxu0 0.0
    %1150 = vmatpush1.msra.mxu0 0.0
    %1151 = vmatprep.mubr.f32.mxu0 0.0
    %1152 = vmatmul.mubr.f32.gmra.mrb[0].mxu0 %v1085
    %v1153 = vpop.f32.mrb[0].mxu0
    %v1154 = vadd.f32 0.0, %v1153
    %v1155 = vpop.f32.mrb[0].mxu0
    %1156 = vdwg.mxu0
    %v1157 = vadd.f32 %v1079, %v1154
    %v1158 = vtanh.pop %v1157
    %v1159 = vxor.u32 %v1157, 2147483648
    %v1160 = vmul.f32 %v1159, 1.442695
    %v1161 = vpow.pop %v1160
    %v1162 = vadd.f32 %v1161, 1.0
    %v1163 = vrcp.pop %v1162
    %v1164 = vmul.f32 1.0, %v1163
    %v1165 = vsel %vm363, %v1158, %v1164
    %v1166 = vmul.f32 %v1165, %v879
    %1168 = vrot.lane.b32.xlu0 %v1165, 64
    %v1169 = vpop.permute.xlu0 %1168
    %v1171 = vmul.f32 %v1165, %v1169
    %1173 = vrot.lane.b32.xlu0 %v1171, 32
    %v1174 = vpop.permute.xlu0 %1173
    %v1176 = vadd.f32 %v1166, %v1174
    %v1177 = vtanh.pop %v1176
    %1179 = vrot.lane.b32.xlu0 %v1177, 64
    %v1180 = vpop.permute.xlu0 %1179
    %v1182 = vmul.f32 %v1165, %v1180
    %1183 = vmatprep.subr.mxu0 0.0
    %1184 = vmatpush1.msra.mxu0 %v275
    %1185 = vmatprep.subr.mxu0 0.0
    %1186 = vmatpush1.msra.mxu0 %v276
    %1187 = vmatprep.subr.mxu0 0.0
    %1188 = vmatpush1.msra.mxu0 %v277
    %1189 = vmatprep.subr.mxu0 0.0
    %1190 = vmatpush1.msra.mxu0 %v278
    %1191 = vmatprep.subr.mxu0 0.0
    %1192 = vmatpush1.msra.mxu0 0.0
    %1193 = vmatprep.subr.mxu0 0.0
    %1194 = vmatpush1.msra.mxu0 0.0
    %1195 = vmatprep.subr.mxu0 0.0
    %1196 = vmatpush1.msra.mxu0 0.0
    %1197 = vmatprep.subr.mxu0 0.0
    %1198 = vmatpush1.msra.mxu0 0.0
    %1199 = vmatprep.subr.mxu0 0.0
    %1200 = vmatpush1.msra.mxu0 0.0
    %1201 = vmatprep.subr.mxu0 0.0
    %1202 = vmatpush1.msra.mxu0 0.0
    %1203 = vmatprep.subr.mxu0 0.0
    %1204 = vmatpush1.msra.mxu0 0.0
    %1205 = vmatprep.subr.mxu0 0.0
    %1206 = vmatpush1.msra.mxu0 0.0
    %1207 = vmatprep.subr.mxu0 0.0
    %1208 = vmatpush1.msra.mxu0 0.0
    %1209 = vmatprep.subr.mxu0 0.0
    %1210 = vmatpush1.msra.mxu0 0.0
    %1211 = vmatprep.subr.mxu0 0.0
    %1212 = vmatpush1.msra.mxu0 0.0
    %1213 = vmatprep.subr.mxu0 0.0
    %1214 = vmatpush1.msra.mxu0 0.0
    %1215 = vmatprep.subr.mxu0 0.0
    %1216 = vmatpush1.msra.mxu0 0.0
    %1217 = vmatprep.subr.mxu0 0.0
    %1218 = vmatpush1.msra.mxu0 0.0
    %1219 = vmatprep.subr.mxu0 0.0
    %1220 = vmatpush1.msra.mxu0 0.0
    %1221 = vmatprep.subr.mxu0 0.0
    %1222 = vmatpush1.msra.mxu0 0.0
    %1223 = vmatprep.subr.mxu0 0.0
    %1224 = vmatpush1.msra.mxu0 0.0
    %1225 = vmatprep.subr.mxu0 0.0
    %1226 = vmatpush1.msra.mxu0 0.0
    %1227 = vmatprep.subr.mxu0 0.0
    %1228 = vmatpush1.msra.mxu0 0.0
    %1229 = vmatprep.subr.mxu0 0.0
    %1230 = vmatpush1.msra.mxu0 0.0
    %1231 = vmatprep.subr.mxu0 0.0
    %1232 = vmatpush1.msra.mxu0 0.0
    %1233 = vmatprep.subr.mxu0 0.0
    %1234 = vmatpush1.msra.mxu0 0.0
    %1235 = vmatprep.subr.mxu0 0.0
    %1236 = vmatpush1.msra.mxu0 0.0
    %1237 = vmatprep.subr.mxu0 0.0
    %1238 = vmatpush1.msra.mxu0 0.0
    %1239 = vmatprep.subr.mxu0 0.0
    %1240 = vmatpush1.msra.mxu0 0.0
    %1241 = vmatprep.subr.mxu0 0.0
    %1242 = vmatpush1.msra.mxu0 0.0
    %1243 = vmatprep.subr.mxu0 0.0
    %1244 = vmatpush1.msra.mxu0 0.0
    %1245 = vmatprep.subr.mxu0 0.0
    %1246 = vmatpush1.msra.mxu0 0.0
    %1247 = vmatprep.mubr.f32.mxu0 0.0
    %1248 = vmatmul.mubr.f32.gmra.mrb[0].mxu0 %v1010
    %v1249 = vpop.f32.mrb[0].mxu0
    %v1250 = vadd.f32 0.0, %v1249
    %v1251 = vpop.f32.mrb[0].mxu0
    %1252 = vdwg.mxu0
    %v1254 = vrot.slane %v1250, 5
    %v1255 = vrot.slane %v1250, 6
    %v1258 = vadd.f32 %v266, %v1254
    %v1259 = vadd.f32 %v271, %v1255
    %v1260 = vtanh.pop %v1258
    %v1261 = vtanh.pop %v1259
    %v1262 = vxor.u32 %v1258, 2147483648
    %v1263 = vxor.u32 %v1259, 2147483648
    %v1264 = vmul.f32 %v1262, 1.442695
    %v1265 = vpow.pop %v1264
    %v1266 = vmul.f32 %v1263, 1.442695
    %v1267 = vpow.pop %v1266
    %v1268 = vadd.f32 %v1265, 1.0
    %v1269 = vadd.f32 %v1267, 1.0
    %v1270 = vrcp.pop %v1268
    %v1271 = vmul.f32 1.0, %v1270
    %v1272 = vrcp.pop %v1269
    %v1273 = vmul.f32 1.0, %v1272
    %v1276 = vrot.slane %v1260, 3
    %v1277 = vrot.slane %v1261, 2
    %v1278 = vsel %vm381, %v1277, %v1276
    %v1282 = vrot.slane %v1271, 3
    %v1283 = vrot.slane %v1273, 2
    %v1284 = vsel %vm381, %v1283, %v1282
    %v1286 = vsel %vm363, %v1278, %v1284
    %v1287 = vmul.f32 %v1286, %v1000
    %1289 = vrot.lane.b32.xlu0 %v1286, 64
    %v1290 = vpop.permute.xlu0 %1289
    %v1292 = vmul.f32 %v1286, %v1290
    %1294 = vrot.lane.b32.xlu0 %v1292, 32
    %v1295 = vpop.permute.xlu0 %1294
    %v1297 = vadd.f32 %v1287, %v1295
    %v1298 = vtanh.pop %v1297
    %1300 = vrot.lane.b32.xlu0 %v1298, 64
    %v1301 = vpop.permute.xlu0 %1300
    %v1303 = vmul.f32 %v1286, %v1301
    %1305 = vrot.lane.b32.xlu0 %v1303, 32
    %v1306 = vpop.permute.xlu0 %1305
    %v1307 = vsel %vm279, %v1306, 0
    %1309 = vmatprep.subr.mxu0 0.0
    %1310 = vmatpush1.msra.mxu0 %v407
    %1311 = vmatprep.subr.mxu0 0.0
    %1312 = vmatpush1.msra.mxu0 %v408
    %1313 = vmatprep.subr.mxu0 0.0
    %1314 = vmatpush1.msra.mxu0 %v409
    %1315 = vmatprep.subr.mxu0 0.0
    %1316 = vmatpush1.msra.mxu0 %v410
    %1317 = vmatprep.subr.mxu0 0.0
    %1318 = vmatpush1.msra.mxu0 0.0
    %1319 = vmatprep.subr.mxu0 0.0
    %1320 = vmatpush1.msra.mxu0 0.0
    %1321 = vmatprep.subr.mxu0 0.0
    %1322 = vmatpush1.msra.mxu0 0.0
    %1323 = vmatprep.subr.mxu0 0.0
    %1324 = vmatpush1.msra.mxu0 0.0
    %1325 = vmatprep.subr.mxu0 0.0
    %1326 = vmatpush1.msra.mxu0 0.0
    %1327 = vmatprep.subr.mxu0 0.0
    %1328 = vmatpush1.msra.mxu0 0.0
    %1329 = vmatprep.subr.mxu0 0.0
    %1330 = vmatpush1.msra.mxu0 0.0
    %1331 = vmatprep.subr.mxu0 0.0
    %1332 = vmatpush1.msra.mxu0 0.0
    %1333 = vmatprep.subr.mxu0 0.0
    %1334 = vmatpush1.msra.mxu0 0.0
    %1335 = vmatprep.subr.mxu0 0.0
    %1336 = vmatpush1.msra.mxu0 0.0
    %1337 = vmatprep.subr.mxu0 0.0
    %1338 = vmatpush1.msra.mxu0 0.0
    %1339 = vmatprep.subr.mxu0 0.0
    %1340 = vmatpush1.msra.mxu0 0.0
    %1341 = vmatprep.subr.mxu0 0.0
    %1342 = vmatpush1.msra.mxu0 0.0
    %1343 = vmatprep.subr.mxu0 0.0
    %1344 = vmatpush1.msra.mxu0 0.0
    %1345 = vmatprep.subr.mxu0 0.0
    %1346 = vmatpush1.msra.mxu0 0.0
    %1347 = vmatprep.subr.mxu0 0.0
    %1348 = vmatpush1.msra.mxu0 0.0
    %1349 = vmatprep.subr.mxu0 0.0
    %1350 = vmatpush1.msra.mxu0 0.0
    %1351 = vmatprep.subr.mxu0 0.0
    %1352 = vmatpush1.msra.mxu0 0.0
    %1353 = vmatprep.subr.mxu0 0.0
    %1354 = vmatpush1.msra.mxu0 0.0
    %1355 = vmatprep.subr.mxu0 0.0
    %1356 = vmatpush1.msra.mxu0 0.0
    %1357 = vmatprep.subr.mxu0 0.0
    %1358 = vmatpush1.msra.mxu0 0.0
    %1359 = vmatprep.subr.mxu0 0.0
    %1360 = vmatpush1.msra.mxu0 0.0
    %1361 = vmatprep.subr.mxu0 0.0
    %1362 = vmatpush1.msra.mxu0 0.0
    %1363 = vmatprep.subr.mxu0 0.0
    %1364 = vmatpush1.msra.mxu0 0.0
    %1365 = vmatprep.subr.mxu0 0.0
    %1366 = vmatpush1.msra.mxu0 0.0
    %1367 = vmatprep.subr.mxu0 0.0
    %1368 = vmatpush1.msra.mxu0 0.0
    %1369 = vmatprep.subr.mxu0 0.0
    %1370 = vmatpush1.msra.mxu0 0.0
    %1371 = vmatprep.subr.mxu0 0.0
    %1372 = vmatpush1.msra.mxu0 0.0
    %1373 = vmatprep.mubr.f32.mxu0 0.0
    %1374 = vmatmul.mubr.f32.gmra.mrb[0].mxu0 %v1307
    %v1375 = vpop.f32.mrb[0].mxu0
    %v1376 = vadd.f32 %v415, %v1375
    %v1377 = vpop.f32.mrb[0].mxu0
    %1378 = vdwg.mxu0
    %1380 = vrot.lane.b32.xlu0 %v1182, 32
    %v1381 = vpop.permute.xlu0 %1380
    %v1382 = vsel %vm279, %v1381, 0
    %1384 = vmatprep.subr.mxu0 0.0
    %1385 = vmatpush1.msra.mxu0 %v492
    %1386 = vmatprep.subr.mxu0 0.0
    %1387 = vmatpush1.msra.mxu0 %v493
    %1388 = vmatprep.subr.mxu0 0.0
    %1389 = vmatpush1.msra.mxu0 %v494
    %1390 = vmatprep.subr.mxu0 0.0
    %1391 = vmatpush1.msra.mxu0 %v495
    %1392 = vmatprep.subr.mxu0 0.0
    %1393 = vmatpush1.msra.mxu0 0.0
    %1394 = vmatprep.subr.mxu0 0.0
    %1395 = vmatpush1.msra.mxu0 0.0
    %1396 = vmatprep.subr.mxu0 0.0
    %1397 = vmatpush1.msra.mxu0 0.0
    %1398 = vmatprep.subr.mxu0 0.0
    %1399 = vmatpush1.msra.mxu0 0.0
    %1400 = vmatprep.subr.mxu0 0.0
    %1401 = vmatpush1.msra.mxu0 0.0
    %1402 = vmatprep.subr.mxu0 0.0
    %1403 = vmatpush1.msra.mxu0 0.0
    %1404 = vmatprep.subr.mxu0 0.0
    %1405 = vmatpush1.msra.mxu0 0.0
    %1406 = vmatprep.subr.mxu0 0.0
    %1407 = vmatpush1.msra.mxu0 0.0
    %1408 = vmatprep.subr.mxu0 0.0
    %1409 = vmatpush1.msra.mxu0 0.0
    %1410 = vmatprep.subr.mxu0 0.0
    %1411 = vmatpush1.msra.mxu0 0.0
    %1412 = vmatprep.subr.mxu0 0.0
    %1413 = vmatpush1.msra.mxu0 0.0
    %1414 = vmatprep.subr.mxu0 0.0
    %1415 = vmatpush1.msra.mxu0 0.0
    %1416 = vmatprep.subr.mxu0 0.0
    %1417 = vmatpush1.msra.mxu0 0.0
    %1418 = vmatprep.subr.mxu0 0.0
    %1419 = vmatpush1.msra.mxu0 0.0
    %1420 = vmatprep.subr.mxu0 0.0
    %1421 = vmatpush1.msra.mxu0 0.0
    %1422 = vmatprep.subr.mxu0 0.0
    %1423 = vmatpush1.msra.mxu0 0.0
    %1424 = vmatprep.subr.mxu0 0.0
    %1425 = vmatpush1.msra.mxu0 0.0
    %1426 = vmatprep.subr.mxu0 0.0
    %1427 = vmatpush1.msra.mxu0 0.0
    %1428 = vmatprep.subr.mxu0 0.0
    %1429 = vmatpush1.msra.mxu0 0.0
    %1430 = vmatprep.subr.mxu0 0.0
    %1431 = vmatpush1.msra.mxu0 0.0
    %1432 = vmatprep.subr.mxu0 0.0
    %1433 = vmatpush1.msra.mxu0 0.0
    %1434 = vmatprep.subr.mxu0 0.0
    %1435 = vmatpush1.msra.mxu0 0.0
    %1436 = vmatprep.subr.mxu0 0.0
    %1437 = vmatpush1.msra.mxu0 0.0
    %1438 = vmatprep.subr.mxu0 0.0
    %1439 = vmatpush1.msra.mxu0 0.0
    %1440 = vmatprep.subr.mxu0 0.0
    %1441 = vmatpush1.msra.mxu0 0.0
    %1442 = vmatprep.subr.mxu0 0.0
    %1443 = vmatpush1.msra.mxu0 0.0
    %1444 = vmatprep.subr.mxu0 0.0
    %1445 = vmatpush1.msra.mxu0 0.0
    %1446 = vmatprep.subr.mxu0 0.0
    %1447 = vmatpush1.msra.mxu0 0.0
    %1448 = vmatprep.mubr.f32.mxu0 0.0
    %1449 = vmatmul.mubr.f32.gmra.mrb[0].mxu0 %v1382
    %v1450 = vpop.f32.mrb[0].mxu0
    %v1451 = vadd.f32 0.0, %v1450
    %v1452 = vpop.f32.mrb[0].mxu0
    %1453 = vdwg.mxu0
    %v1454 = vadd.f32 %v1376, %v1451
    %v1455 = vtanh.pop %v1454
    %v1456 = vxor.u32 %v1454, 2147483648
    %v1457 = vmul.f32 %v1456, 1.442695
    %v1458 = vpow.pop %v1457
    %v1459 = vadd.f32 %v1458, 1.0
    %v1460 = vrcp.pop %v1459
    %v1461 = vmul.f32 1.0, %v1460
    %v1462 = vsel %vm363, %v1455, %v1461
    %v1463 = vmul.f32 %v1462, %v1176
    %1465 = vrot.lane.b32.xlu0 %v1462, 64
    %v1466 = vpop.permute.xlu0 %1465
    %v1468 = vmul.f32 %v1462, %v1466
    %1470 = vrot.lane.b32.xlu0 %v1468, 32
    %v1471 = vpop.permute.xlu0 %1470
    %v1473 = vadd.f32 %v1463, %v1471
    %v1474 = vtanh.pop %v1473
    %1476 = vrot.lane.b32.xlu0 %v1474, 64
    %v1477 = vpop.permute.xlu0 %1476
    %v1479 = vmul.f32 %v1462, %v1477
    %1480 = vmatprep.subr.mxu0 0.0
    %1481 = vmatpush1.msra.mxu0 %v275
    %1482 = vmatprep.subr.mxu0 0.0
    %1483 = vmatpush1.msra.mxu0 %v276
    %1484 = vmatprep.subr.mxu0 0.0
    %1485 = vmatpush1.msra.mxu0 %v277
    %1486 = vmatprep.subr.mxu0 0.0
    %1487 = vmatpush1.msra.mxu0 %v278
    %1488 = vmatprep.subr.mxu0 0.0
    %1489 = vmatpush1.msra.mxu0 0.0
    %1490 = vmatprep.subr.mxu0 0.0
    %1491 = vmatpush1.msra.mxu0 0.0
    %1492 = vmatprep.subr.mxu0 0.0
    %1493 = vmatpush1.msra.mxu0 0.0
    %1494 = vmatprep.subr.mxu0 0.0
    %1495 = vmatpush1.msra.mxu0 0.0
    %1496 = vmatprep.subr.mxu0 0.0
    %1497 = vmatpush1.msra.mxu0 0.0
    %1498 = vmatprep.subr.mxu0 0.0
    %1499 = vmatpush1.msra.mxu0 0.0
    %1500 = vmatprep.subr.mxu0 0.0
    %1501 = vmatpush1.msra.mxu0 0.0
    %1502 = vmatprep.subr.mxu0 0.0
    %1503 = vmatpush1.msra.mxu0 0.0
    %1504 = vmatprep.subr.mxu0 0.0
    %1505 = vmatpush1.msra.mxu0 0.0
    %1506 = vmatprep.subr.mxu0 0.0
    %1507 = vmatpush1.msra.mxu0 0.0
    %1508 = vmatprep.subr.mxu0 0.0
    %1509 = vmatpush1.msra.mxu0 0.0
    %1510 = vmatprep.subr.mxu0 0.0
    %1511 = vmatpush1.msra.mxu0 0.0
    %1512 = vmatprep.subr.mxu0 0.0
    %1513 = vmatpush1.msra.mxu0 0.0
    %1514 = vmatprep.subr.mxu0 0.0
    %1515 = vmatpush1.msra.mxu0 0.0
    %1516 = vmatprep.subr.mxu0 0.0
    %1517 = vmatpush1.msra.mxu0 0.0
    %1518 = vmatprep.subr.mxu0 0.0
    %1519 = vmatpush1.msra.mxu0 0.0
    %1520 = vmatprep.subr.mxu0 0.0
    %1521 = vmatpush1.msra.mxu0 0.0
    %1522 = vmatprep.subr.mxu0 0.0
    %1523 = vmatpush1.msra.mxu0 0.0
    %1524 = vmatprep.subr.mxu0 0.0
    %1525 = vmatpush1.msra.mxu0 0.0
    %1526 = vmatprep.subr.mxu0 0.0
    %1527 = vmatpush1.msra.mxu0 0.0
    %1528 = vmatprep.subr.mxu0 0.0
    %1529 = vmatpush1.msra.mxu0 0.0
    %1530 = vmatprep.subr.mxu0 0.0
    %1531 = vmatpush1.msra.mxu0 0.0
    %1532 = vmatprep.subr.mxu0 0.0
    %1533 = vmatpush1.msra.mxu0 0.0
    %1534 = vmatprep.subr.mxu0 0.0
    %1535 = vmatpush1.msra.mxu0 0.0
    %1536 = vmatprep.subr.mxu0 0.0
    %1537 = vmatpush1.msra.mxu0 0.0
    %1538 = vmatprep.subr.mxu0 0.0
    %1539 = vmatpush1.msra.mxu0 0.0
    %1540 = vmatprep.subr.mxu0 0.0
    %1541 = vmatpush1.msra.mxu0 0.0
    %1542 = vmatprep.subr.mxu0 0.0
    %1543 = vmatpush1.msra.mxu0 0.0
    %1544 = vmatprep.mubr.f32.mxu0 0.0
    %1545 = vmatmul.mubr.f32.gmra.mrb[0].mxu0 %v1307
    %v1546 = vpop.f32.mrb[0].mxu0
    %v1547 = vadd.f32 0.0, %v1546
    %v1548 = vpop.f32.mrb[0].mxu0
    %1549 = vdwg.mxu0
    %v1551 = vrot.slane %v1547, 4
    %v1552 = vrot.slane %v1547, 5
    %v1555 = vadd.f32 %v266, %v1551
    %v1556 = vadd.f32 %v271, %v1552
    %v1557 = vtanh.pop %v1555
    %v1558 = vtanh.pop %v1556
    %v1559 = vxor.u32 %v1555, 2147483648
    %v1560 = vxor.u32 %v1556, 2147483648
    %v1561 = vmul.f32 %v1559, 1.442695
    %v1562 = vpow.pop %v1561
    %v1563 = vmul.f32 %v1560, 1.442695
    %v1564 = vpow.pop %v1563
    %v1565 = vadd.f32 %v1562, 1.0
    %v1566 = vadd.f32 %v1564, 1.0
    %v1567 = vrcp.pop %v1565
    %v1568 = vmul.f32 1.0, %v1567
    %v1569 = vrcp.pop %v1566
    %v1570 = vmul.f32 1.0, %v1569
    %v1573 = vrot.slane %v1557, 4
    %v1574 = vrot.slane %v1558, 3
    %v1575 = vsel %vm381, %v1574, %v1573
    %v1579 = vrot.slane %v1568, 4
    %v1580 = vrot.slane %v1570, 3
    %v1581 = vsel %vm381, %v1580, %v1579
    %v1583 = vsel %vm363, %v1575, %v1581
    %v1584 = vmul.f32 %v1583, %v1297
    %1586 = vrot.lane.b32.xlu0 %v1583, 64
    %v1587 = vpop.permute.xlu0 %1586
    %v1589 = vmul.f32 %v1583, %v1587
    %1591 = vrot.lane.b32.xlu0 %v1589, 32
    %v1592 = vpop.permute.xlu0 %1591
    %v1594 = vadd.f32 %v1584, %v1592
    %v1595 = vtanh.pop %v1594
    %1597 = vrot.lane.b32.xlu0 %v1595, 64
    %v1598 = vpop.permute.xlu0 %1597
    %v1600 = vmul.f32 %v1583, %v1598
    %1602 = vrot.lane.b32.xlu0 %v1600, 32
    %v1603 = vpop.permute.xlu0 %1602
    %v1604 = vsel %vm279, %v1603, 0
    %1606 = vmatprep.subr.mxu0 0.0
    %1607 = vmatpush1.msra.mxu0 %v407
    %1608 = vmatprep.subr.mxu0 0.0
    %1609 = vmatpush1.msra.mxu0 %v408
    %1610 = vmatprep.subr.mxu0 0.0
    %1611 = vmatpush1.msra.mxu0 %v409
    %1612 = vmatprep.subr.mxu0 0.0
    %1613 = vmatpush1.msra.mxu0 %v410
    %1614 = vmatprep.subr.mxu0 0.0
    %1615 = vmatpush1.msra.mxu0 0.0
    %1616 = vmatprep.subr.mxu0 0.0
    %1617 = vmatpush1.msra.mxu0 0.0
    %1618 = vmatprep.subr.mxu0 0.0
    %1619 = vmatpush1.msra.mxu0 0.0
    %1620 = vmatprep.subr.mxu0 0.0
    %1621 = vmatpush1.msra.mxu0 0.0
    %1622 = vmatprep.subr.mxu0 0.0
    %1623 = vmatpush1.msra.mxu0 0.0
    %1624 = vmatprep.subr.mxu0 0.0
    %1625 = vmatpush1.msra.mxu0 0.0
    %1626 = vmatprep.subr.mxu0 0.0
    %1627 = vmatpush1.msra.mxu0 0.0
    %1628 = vmatprep.subr.mxu0 0.0
    %1629 = vmatpush1.msra.mxu0 0.0
    %1630 = vmatprep.subr.mxu0 0.0
    %1631 = vmatpush1.msra.mxu0 0.0
    %1632 = vmatprep.subr.mxu0 0.0
    %1633 = vmatpush1.msra.mxu0 0.0
    %1634 = vmatprep.subr.mxu0 0.0
    %1635 = vmatpush1.msra.mxu0 0.0
    %1636 = vmatprep.subr.mxu0 0.0
    %1637 = vmatpush1.msra.mxu0 0.0
    %1638 = vmatprep.subr.mxu0 0.0
    %1639 = vmatpush1.msra.mxu0 0.0
    %1640 = vmatprep.subr.mxu0 0.0
    %1641 = vmatpush1.msra.mxu0 0.0
    %1642 = vmatprep.subr.mxu0 0.0
    %1643 = vmatpush1.msra.mxu0 0.0
    %1644 = vmatprep.subr.mxu0 0.0
    %1645 = vmatpush1.msra.mxu0 0.0
    %1646 = vmatprep.subr.mxu0 0.0
    %1647 = vmatpush1.msra.mxu0 0.0
    %1648 = vmatprep.subr.mxu0 0.0
    %1649 = vmatpush1.msra.mxu0 0.0
    %1650 = vmatprep.subr.mxu0 0.0
    %1651 = vmatpush1.msra.mxu0 0.0
    %1652 = vmatprep.subr.mxu0 0.0
    %1653 = vmatpush1.msra.mxu0 0.0
    %1654 = vmatprep.subr.mxu0 0.0
    %1655 = vmatpush1.msra.mxu0 0.0
    %1656 = vmatprep.subr.mxu0 0.0
    %1657 = vmatpush1.msra.mxu0 0.0
    %1658 = vmatprep.subr.mxu0 0.0
    %1659 = vmatpush1.msra.mxu0 0.0
    %1660 = vmatprep.subr.mxu0 0.0
    %1661 = vmatpush1.msra.mxu0 0.0
    %1662 = vmatprep.subr.mxu0 0.0
    %1663 = vmatpush1.msra.mxu0 0.0
    %1664 = vmatprep.subr.mxu0 0.0
    %1665 = vmatpush1.msra.mxu0 0.0
    %1666 = vmatprep.subr.mxu0 0.0
    %1667 = vmatpush1.msra.mxu0 0.0
    %1668 = vmatprep.subr.mxu0 0.0
    %1669 = vmatpush1.msra.mxu0 0.0
    %1670 = vmatprep.mubr.f32.mxu0 0.0
    %1671 = vmatmul.mubr.f32.gmra.mrb[0].mxu0 %v1604
    %v1672 = vpop.f32.mrb[0].mxu0
    %v1673 = vadd.f32 %v415, %v1672
    %v1674 = vpop.f32.mrb[0].mxu0
    %1675 = vdwg.mxu0
    %1677 = vrot.lane.b32.xlu0 %v1479, 32
    %v1678 = vpop.permute.xlu0 %1677
    %v1679 = vsel %vm279, %v1678, 0
    %1681 = vmatprep.subr.mxu0 0.0
    %1682 = vmatpush1.msra.mxu0 %v492
    %1683 = vmatprep.subr.mxu0 0.0
    %1684 = vmatpush1.msra.mxu0 %v493
    %1685 = vmatprep.subr.mxu0 0.0
    %1686 = vmatpush1.msra.mxu0 %v494
    %1687 = vmatprep.subr.mxu0 0.0
    %1688 = vmatpush1.msra.mxu0 %v495
    %1689 = vmatprep.subr.mxu0 0.0
    %1690 = vmatpush1.msra.mxu0 0.0
    %1691 = vmatprep.subr.mxu0 0.0
    %1692 = vmatpush1.msra.mxu0 0.0
    %1693 = vmatprep.subr.mxu0 0.0
    %1694 = vmatpush1.msra.mxu0 0.0
    %1695 = vmatprep.subr.mxu0 0.0
    %1696 = vmatpush1.msra.mxu0 0.0
    %1697 = vmatprep.subr.mxu0 0.0
    %1698 = vmatpush1.msra.mxu0 0.0
    %1699 = vmatprep.subr.mxu0 0.0
    %1700 = vmatpush1.msra.mxu0 0.0
    %1701 = vmatprep.subr.mxu0 0.0
    %1702 = vmatpush1.msra.mxu0 0.0
    %1703 = vmatprep.subr.mxu0 0.0
    %1704 = vmatpush1.msra.mxu0 0.0
    %1705 = vmatprep.subr.mxu0 0.0
    %1706 = vmatpush1.msra.mxu0 0.0
    %1707 = vmatprep.subr.mxu0 0.0
    %1708 = vmatpush1.msra.mxu0 0.0
    %1709 = vmatprep.subr.mxu0 0.0
    %1710 = vmatpush1.msra.mxu0 0.0
    %1711 = vmatprep.subr.mxu0 0.0
    %1712 = vmatpush1.msra.mxu0 0.0
    %1713 = vmatprep.subr.mxu0 0.0
    %1714 = vmatpush1.msra.mxu0 0.0
    %1715 = vmatprep.subr.mxu0 0.0
    %1716 = vmatpush1.msra.mxu0 0.0
    %1717 = vmatprep.subr.mxu0 0.0
    %1718 = vmatpush1.msra.mxu0 0.0
    %1719 = vmatprep.subr.mxu0 0.0
    %1720 = vmatpush1.msra.mxu0 0.0
    %1721 = vmatprep.subr.mxu0 0.0
    %1722 = vmatpush1.msra.mxu0 0.0
    %1723 = vmatprep.subr.mxu0 0.0
    %1724 = vmatpush1.msra.mxu0 0.0
    %1725 = vmatprep.subr.mxu0 0.0
    %1726 = vmatpush1.msra.mxu0 0.0
    %1727 = vmatprep.subr.mxu0 0.0
    %1728 = vmatpush1.msra.mxu0 0.0
    %1729 = vmatprep.subr.mxu0 0.0
    %1730 = vmatpush1.msra.mxu0 0.0
    %1731 = vmatprep.subr.mxu0 0.0
    %1732 = vmatpush1.msra.mxu0 0.0
    %1733 = vmatprep.subr.mxu0 0.0
    %1734 = vmatpush1.msra.mxu0 0.0
    %1735 = vmatprep.subr.mxu0 0.0
    %1736 = vmatpush1.msra.mxu0 0.0
    %1737 = vmatprep.subr.mxu0 0.0
    %1738 = vmatpush1.msra.mxu0 0.0
    %1739 = vmatprep.subr.mxu0 0.0
    %1740 = vmatpush1.msra.mxu0 0.0
    %1741 = vmatprep.subr.mxu0 0.0
    %1742 = vmatpush1.msra.mxu0 0.0
    %1743 = vmatprep.subr.mxu0 0.0
    %1744 = vmatpush1.msra.mxu0 0.0
    %1745 = vmatprep.mubr.f32.mxu0 0.0
    %1746 = vmatmul.mubr.f32.gmra.mrb[0].mxu0 %v1679
    %v1747 = vpop.f32.mrb[0].mxu0
    %v1748 = vadd.f32 0.0, %v1747
    %v1749 = vpop.f32.mrb[0].mxu0
    %1750 = vdwg.mxu0
    %v1751 = vadd.f32 %v1673, %v1748
    %v1752 = vtanh.pop %v1751
    %v1753 = vxor.u32 %v1751, 2147483648
    %v1754 = vmul.f32 %v1753, 1.442695
    %v1755 = vpow.pop %v1754
    %v1756 = vadd.f32 %v1755, 1.0
    %v1757 = vrcp.pop %v1756
    %v1758 = vmul.f32 1.0, %v1757
    %v1759 = vsel %vm363, %v1752, %v1758
    %v1760 = vmul.f32 %v1759, %v1473
    %1762 = vrot.lane.b32.xlu0 %v1759, 64
    %v1763 = vpop.permute.xlu0 %1762
    %v1765 = vmul.f32 %v1759, %v1763
    %1767 = vrot.lane.b32.xlu0 %v1765, 32
    %v1768 = vpop.permute.xlu0 %1767
    %v1770 = vadd.f32 %v1760, %v1768
    %v1771 = vtanh.pop %v1770
    %1773 = vrot.lane.b32.xlu0 %v1771, 64
    %v1774 = vpop.permute.xlu0 %1773
    %v1776 = vmul.f32 %v1759, %v1774
    %1777 = vmatprep.subr.mxu0 0.0
    %1778 = vmatpush1.msra.mxu0 %v275
    %1779 = vmatprep.subr.mxu0 0.0
    %1780 = vmatpush1.msra.mxu0 %v276
    %1781 = vmatprep.subr.mxu0 0.0
    %1782 = vmatpush1.msra.mxu0 %v277
    %1783 = vmatprep.subr.mxu0 0.0
    %1784 = vmatpush1.msra.mxu0 %v278
    %1785 = vmatprep.subr.mxu0 0.0
    %1786 = vmatpush1.msra.mxu0 0.0
    %1787 = vmatprep.subr.mxu0 0.0
    %1788 = vmatpush1.msra.mxu0 0.0
    %1789 = vmatprep.subr.mxu0 0.0
    %1790 = vmatpush1.msra.mxu0 0.0
    %1791 = vmatprep.subr.mxu0 0.0
    %1792 = vmatpush1.msra.mxu0 0.0
    %1793 = vmatprep.subr.mxu0 0.0
    %1794 = vmatpush1.msra.mxu0 0.0
    %1795 = vmatprep.subr.mxu0 0.0
    %1796 = vmatpush1.msra.mxu0 0.0
    %1797 = vmatprep.subr.mxu0 0.0
    %1798 = vmatpush1.msra.mxu0 0.0
    %1799 = vmatprep.subr.mxu0 0.0
    %1800 = vmatpush1.msra.mxu0 0.0
    %1801 = vmatprep.subr.mxu0 0.0
    %1802 = vmatpush1.msra.mxu0 0.0
    %1803 = vmatprep.subr.mxu0 0.0
    %1804 = vmatpush1.msra.mxu0 0.0
    %1805 = vmatprep.subr.mxu0 0.0
    %1806 = vmatpush1.msra.mxu0 0.0
    %1807 = vmatprep.subr.mxu0 0.0
    %1808 = vmatpush1.msra.mxu0 0.0
    %1809 = vmatprep.subr.mxu0 0.0
    %1810 = vmatpush1.msra.mxu0 0.0
    %1811 = vmatprep.subr.mxu0 0.0
    %1812 = vmatpush1.msra.mxu0 0.0
    %1813 = vmatprep.subr.mxu0 0.0
    %1814 = vmatpush1.msra.mxu0 0.0
    %1815 = vmatprep.subr.mxu0 0.0
    %1816 = vmatpush1.msra.mxu0 0.0
    %1817 = vmatprep.subr.mxu0 0.0
    %1818 = vmatpush1.msra.mxu0 0.0
    %1819 = vmatprep.subr.mxu0 0.0
    %1820 = vmatpush1.msra.mxu0 0.0
    %1821 = vmatprep.subr.mxu0 0.0
    %1822 = vmatpush1.msra.mxu0 0.0
    %1823 = vmatprep.subr.mxu0 0.0
    %1824 = vmatpush1.msra.mxu0 0.0
    %1825 = vmatprep.subr.mxu0 0.0
    %1826 = vmatpush1.msra.mxu0 0.0
    %1827 = vmatprep.subr.mxu0 0.0
    %1828 = vmatpush1.msra.mxu0 0.0
    %1829 = vmatprep.subr.mxu0 0.0
    %1830 = vmatpush1.msra.mxu0 0.0
    %1831 = vmatprep.subr.mxu0 0.0
    %1832 = vmatpush1.msra.mxu0 0.0
    %1833 = vmatprep.subr.mxu0 0.0
    %1834 = vmatpush1.msra.mxu0 0.0
    %1835 = vmatprep.subr.mxu0 0.0
    %1836 = vmatpush1.msra.mxu0 0.0
    %1837 = vmatprep.subr.mxu0 0.0
    %1838 = vmatpush1.msra.mxu0 0.0
    %1839 = vmatprep.subr.mxu0 0.0
    %1840 = vmatpush1.msra.mxu0 0.0
    %1841 = vmatprep.mubr.f32.mxu0 0.0
    %1842 = vmatmul.mubr.f32.gmra.mrb[0].mxu0 %v1604
    %v1843 = vpop.f32.mrb[0].mxu0
    %v1844 = vadd.f32 0.0, %v1843
    %v1845 = vpop.f32.mrb[0].mxu0
    %1846 = vdwg.mxu0
    %v1848 = vrot.slane %v1844, 3
    %v1849 = vrot.slane %v1844, 4
    %v1852 = vadd.f32 %v266, %v1848
    %v1853 = vadd.f32 %v271, %v1849
    %v1854 = vtanh.pop %v1852
    %v1855 = vtanh.pop %v1853
    %v1856 = vxor.u32 %v1852, 2147483648
    %v1857 = vxor.u32 %v1853, 2147483648
    %v1858 = vmul.f32 %v1856, 1.442695
    %v1859 = vpow.pop %v1858
    %v1860 = vmul.f32 %v1857, 1.442695
    %v1861 = vpow.pop %v1860
    %v1862 = vadd.f32 %v1859, 1.0
    %v1863 = vadd.f32 %v1861, 1.0
    %v1864 = vrcp.pop %v1862
    %v1865 = vmul.f32 1.0, %v1864
    %v1866 = vrcp.pop %v1863
    %v1867 = vmul.f32 1.0, %v1866
    %v1870 = vrot.slane %v1854, 5
    %v1871 = vrot.slane %v1855, 4
    %v1872 = vsel %vm381, %v1871, %v1870
    %v1876 = vrot.slane %v1865, 5
    %v1877 = vrot.slane %v1867, 4
    %v1878 = vsel %vm381, %v1877, %v1876
    %v1880 = vsel %vm363, %v1872, %v1878
    %v1881 = vmul.f32 %v1880, %v1594
    %1883 = vrot.lane.b32.xlu0 %v1880, 64
    %v1884 = vpop.permute.xlu0 %1883
    %v1886 = vmul.f32 %v1880, %v1884
    %1888 = vrot.lane.b32.xlu0 %v1886, 32
    %v1889 = vpop.permute.xlu0 %1888
    %v1891 = vadd.f32 %v1881, %v1889
    %v1892 = vtanh.pop %v1891
    %1894 = vrot.lane.b32.xlu0 %v1892, 64
    %v1895 = vpop.permute.xlu0 %1894
    %v1897 = vmul.f32 %v1880, %v1895
    %1899 = vrot.lane.b32.xlu0 %v1897, 32
    %v1900 = vpop.permute.xlu0 %1899
    %v1901 = vsel %vm279, %v1900, 0
    %1903 = vmatprep.subr.mxu0 0.0
    %1904 = vmatpush1.msra.mxu0 %v407
    %1905 = vmatprep.subr.mxu0 0.0
    %1906 = vmatpush1.msra.mxu0 %v408
    %1907 = vmatprep.subr.mxu0 0.0
    %1908 = vmatpush1.msra.mxu0 %v409
    %1909 = vmatprep.subr.mxu0 0.0
    %1910 = vmatpush1.msra.mxu0 %v410
    %1911 = vmatprep.subr.mxu0 0.0
    %1912 = vmatpush1.msra.mxu0 0.0
    %1913 = vmatprep.subr.mxu0 0.0
    %1914 = vmatpush1.msra.mxu0 0.0
    %1915 = vmatprep.subr.mxu0 0.0
    %1916 = vmatpush1.msra.mxu0 0.0
    %1917 = vmatprep.subr.mxu0 0.0
    %1918 = vmatpush1.msra.mxu0 0.0
    %1919 = vmatprep.subr.mxu0 0.0
    %1920 = vmatpush1.msra.mxu0 0.0
    %1921 = vmatprep.subr.mxu0 0.0
    %1922 = vmatpush1.msra.mxu0 0.0
    %1923 = vmatprep.subr.mxu0 0.0
    %1924 = vmatpush1.msra.mxu0 0.0
    %1925 = vmatprep.subr.mxu0 0.0
    %1926 = vmatpush1.msra.mxu0 0.0
    %1927 = vmatprep.subr.mxu0 0.0
    %1928 = vmatpush1.msra.mxu0 0.0
    %1929 = vmatprep.subr.mxu0 0.0
    %1930 = vmatpush1.msra.mxu0 0.0
    %1931 = vmatprep.subr.mxu0 0.0
    %1932 = vmatpush1.msra.mxu0 0.0
    %1933 = vmatprep.subr.mxu0 0.0
    %1934 = vmatpush1.msra.mxu0 0.0
    %1935 = vmatprep.subr.mxu0 0.0
    %1936 = vmatpush1.msra.mxu0 0.0
    %1937 = vmatprep.subr.mxu0 0.0
    %1938 = vmatpush1.msra.mxu0 0.0
    %1939 = vmatprep.subr.mxu0 0.0
    %1940 = vmatpush1.msra.mxu0 0.0
    %1941 = vmatprep.subr.mxu0 0.0
    %1942 = vmatpush1.msra.mxu0 0.0
    %1943 = vmatprep.subr.mxu0 0.0
    %1944 = vmatpush1.msra.mxu0 0.0
    %1945 = vmatprep.subr.mxu0 0.0
    %1946 = vmatpush1.msra.mxu0 0.0
    %1947 = vmatprep.subr.mxu0 0.0
    %1948 = vmatpush1.msra.mxu0 0.0
    %1949 = vmatprep.subr.mxu0 0.0
    %1950 = vmatpush1.msra.mxu0 0.0
    %1951 = vmatprep.subr.mxu0 0.0
    %1952 = vmatpush1.msra.mxu0 0.0
    %1953 = vmatprep.subr.mxu0 0.0
    %1954 = vmatpush1.msra.mxu0 0.0
    %1955 = vmatprep.subr.mxu0 0.0
    %1956 = vmatpush1.msra.mxu0 0.0
    %1957 = vmatprep.subr.mxu0 0.0
    %1958 = vmatpush1.msra.mxu0 0.0
    %1959 = vmatprep.subr.mxu0 0.0
    %1960 = vmatpush1.msra.mxu0 0.0
    %1961 = vmatprep.subr.mxu0 0.0
    %1962 = vmatpush1.msra.mxu0 0.0
    %1963 = vmatprep.subr.mxu0 0.0
    %1964 = vmatpush1.msra.mxu0 0.0
    %1965 = vmatprep.subr.mxu0 0.0
    %1966 = vmatpush1.msra.mxu0 0.0
    %1967 = vmatprep.mubr.f32.mxu0 0.0
    %1968 = vmatmul.mubr.f32.gmra.mrb[0].mxu0 %v1901
    %v1969 = vpop.f32.mrb[0].mxu0
    %v1970 = vadd.f32 %v415, %v1969
    %v1971 = vpop.f32.mrb[0].mxu0
    %1972 = vdwg.mxu0
    %1974 = vrot.lane.b32.xlu0 %v1776, 32
    %v1975 = vpop.permute.xlu0 %1974
    %v1976 = vsel %vm279, %v1975, 0
    %1978 = vmatprep.subr.mxu0 0.0
    %1979 = vmatpush1.msra.mxu0 %v492
    %1980 = vmatprep.subr.mxu0 0.0
    %1981 = vmatpush1.msra.mxu0 %v493
    %1982 = vmatprep.subr.mxu0 0.0
    %1983 = vmatpush1.msra.mxu0 %v494
    %1984 = vmatprep.subr.mxu0 0.0
    %1985 = vmatpush1.msra.mxu0 %v495
    %1986 = vmatprep.subr.mxu0 0.0
    %1987 = vmatpush1.msra.mxu0 0.0
    %1988 = vmatprep.subr.mxu0 0.0
    %1989 = vmatpush1.msra.mxu0 0.0
    %1990 = vmatprep.subr.mxu0 0.0
    %1991 = vmatpush1.msra.mxu0 0.0
    %1992 = vmatprep.subr.mxu0 0.0
    %1993 = vmatpush1.msra.mxu0 0.0
    %1994 = vmatprep.subr.mxu0 0.0
    %1995 = vmatpush1.msra.mxu0 0.0
    %1996 = vmatprep.subr.mxu0 0.0
    %1997 = vmatpush1.msra.mxu0 0.0
    %1998 = vmatprep.subr.mxu0 0.0
    %1999 = vmatpush1.msra.mxu0 0.0
    %2000 = vmatprep.subr.mxu0 0.0
    %2001 = vmatpush1.msra.mxu0 0.0
    %2002 = vmatprep.subr.mxu0 0.0
    %2003 = vmatpush1.msra.mxu0 0.0
    %2004 = vmatprep.subr.mxu0 0.0
    %2005 = vmatpush1.msra.mxu0 0.0
    %2006 = vmatprep.subr.mxu0 0.0
    %2007 = vmatpush1.msra.mxu0 0.0
    %2008 = vmatprep.subr.mxu0 0.0
    %2009 = vmatpush1.msra.mxu0 0.0
    %2010 = vmatprep.subr.mxu0 0.0
    %2011 = vmatpush1.msra.mxu0 0.0
    %2012 = vmatprep.subr.mxu0 0.0
    %2013 = vmatpush1.msra.mxu0 0.0
    %2014 = vmatprep.subr.mxu0 0.0
    %2015 = vmatpush1.msra.mxu0 0.0
    %2016 = vmatprep.subr.mxu0 0.0
    %2017 = vmatpush1.msra.mxu0 0.0
    %2018 = vmatprep.subr.mxu0 0.0
    %2019 = vmatpush1.msra.mxu0 0.0
    %2020 = vmatprep.subr.mxu0 0.0
    %2021 = vmatpush1.msra.mxu0 0.0
    %2022 = vmatprep.subr.mxu0 0.0
    %2023 = vmatpush1.msra.mxu0 0.0
    %2024 = vmatprep.subr.mxu0 0.0
    %2025 = vmatpush1.msra.mxu0 0.0
    %2026 = vmatprep.subr.mxu0 0.0
    %2027 = vmatpush1.msra.mxu0 0.0
    %2028 = vmatprep.subr.mxu0 0.0
    %2029 = vmatpush1.msra.mxu0 0.0
    %2030 = vmatprep.subr.mxu0 0.0
    %2031 = vmatpush1.msra.mxu0 0.0
    %2032 = vmatprep.subr.mxu0 0.0
    %2033 = vmatpush1.msra.mxu0 0.0
    %2034 = vmatprep.subr.mxu0 0.0
    %2035 = vmatpush1.msra.mxu0 0.0
    %2036 = vmatprep.subr.mxu0 0.0
    %2037 = vmatpush1.msra.mxu0 0.0
    %2038 = vmatprep.subr.mxu0 0.0
    %2039 = vmatpush1.msra.mxu0 0.0
    %2040 = vmatprep.subr.mxu0 0.0
    %2041 = vmatpush1.msra.mxu0 0.0
    %2042 = vmatprep.mubr.f32.mxu0 0.0
    %2043 = vmatmul.mubr.f32.gmra.mrb[0].mxu0 %v1976
    %v2044 = vpop.f32.mrb[0].mxu0
    %v2045 = vadd.f32 0.0, %v2044
    %v2046 = vpop.f32.mrb[0].mxu0
    %2047 = vdwg.mxu0
    %v2048 = vadd.f32 %v1970, %v2045
    %v2049 = vtanh.pop %v2048
    %v2050 = vxor.u32 %v2048, 2147483648
    %v2051 = vmul.f32 %v2050, 1.442695
    %v2052 = vpow.pop %v2051
    %v2053 = vadd.f32 %v2052, 1.0
    %v2054 = vrcp.pop %v2053
    %v2055 = vmul.f32 1.0, %v2054
    %v2056 = vsel %vm363, %v2049, %v2055
    %v2057 = vmul.f32 %v2056, %v1770
    %2059 = vrot.lane.b32.xlu0 %v2056, 64
    %v2060 = vpop.permute.xlu0 %2059
    %v2062 = vmul.f32 %v2056, %v2060
    %2064 = vrot.lane.b32.xlu0 %v2062, 32
    %v2065 = vpop.permute.xlu0 %2064
    %v2067 = vadd.f32 %v2057, %v2065
    %v2068 = vtanh.pop %v2067
    %2070 = vrot.lane.b32.xlu0 %v2068, 64
    %v2071 = vpop.permute.xlu0 %2070
    %v2073 = vmul.f32 %v2056, %v2071
    %2074 = vmatprep.subr.mxu0 0.0
    %2075 = vmatpush1.msra.mxu0 %v275
    %2076 = vmatprep.subr.mxu0 0.0
    %2077 = vmatpush1.msra.mxu0 %v276
    %2078 = vmatprep.subr.mxu0 0.0
    %2079 = vmatpush1.msra.mxu0 %v277
    %2080 = vmatprep.subr.mxu0 0.0
    %2081 = vmatpush1.msra.mxu0 %v278
    %2082 = vmatprep.subr.mxu0 0.0
    %2083 = vmatpush1.msra.mxu0 0.0
    %2084 = vmatprep.subr.mxu0 0.0
    %2085 = vmatpush1.msra.mxu0 0.0
    %2086 = vmatprep.subr.mxu0 0.0
    %2087 = vmatpush1.msra.mxu0 0.0
    %2088 = vmatprep.subr.mxu0 0.0
    %2089 = vmatpush1.msra.mxu0 0.0
    %2090 = vmatprep.subr.mxu0 0.0
    %2091 = vmatpush1.msra.mxu0 0.0
    %2092 = vmatprep.subr.mxu0 0.0
    %2093 = vmatpush1.msra.mxu0 0.0
    %2094 = vmatprep.subr.mxu0 0.0
    %2095 = vmatpush1.msra.mxu0 0.0
    %2096 = vmatprep.subr.mxu0 0.0
    %2097 = vmatpush1.msra.mxu0 0.0
    %2098 = vmatprep.subr.mxu0 0.0
    %2099 = vmatpush1.msra.mxu0 0.0
    %2100 = vmatprep.subr.mxu0 0.0
    %2101 = vmatpush1.msra.mxu0 0.0
    %2102 = vmatprep.subr.mxu0 0.0
    %2103 = vmatpush1.msra.mxu0 0.0
    %2104 = vmatprep.subr.mxu0 0.0
    %2105 = vmatpush1.msra.mxu0 0.0
    %2106 = vmatprep.subr.mxu0 0.0
    %2107 = vmatpush1.msra.mxu0 0.0
    %2108 = vmatprep.subr.mxu0 0.0
    %2109 = vmatpush1.msra.mxu0 0.0
    %2110 = vmatprep.subr.mxu0 0.0
    %2111 = vmatpush1.msra.mxu0 0.0
    %2112 = vmatprep.subr.mxu0 0.0
    %2113 = vmatpush1.msra.mxu0 0.0
    %2114 = vmatprep.subr.mxu0 0.0
    %2115 = vmatpush1.msra.mxu0 0.0
    %2116 = vmatprep.subr.mxu0 0.0
    %2117 = vmatpush1.msra.mxu0 0.0
    %2118 = vmatprep.subr.mxu0 0.0
    %2119 = vmatpush1.msra.mxu0 0.0
    %2120 = vmatprep.subr.mxu0 0.0
    %2121 = vmatpush1.msra.mxu0 0.0
    %2122 = vmatprep.subr.mxu0 0.0
    %2123 = vmatpush1.msra.mxu0 0.0
    %2124 = vmatprep.subr.mxu0 0.0
    %2125 = vmatpush1.msra.mxu0 0.0
    %2126 = vmatprep.subr.mxu0 0.0
    %2127 = vmatpush1.msra.mxu0 0.0
    %2128 = vmatprep.subr.mxu0 0.0
    %2129 = vmatpush1.msra.mxu0 0.0
    %2130 = vmatprep.subr.mxu0 0.0
    %2131 = vmatpush1.msra.mxu0 0.0
    %2132 = vmatprep.subr.mxu0 0.0
    %2133 = vmatpush1.msra.mxu0 0.0
    %2134 = vmatprep.subr.mxu0 0.0
    %2135 = vmatpush1.msra.mxu0 0.0
    %2136 = vmatprep.subr.mxu0 0.0
    %2137 = vmatpush1.msra.mxu0 0.0
    %2138 = vmatprep.mubr.f32.mxu0 0.0
    %2139 = vmatmul.mubr.f32.gmra.mrb[0].mxu0 %v1901
    %v2140 = vpop.f32.mrb[0].mxu0
    %v2141 = vadd.f32 0.0, %v2140
    %v2142 = vpop.f32.mrb[0].mxu0
    %2143 = vdwg.mxu0
    %v2145 = vrot.slane %v2141, 2
    %v2146 = vrot.slane %v2141, 3
    %v2149 = vadd.f32 %v266, %v2145
    %v2150 = vadd.f32 %v271, %v2146
    %v2151 = vtanh.pop %v2149
    %v2152 = vtanh.pop %v2150
    %v2153 = vxor.u32 %v2149, 2147483648
    %v2154 = vxor.u32 %v2150, 2147483648
    %v2155 = vmul.f32 %v2153, 1.442695
    %v2156 = vpow.pop %v2155
    %v2157 = vmul.f32 %v2154, 1.442695
    %v2158 = vpow.pop %v2157
    %v2159 = vadd.f32 %v2156, 1.0
    %v2160 = vadd.f32 %v2158, 1.0
    %v2161 = vrcp.pop %v2159
    %v2162 = vmul.f32 1.0, %v2161
    %v2163 = vrcp.pop %v2160
    %v2164 = vmul.f32 1.0, %v2163
    %v2167 = vrot.slane %v2151, 6
    %v2168 = vrot.slane %v2152, 5
    %v2169 = vsel %vm381, %v2168, %v2167
    %v2173 = vrot.slane %v2162, 6
    %v2174 = vrot.slane %v2164, 5
    %v2175 = vsel %vm381, %v2174, %v2173
    %v2177 = vsel %vm363, %v2169, %v2175
    %v2178 = vmul.f32 %v2177, %v1891
    %2180 = vrot.lane.b32.xlu0 %v2177, 64
    %v2181 = vpop.permute.xlu0 %2180
    %v2183 = vmul.f32 %v2177, %v2181
    %2185 = vrot.lane.b32.xlu0 %v2183, 32
    %v2186 = vpop.permute.xlu0 %2185
    %v2188 = vadd.f32 %v2178, %v2186
    %v2189 = vtanh.pop %v2188
    %2191 = vrot.lane.b32.xlu0 %v2189, 64
    %v2192 = vpop.permute.xlu0 %2191
    %v2194 = vmul.f32 %v2177, %v2192
    %2196 = vrot.lane.b32.xlu0 %v2194, 32
    %v2197 = vpop.permute.xlu0 %2196
    %v2198 = vsel %vm279, %v2197, 0
    %2200 = vmatprep.subr.mxu0 0.0
    %2201 = vmatpush1.msra.mxu0 %v407
    %2202 = vmatprep.subr.mxu0 0.0
    %2203 = vmatpush1.msra.mxu0 %v408
    %2204 = vmatprep.subr.mxu0 0.0
    %2205 = vmatpush1.msra.mxu0 %v409
    %2206 = vmatprep.subr.mxu0 0.0
    %2207 = vmatpush1.msra.mxu0 %v410
    %2208 = vmatprep.subr.mxu0 0.0
    %2209 = vmatpush1.msra.mxu0 0.0
    %2210 = vmatprep.subr.mxu0 0.0
    %2211 = vmatpush1.msra.mxu0 0.0
    %2212 = vmatprep.subr.mxu0 0.0
    %2213 = vmatpush1.msra.mxu0 0.0
    %2214 = vmatprep.subr.mxu0 0.0
    %2215 = vmatpush1.msra.mxu0 0.0
    %2216 = vmatprep.subr.mxu0 0.0
    %2217 = vmatpush1.msra.mxu0 0.0
    %2218 = vmatprep.subr.mxu0 0.0
    %2219 = vmatpush1.msra.mxu0 0.0
    %2220 = vmatprep.subr.mxu0 0.0
    %2221 = vmatpush1.msra.mxu0 0.0
    %2222 = vmatprep.subr.mxu0 0.0
    %2223 = vmatpush1.msra.mxu0 0.0
    %2224 = vmatprep.subr.mxu0 0.0
    %2225 = vmatpush1.msra.mxu0 0.0
    %2226 = vmatprep.subr.mxu0 0.0
    %2227 = vmatpush1.msra.mxu0 0.0
    %2228 = vmatprep.subr.mxu0 0.0
    %2229 = vmatpush1.msra.mxu0 0.0
    %2230 = vmatprep.subr.mxu0 0.0
    %2231 = vmatpush1.msra.mxu0 0.0
    %2232 = vmatprep.subr.mxu0 0.0
    %2233 = vmatpush1.msra.mxu0 0.0
    %2234 = vmatprep.subr.mxu0 0.0
    %2235 = vmatpush1.msra.mxu0 0.0
    %2236 = vmatprep.subr.mxu0 0.0
    %2237 = vmatpush1.msra.mxu0 0.0
    %2238 = vmatprep.subr.mxu0 0.0
    %2239 = vmatpush1.msra.mxu0 0.0
    %2240 = vmatprep.subr.mxu0 0.0
    %2241 = vmatpush1.msra.mxu0 0.0
    %2242 = vmatprep.subr.mxu0 0.0
    %2243 = vmatpush1.msra.mxu0 0.0
    %2244 = vmatprep.subr.mxu0 0.0
    %2245 = vmatpush1.msra.mxu0 0.0
    %2246 = vmatprep.subr.mxu0 0.0
    %2247 = vmatpush1.msra.mxu0 0.0
    %2248 = vmatprep.subr.mxu0 0.0
    %2249 = vmatpush1.msra.mxu0 0.0
    %2250 = vmatprep.subr.mxu0 0.0
    %2251 = vmatpush1.msra.mxu0 0.0
    %2252 = vmatprep.subr.mxu0 0.0
    %2253 = vmatpush1.msra.mxu0 0.0
    %2254 = vmatprep.subr.mxu0 0.0
    %2255 = vmatpush1.msra.mxu0 0.0
    %2256 = vmatprep.subr.mxu0 0.0
    %2257 = vmatpush1.msra.mxu0 0.0
    %2258 = vmatprep.subr.mxu0 0.0
    %2259 = vmatpush1.msra.mxu0 0.0
    %2260 = vmatprep.subr.mxu0 0.0
    %2261 = vmatpush1.msra.mxu0 0.0
    %2262 = vmatprep.subr.mxu0 0.0
    %2263 = vmatpush1.msra.mxu0 0.0
    %2264 = vmatprep.mubr.f32.mxu0 0.0
    %2265 = vmatmul.mubr.f32.gmra.mrb[0].mxu0 %v2198
    %v2266 = vpop.f32.mrb[0].mxu0
    %v2267 = vadd.f32 %v415, %v2266
    %v2268 = vpop.f32.mrb[0].mxu0
    %2269 = vdwg.mxu0
    %2271 = vrot.lane.b32.xlu0 %v2073, 32
    %v2272 = vpop.permute.xlu0 %2271
    %v2273 = vsel %vm279, %v2272, 0
    %2275 = vmatprep.subr.mxu0 0.0
    %2276 = vmatpush1.msra.mxu0 %v492
    %2277 = vmatprep.subr.mxu0 0.0
    %2278 = vmatpush1.msra.mxu0 %v493
    %2279 = vmatprep.subr.mxu0 0.0
    %2280 = vmatpush1.msra.mxu0 %v494
    %2281 = vmatprep.subr.mxu0 0.0
    %2282 = vmatpush1.msra.mxu0 %v495
    %2283 = vmatprep.subr.mxu0 0.0
    %2284 = vmatpush1.msra.mxu0 0.0
    %2285 = vmatprep.subr.mxu0 0.0
    %2286 = vmatpush1.msra.mxu0 0.0
    %2287 = vmatprep.subr.mxu0 0.0
    %2288 = vmatpush1.msra.mxu0 0.0
    %2289 = vmatprep.subr.mxu0 0.0
    %2290 = vmatpush1.msra.mxu0 0.0
    %2291 = vmatprep.subr.mxu0 0.0
    %2292 = vmatpush1.msra.mxu0 0.0
    %2293 = vmatprep.subr.mxu0 0.0
    %2294 = vmatpush1.msra.mxu0 0.0
    %2295 = vmatprep.subr.mxu0 0.0
    %2296 = vmatpush1.msra.mxu0 0.0
    %2297 = vmatprep.subr.mxu0 0.0
    %2298 = vmatpush1.msra.mxu0 0.0
    %2299 = vmatprep.subr.mxu0 0.0
    %2300 = vmatpush1.msra.mxu0 0.0
    %2301 = vmatprep.subr.mxu0 0.0
    %2302 = vmatpush1.msra.mxu0 0.0
    %2303 = vmatprep.subr.mxu0 0.0
    %2304 = vmatpush1.msra.mxu0 0.0
    %2305 = vmatprep.subr.mxu0 0.0
    %2306 = vmatpush1.msra.mxu0 0.0
    %2307 = vmatprep.subr.mxu0 0.0
    %2308 = vmatpush1.msra.mxu0 0.0
    %2309 = vmatprep.subr.mxu0 0.0
    %2310 = vmatpush1.msra.mxu0 0.0
    %2311 = vmatprep.subr.mxu0 0.0
    %2312 = vmatpush1.msra.mxu0 0.0
    %2313 = vmatprep.subr.mxu0 0.0
    %2314 = vmatpush1.msra.mxu0 0.0
    %2315 = vmatprep.subr.mxu0 0.0
    %2316 = vmatpush1.msra.mxu0 0.0
    %2317 = vmatprep.subr.mxu0 0.0
    %2318 = vmatpush1.msra.mxu0 0.0
    %2319 = vmatprep.subr.mxu0 0.0
    %2320 = vmatpush1.msra.mxu0 0.0
    %2321 = vmatprep.subr.mxu0 0.0
    %2322 = vmatpush1.msra.mxu0 0.0
    %2323 = vmatprep.subr.mxu0 0.0
    %2324 = vmatpush1.msra.mxu0 0.0
    %2325 = vmatprep.subr.mxu0 0.0
    %2326 = vmatpush1.msra.mxu0 0.0
    %2327 = vmatprep.subr.mxu0 0.0
    %2328 = vmatpush1.msra.mxu0 0.0
    %2329 = vmatprep.subr.mxu0 0.0
    %2330 = vmatpush1.msra.mxu0 0.0
    %2331 = vmatprep.subr.mxu0 0.0
    %2332 = vmatpush1.msra.mxu0 0.0
    %2333 = vmatprep.subr.mxu0 0.0
    %2334 = vmatpush1.msra.mxu0 0.0
    %2335 = vmatprep.subr.mxu0 0.0
    %2336 = vmatpush1.msra.mxu0 0.0
    %2337 = vmatprep.subr.mxu0 0.0
    %2338 = vmatpush1.msra.mxu0 0.0
    %2339 = vmatprep.mubr.f32.mxu0 0.0
    %2340 = vmatmul.mubr.f32.gmra.mrb[0].mxu0 %v2273
    %v2341 = vpop.f32.mrb[0].mxu0
    %v2342 = vadd.f32 0.0, %v2341
    %v2343 = vpop.f32.mrb[0].mxu0
    %2344 = vdwg.mxu0
    %v2345 = vadd.f32 %v2267, %v2342
    %v2346 = vtanh.pop %v2345
    %v2347 = vxor.u32 %v2345, 2147483648
    %v2348 = vmul.f32 %v2347, 1.442695
    %v2349 = vpow.pop %v2348
    %v2350 = vadd.f32 %v2349, 1.0
    %v2351 = vrcp.pop %v2350
    %v2352 = vmul.f32 1.0, %v2351
    %v2353 = vsel %vm363, %v2346, %v2352
    %v2354 = vmul.f32 %v2353, %v2067
    %2356 = vrot.lane.b32.xlu0 %v2353, 64
    %v2357 = vpop.permute.xlu0 %2356
    %v2359 = vmul.f32 %v2353, %v2357
    %2361 = vrot.lane.b32.xlu0 %v2359, 32
    %v2362 = vpop.permute.xlu0 %2361
    %v2364 = vadd.f32 %v2354, %v2362
    %v2365 = vtanh.pop %v2364
    %2367 = vrot.lane.b32.xlu0 %v2365, 64
    %v2368 = vpop.permute.xlu0 %2367
    %v2370 = vmul.f32 %v2353, %v2368
    %2371 = vmatprep.subr.mxu0 0.0
    %2372 = vmatpush1.msra.mxu0 %v275
    %2373 = vmatprep.subr.mxu0 0.0
    %2374 = vmatpush1.msra.mxu0 %v276
    %2375 = vmatprep.subr.mxu0 0.0
    %2376 = vmatpush1.msra.mxu0 %v277
    %2377 = vmatprep.subr.mxu0 0.0
    %2378 = vmatpush1.msra.mxu0 %v278
    %2379 = vmatprep.subr.mxu0 0.0
    %2380 = vmatpush1.msra.mxu0 0.0
    %2381 = vmatprep.subr.mxu0 0.0
    %2382 = vmatpush1.msra.mxu0 0.0
    %2383 = vmatprep.subr.mxu0 0.0
    %2384 = vmatpush1.msra.mxu0 0.0
    %2385 = vmatprep.subr.mxu0 0.0
    %2386 = vmatpush1.msra.mxu0 0.0
    %2387 = vmatprep.subr.mxu0 0.0
    %2388 = vmatpush1.msra.mxu0 0.0
    %2389 = vmatprep.subr.mxu0 0.0
    %2390 = vmatpush1.msra.mxu0 0.0
    %2391 = vmatprep.subr.mxu0 0.0
    %2392 = vmatpush1.msra.mxu0 0.0
    %2393 = vmatprep.subr.mxu0 0.0
    %2394 = vmatpush1.msra.mxu0 0.0
    %2395 = vmatprep.subr.mxu0 0.0
    %2396 = vmatpush1.msra.mxu0 0.0
    %2397 = vmatprep.subr.mxu0 0.0
    %2398 = vmatpush1.msra.mxu0 0.0
    %2399 = vmatprep.subr.mxu0 0.0
    %2400 = vmatpush1.msra.mxu0 0.0
    %2401 = vmatprep.subr.mxu0 0.0
    %2402 = vmatpush1.msra.mxu0 0.0
    %2403 = vmatprep.subr.mxu0 0.0
    %2404 = vmatpush1.msra.mxu0 0.0
    %2405 = vmatprep.subr.mxu0 0.0
    %2406 = vmatpush1.msra.mxu0 0.0
    %2407 = vmatprep.subr.mxu0 0.0
    %2408 = vmatpush1.msra.mxu0 0.0
    %2409 = vmatprep.subr.mxu0 0.0
    %2410 = vmatpush1.msra.mxu0 0.0
    %2411 = vmatprep.subr.mxu0 0.0
    %2412 = vmatpush1.msra.mxu0 0.0
    %2413 = vmatprep.subr.mxu0 0.0
    %2414 = vmatpush1.msra.mxu0 0.0
    %2415 = vmatprep.subr.mxu0 0.0
    %2416 = vmatpush1.msra.mxu0 0.0
    %2417 = vmatprep.subr.mxu0 0.0
    %2418 = vmatpush1.msra.mxu0 0.0
    %2419 = vmatprep.subr.mxu0 0.0
    %2420 = vmatpush1.msra.mxu0 0.0
    %2421 = vmatprep.subr.mxu0 0.0
    %2422 = vmatpush1.msra.mxu0 0.0
    %2423 = vmatprep.subr.mxu0 0.0
    %2424 = vmatpush1.msra.mxu0 0.0
    %2425 = vmatprep.subr.mxu0 0.0
    %2426 = vmatpush1.msra.mxu0 0.0
    %2427 = vmatprep.subr.mxu0 0.0
    %2428 = vmatpush1.msra.mxu0 0.0
    %2429 = vmatprep.subr.mxu0 0.0
    %2430 = vmatpush1.msra.mxu0 0.0
    %2431 = vmatprep.subr.mxu0 0.0
    %2432 = vmatpush1.msra.mxu0 0.0
    %2433 = vmatprep.subr.mxu0 0.0
    %2434 = vmatpush1.msra.mxu0 0.0
    %2435 = vmatprep.mubr.f32.mxu0 0.0
    %2436 = vmatmul.mubr.f32.gmra.mrb[0].mxu0 %v2198
    %v2437 = vpop.f32.mrb[0].mxu0
    %v2438 = vadd.f32 0.0, %v2437
    %v2439 = vpop.f32.mrb[0].mxu0
    %2440 = vdwg.mxu0
    %v2442 = vrot.slane %v2438, 1
    %v2443 = vrot.slane %v2438, 2
    %v2446 = vadd.f32 %v266, %v2442
    %v2447 = vadd.f32 %v271, %v2443
    %v2448 = vtanh.pop %v2446
    %v2449 = vtanh.pop %v2447
    %v2450 = vxor.u32 %v2446, 2147483648
    %v2451 = vxor.u32 %v2447, 2147483648
    %v2452 = vmul.f32 %v2450, 1.442695
    %v2453 = vpow.pop %v2452
    %v2454 = vmul.f32 %v2451, 1.442695
    %v2455 = vpow.pop %v2454
    %v2456 = vadd.f32 %v2453, 1.0
    %v2457 = vadd.f32 %v2455, 1.0
    %v2458 = vrcp.pop %v2456
    %v2459 = vmul.f32 1.0, %v2458
    %v2460 = vrcp.pop %v2457
    %v2461 = vmul.f32 1.0, %v2460
    %v2464 = vrot.slane %v2448, 7
    %v2465 = vrot.slane %v2449, 6
    %v2466 = vsel %vm381, %v2465, %v2464
    %v2470 = vrot.slane %v2459, 7
    %v2471 = vrot.slane %v2461, 6
    %v2472 = vsel %vm381, %v2471, %v2470
    %v2474 = vsel %vm363, %v2466, %v2472
    %v2475 = vmul.f32 %v2474, %v2188
    %2477 = vrot.lane.b32.xlu0 %v2474, 64
    %v2478 = vpop.permute.xlu0 %2477
    %v2480 = vmul.f32 %v2474, %v2478
    %2482 = vrot.lane.b32.xlu0 %v2480, 32
    %v2483 = vpop.permute.xlu0 %2482
    %v2485 = vadd.f32 %v2475, %v2483
    %v2486 = vtanh.pop %v2485
    %2488 = vrot.lane.b32.xlu0 %v2486, 64
    %v2489 = vpop.permute.xlu0 %2488
    %v2491 = vmul.f32 %v2474, %v2489
    %2493 = vrot.lane.b32.xlu0 %v2491, 32
    %v2494 = vpop.permute.xlu0 %2493
    %v2495 = vsel %vm279, %v2494, 0
    %2497 = vmatprep.subr.mxu0 0.0
    %2498 = vmatpush1.msra.mxu0 %v407
    %2499 = vmatprep.subr.mxu0 0.0
    %2500 = vmatpush1.msra.mxu0 %v408
    %2501 = vmatprep.subr.mxu0 0.0
    %2502 = vmatpush1.msra.mxu0 %v409
    %2503 = vmatprep.subr.mxu0 0.0
    %2504 = vmatpush1.msra.mxu0 %v410
    %2505 = vmatprep.subr.mxu0 0.0
    %2506 = vmatpush1.msra.mxu0 0.0
    %2507 = vmatprep.subr.mxu0 0.0
    %2508 = vmatpush1.msra.mxu0 0.0
    %2509 = vmatprep.subr.mxu0 0.0
    %2510 = vmatpush1.msra.mxu0 0.0
    %2511 = vmatprep.subr.mxu0 0.0
    %2512 = vmatpush1.msra.mxu0 0.0
    %2513 = vmatprep.subr.mxu0 0.0
    %2514 = vmatpush1.msra.mxu0 0.0
    %2515 = vmatprep.subr.mxu0 0.0
    %2516 = vmatpush1.msra.mxu0 0.0
    %2517 = vmatprep.subr.mxu0 0.0
    %2518 = vmatpush1.msra.mxu0 0.0
    %2519 = vmatprep.subr.mxu0 0.0
    %2520 = vmatpush1.msra.mxu0 0.0
    %2521 = vmatprep.subr.mxu0 0.0
    %2522 = vmatpush1.msra.mxu0 0.0
    %2523 = vmatprep.subr.mxu0 0.0
    %2524 = vmatpush1.msra.mxu0 0.0
    %2525 = vmatprep.subr.mxu0 0.0
    %2526 = vmatpush1.msra.mxu0 0.0
    %2527 = vmatprep.subr.mxu0 0.0
    %2528 = vmatpush1.msra.mxu0 0.0
    %2529 = vmatprep.subr.mxu0 0.0
    %2530 = vmatpush1.msra.mxu0 0.0
    %2531 = vmatprep.subr.mxu0 0.0
    %2532 = vmatpush1.msra.mxu0 0.0
    %2533 = vmatprep.subr.mxu0 0.0
    %2534 = vmatpush1.msra.mxu0 0.0
    %2535 = vmatprep.subr.mxu0 0.0
    %2536 = vmatpush1.msra.mxu0 0.0
    %2537 = vmatprep.subr.mxu0 0.0
    %2538 = vmatpush1.msra.mxu0 0.0
    %2539 = vmatprep.subr.mxu0 0.0
    %2540 = vmatpush1.msra.mxu0 0.0
    %2541 = vmatprep.subr.mxu0 0.0
    %2542 = vmatpush1.msra.mxu0 0.0
    %2543 = vmatprep.subr.mxu0 0.0
    %2544 = vmatpush1.msra.mxu0 0.0
    %2545 = vmatprep.subr.mxu0 0.0
    %2546 = vmatpush1.msra.mxu0 0.0
    %2547 = vmatprep.subr.mxu0 0.0
    %2548 = vmatpush1.msra.mxu0 0.0
    %2549 = vmatprep.subr.mxu0 0.0
    %2550 = vmatpush1.msra.mxu0 0.0
    %2551 = vmatprep.subr.mxu0 0.0
    %2552 = vmatpush1.msra.mxu0 0.0
    %2553 = vmatprep.subr.mxu0 0.0
    %2554 = vmatpush1.msra.mxu0 0.0
    %2555 = vmatprep.subr.mxu0 0.0
    %2556 = vmatpush1.msra.mxu0 0.0
    %2557 = vmatprep.subr.mxu0 0.0
    %2558 = vmatpush1.msra.mxu0 0.0
    %2559 = vmatprep.subr.mxu0 0.0
    %2560 = vmatpush1.msra.mxu0 0.0
    %2561 = vmatprep.mubr.f32.mxu0 0.0
    %2562 = vmatmul.mubr.f32.gmra.mrb[0].mxu0 %v2495
    %v2563 = vpop.f32.mrb[0].mxu0
    %v2564 = vadd.f32 %v415, %v2563
    %v2565 = vpop.f32.mrb[0].mxu0
    %2566 = vdwg.mxu0
    %2568 = vrot.lane.b32.xlu0 %v2370, 32
    %v2569 = vpop.permute.xlu0 %2568
    %v2570 = vsel %vm279, %v2569, 0
    %2572 = vmatprep.subr.mxu0 0.0
    %2573 = vmatpush1.msra.mxu0 %v492
    %2574 = vmatprep.subr.mxu0 0.0
    %2575 = vmatpush1.msra.mxu0 %v493
    %2576 = vmatprep.subr.mxu0 0.0
    %2577 = vmatpush1.msra.mxu0 %v494
    %2578 = vmatprep.subr.mxu0 0.0
    %2579 = vmatpush1.msra.mxu0 %v495
    %2580 = vmatprep.subr.mxu0 0.0
    %2581 = vmatpush1.msra.mxu0 0.0
    %2582 = vmatprep.subr.mxu0 0.0
    %2583 = vmatpush1.msra.mxu0 0.0
    %2584 = vmatprep.subr.mxu0 0.0
    %2585 = vmatpush1.msra.mxu0 0.0
    %2586 = vmatprep.subr.mxu0 0.0
    %2587 = vmatpush1.msra.mxu0 0.0
    %2588 = vmatprep.subr.mxu0 0.0
    %2589 = vmatpush1.msra.mxu0 0.0
    %2590 = vmatprep.subr.mxu0 0.0
    %2591 = vmatpush1.msra.mxu0 0.0
    %2592 = vmatprep.subr.mxu0 0.0
    %2593 = vmatpush1.msra.mxu0 0.0
    %2594 = vmatprep.subr.mxu0 0.0
    %2595 = vmatpush1.msra.mxu0 0.0
    %2596 = vmatprep.subr.mxu0 0.0
    %2597 = vmatpush1.msra.mxu0 0.0
    %2598 = vmatprep.subr.mxu0 0.0
    %2599 = vmatpush1.msra.mxu0 0.0
    %2600 = vmatprep.subr.mxu0 0.0
    %2601 = vmatpush1.msra.mxu0 0.0
    %2602 = vmatprep.subr.mxu0 0.0
    %2603 = vmatpush1.msra.mxu0 0.0
    %2604 = vmatprep.subr.mxu0 0.0
    %2605 = vmatpush1.msra.mxu0 0.0
    %2606 = vmatprep.subr.mxu0 0.0
    %2607 = vmatpush1.msra.mxu0 0.0
    %2608 = vmatprep.subr.mxu0 0.0
    %2609 = vmatpush1.msra.mxu0 0.0
    %2610 = vmatprep.subr.mxu0 0.0
    %2611 = vmatpush1.msra.mxu0 0.0
    %2612 = vmatprep.subr.mxu0 0.0
    %2613 = vmatpush1.msra.mxu0 0.0
    %2614 = vmatprep.subr.mxu0 0.0
    %2615 = vmatpush1.msra.mxu0 0.0
    %2616 = vmatprep.subr.mxu0 0.0
    %2617 = vmatpush1.msra.mxu0 0.0
    %2618 = vmatprep.subr.mxu0 0.0
    %2619 = vmatpush1.msra.mxu0 0.0
    %2620 = vmatprep.subr.mxu0 0.0
    %2621 = vmatpush1.msra.mxu0 0.0
    %2622 = vmatprep.subr.mxu0 0.0
    %2623 = vmatpush1.msra.mxu0 0.0
    %2624 = vmatprep.subr.mxu0 0.0
    %2625 = vmatpush1.msra.mxu0 0.0
    %2626 = vmatprep.subr.mxu0 0.0
    %2627 = vmatpush1.msra.mxu0 0.0
    %2628 = vmatprep.subr.mxu0 0.0
    %2629 = vmatpush1.msra.mxu0 0.0
    %2630 = vmatprep.subr.mxu0 0.0
    %2631 = vmatpush1.msra.mxu0 0.0
    %2632 = vmatprep.subr.mxu0 0.0
    %2633 = vmatpush1.msra.mxu0 0.0
    %2634 = vmatprep.subr.mxu0 0.0
    %2635 = vmatpush1.msra.mxu0 0.0
    %2636 = vmatprep.mubr.f32.mxu0 0.0
    %2637 = vmatmul.mubr.f32.gmra.mrb[0].mxu0 %v2570
    %v2638 = vpop.f32.mrb[0].mxu0
    %v2639 = vadd.f32 0.0, %v2638
    %v2640 = vpop.f32.mrb[0].mxu0
    %2641 = vdwg.mxu0
    %v2642 = vadd.f32 %v2564, %v2639
    %v2643 = vtanh.pop %v2642
    %v2644 = vxor.u32 %v2642, 2147483648
    %v2645 = vmul.f32 %v2644, 1.442695
    %v2646 = vpow.pop %v2645
    %v2647 = vadd.f32 %v2646, 1.0
    %v2648 = vrcp.pop %v2647
    %v2649 = vmul.f32 1.0, %v2648
    %v2650 = vsel %vm363, %v2643, %v2649
    %v2651 = vmul.f32 %v2650, %v2364
    %2653 = vrot.lane.b32.xlu0 %v2650, 64
    %v2654 = vpop.permute.xlu0 %2653
    %v2656 = vmul.f32 %v2650, %v2654
    %2658 = vrot.lane.b32.xlu0 %v2656, 32
    %v2659 = vpop.permute.xlu0 %2658
    %v2661 = vadd.f32 %v2651, %v2659
    %v2662 = vtanh.pop %v2661
    %2664 = vrot.lane.b32.xlu0 %v2662, 64
    %v2665 = vpop.permute.xlu0 %2664
    %v2667 = vmul.f32 %v2650, %v2665
    %v2668 = vld [vmem:[#allocation10] sm:$0xff]
    %v2669 = vld [vmem:[#allocation10 + $0x8] sm:$0xff]
    %v2670 = vld [vmem:[#allocation10 + $0x10] sm:$0xff]
    %v2671 = vld [vmem:[#allocation10 + $0x18] sm:$0xff]
    %v2672 = vld [vmem:[#allocation10 + $0x20] sm:$0xff]
    %v2673 = vld [vmem:[#allocation10 + $0x28] sm:$0xff]
    %v2674 = vld [vmem:[#allocation10 + $0x30] sm:$0xff]
    %v2675 = vld [vmem:[#allocation10 + $0x38] sm:$0xff]
    %v2676 = vld [vmem:[%s8] sm:$0x3]
    %v2678 = vlaneseq
    %v2679 = vshrl.u32 %v2678, 7
    %v2680 = vsub.s32 0, %v2679
    %v2681 = vrot.slane %v2676, %v2680
    %v2682 = vlaneseq
    %v2683 = vshrl.u32 %v2682, 7
    %v2684 = vsub.s32 1, %v2683
    %v2685 = vrot.slane %v2676, %v2684
    %2689 = vrot.lane.b32.xlu0 %v2667, 32
    %v2690 = vpop.permute.xlu0 %2689
    %v2691 = vsel %vm279, %v2690, 0
    %2693 = vmatprep.subr.mxu0 %v2669
    %2694 = vmatpush1.msra.mxu0 %v2668
    %2695 = vmatprep.subr.mxu0 %v2671
    %2696 = vmatpush1.msra.mxu0 %v2670
    %2697 = vmatprep.subr.mxu0 %v2673
    %2698 = vmatpush1.msra.mxu0 %v2672
    %2699 = vmatprep.subr.mxu0 %v2675
    %2700 = vmatpush1.msra.mxu0 %v2674
    %2701 = vmatprep.subr.mxu0 0.0
    %2702 = vmatpush1.msra.mxu0 0.0
    %2703 = vmatprep.subr.mxu0 0.0
    %2704 = vmatpush1.msra.mxu0 0.0
    %2705 = vmatprep.subr.mxu0 0.0
    %2706 = vmatpush1.msra.mxu0 0.0
    %2707 = vmatprep.subr.mxu0 0.0
    %2708 = vmatpush1.msra.mxu0 0.0
    %2709 = vmatprep.subr.mxu0 0.0
    %2710 = vmatpush1.msra.mxu0 0.0
    %2711 = vmatprep.subr.mxu0 0.0
    %2712 = vmatpush1.msra.mxu0 0.0
    %2713 = vmatprep.subr.mxu0 0.0
    %2714 = vmatpush1.msra.mxu0 0.0
    %2715 = vmatprep.subr.mxu0 0.0
    %2716 = vmatpush1.msra.mxu0 0.0
    %2717 = vmatprep.subr.mxu0 0.0
    %2718 = vmatpush1.msra.mxu0 0.0
    %2719 = vmatprep.subr.mxu0 0.0
    %2720 = vmatpush1.msra.mxu0 0.0
    %2721 = vmatprep.subr.mxu0 0.0
    %2722 = vmatpush1.msra.mxu0 0.0
    %2723 = vmatprep.subr.mxu0 0.0
    %2724 = vmatpush1.msra.mxu0 0.0
    %2725 = vmatprep.subr.mxu0 0.0
    %2726 = vmatpush1.msra.mxu0 0.0
    %2727 = vmatprep.subr.mxu0 0.0
    %2728 = vmatpush1.msra.mxu0 0.0
    %2729 = vmatprep.subr.mxu0 0.0
    %2730 = vmatpush1.msra.mxu0 0.0
    %2731 = vmatprep.subr.mxu0 0.0
    %2732 = vmatpush1.msra.mxu0 0.0
    %2733 = vmatprep.subr.mxu0 0.0
    %2734 = vmatpush1.msra.mxu0 0.0
    %2735 = vmatprep.subr.mxu0 0.0
    %2736 = vmatpush1.msra.mxu0 0.0
    %2737 = vmatprep.subr.mxu0 0.0
    %2738 = vmatpush1.msra.mxu0 0.0
    %2739 = vmatprep.subr.mxu0 0.0
    %2740 = vmatpush1.msra.mxu0 0.0
    %2741 = vmatprep.subr.mxu0 0.0
    %2742 = vmatpush1.msra.mxu0 0.0
    %2743 = vmatprep.subr.mxu0 0.0
    %2744 = vmatpush1.msra.mxu0 0.0
    %2745 = vmatprep.subr.mxu0 0.0
    %2746 = vmatpush1.msra.mxu0 0.0
    %2747 = vmatprep.subr.mxu0 0.0
    %2748 = vmatpush1.msra.mxu0 0.0
    %2749 = vmatprep.subr.mxu0 0.0
    %2750 = vmatpush1.msra.mxu0 0.0
    %2751 = vmatprep.subr.mxu0 0.0
    %2752 = vmatpush1.msra.mxu0 0.0
    %2753 = vmatprep.subr.mxu0 0.0
    %2754 = vmatpush1.msra.mxu0 0.0
    %2755 = vmatprep.subr.mxu0 0.0
    %2756 = vmatpush1.msra.mxu0 0.0
    %2757 = vmatprep.mubr.f32.mxu0 0.0
    %2758 = vmatmul.mubr.f32.gmra.mrb[0].mxu0 %v2691
    %v2759 = vpop.f32.mrb[0].mxu0
    %v2760 = vadd.f32 %v2681, %v2759
    %v2761 = vpop.f32.mrb[0].mxu0
    %v2762 = vadd.f32 %v2685, %v2761
    %2763 = vdwg.mxu0
    %v2764 = vld [vmem:[%s9] sm:$0x3]
    %v2765 = vld [vmem:[%s10] sm:$0x3]
    %vm2766 = vcmask 1041408
    %v2767 = vsel %vm2766, %v2760, 0.0
    %v2768 = vsel %vm2766, %v2762, 0.0
    %v2769 = vadd.f32 %v2767, %v2768
    %2770 = vadd.xlane.f32.xlu0 %v2769
    %v2771 = vpop.xlane.xlu0 %2770
    %v2772 = vrcp.pop 256.0
    %v2773 = vmul.f32 %v2771, %v2772
    %v2774 = vsub.f32 %v2760, %v2773
    %v2775 = vsub.f32 %v2762, %v2773
    %v2776 = vmul.f32 %v2774, %v2774
    %v2777 = vmul.f32 %v2775, %v2775
    %v2778 = vsel %vm2766, %v2776, 0.0
    %v2779 = vsel %vm2766, %v2777, 0.0
    %v2780 = vadd.f32 %v2778, %v2779
    %2781 = vadd.xlane.f32.xlu0 %v2780
    %v2782 = vpop.xlane.xlu0 %2781
    %v2783 = vmul.f32 %v2782, %v2772
    %v2784 = vadd.f32 %v2783, 1e-05
    %v2785 = vrsqrt.pop %v2784
    %v2786 = vmul.f32 %v2774, %v2785
    %v2787 = vmul.f32 %v2775, %v2785
    %v2789 = vlaneseq
    %v2790 = vshrl.u32 %v2789, 7
    %v2791 = vsub.s32 0, %v2790
    %v2792 = vrot.slane %v2764, %v2791
    %v2793 = vlaneseq
    %v2794 = vshrl.u32 %v2793, 7
    %v2795 = vsub.s32 1, %v2794
    %v2796 = vrot.slane %v2764, %v2795
    %v2799 = vmul.f32 %v2786, %v2792
    %v2800 = vmul.f32 %v2787, %v2796
    %v2802 = vlaneseq
    %v2803 = vshrl.u32 %v2802, 7
    %v2804 = vsub.s32 0, %v2803
    %v2805 = vrot.slane %v2765, %v2804
    %v2806 = vlaneseq
    %v2807 = vshrl.u32 %v2806, 7
    %v2808 = vsub.s32 1, %v2807
    %v2809 = vrot.slane %v2765, %v2808
    %v2812 = vadd.f32 %v2799, %v2805
    %v2813 = vadd.f32 %v2800, %v2809
    %v2814 = vmul.f32 %v2812, 0.5
    %v2815 = vmul.f32 %v2813, 0.5
    %v2816 = vmul.f32 %v2812, 0.70710677
    %v2817 = vmul.f32 %v2813, 0.70710677
    %v2818 = verf.f32.pop %v2816
    %v2819 = verf.f32.pop %v2817
    %v2820 = vadd.f32 %v2818, 1.0
    %v2821 = vadd.f32 %v2819, 1.0
    %v2822 = vmul.f32 %v2814, %v2820
    %v2823 = vmul.f32 %v2815, %v2821
    %v2826 = vcombine.low %v2822, %v2823
    %v2828 = vunpack.c.l.s4 1983009808
    %v2829 = vunpack.c.0.s8 %v2828
    %v2830 = vlaneseq
    %v2831 = vshrl.u32 %v2830, 7
    %v2832 = vsub.s32 %v2829, %v2831
    %v2833 = vrot.slane %v2826, %v2832
    %2835 = vst [vmem:[%s18] sm:$0xf] %v2833
    %v2836 = vld [vmem:[#allocation11] sm:$0xff]
    %v2837 = vld [vmem:[#allocation11 + $0x8] sm:$0xff]
    %v2838 = vld [vmem:[#allocation11 + $0x10] sm:$0xff]
    %v2839 = vld [vmem:[#allocation11 + $0x18] sm:$0xff]
    %v2840 = vld [vmem:[#allocation11 + $0x20] sm:$0xff]
    %v2841 = vld [vmem:[#allocation11 + $0x28] sm:$0xff]
    %v2842 = vld [vmem:[#allocation11 + $0x30] sm:$0xff]
    %v2843 = vld [vmem:[#allocation11 + $0x38] sm:$0xff]
    %v2844 = vld [vmem:[#allocation11 + $0x40] sm:$0xff]
    %v2845 = vld [vmem:[#allocation11 + $0x48] sm:$0xff]
    %v2846 = vld [vmem:[#allocation11 + $0x50] sm:$0xff]
    %v2847 = vld [vmem:[#allocation11 + $0x58] sm:$0xff]
    %v2848 = vld [vmem:[#allocation11 + $0x60] sm:$0xff]
    %v2849 = vld [vmem:[#allocation11 + $0x68] sm:$0xff]
    %v2850 = vld [vmem:[#allocation11 + $0x70] sm:$0xff]
    %v2851 = vld [vmem:[#allocation11 + $0x78] sm:$0xff]
    %v2852 = vld [vmem:[#allocation11 + $0x80] sm:$0xff]
    %v2853 = vld [vmem:[#allocation11 + $0x88] sm:$0xff]
    %v2854 = vld [vmem:[#allocation11 + $0x90] sm:$0xff]
    %v2855 = vld [vmem:[#allocation11 + $0x98] sm:$0xff]
    %v2856 = vld [vmem:[#allocation11 + $0xa0] sm:$0xff]
    %v2857 = vld [vmem:[#allocation11 + $0xa8] sm:$0xff]
    %v2858 = vld [vmem:[#allocation11 + $0xb0] sm:$0xff]
    %v2859 = vld [vmem:[#allocation11 + $0xb8] sm:$0xff]
    %v2860 = vld [vmem:[#allocation11 + $0xc0] sm:$0xff]
    %v2861 = vld [vmem:[#allocation11 + $0xc8] sm:$0xff]
    %v2862 = vld [vmem:[#allocation11 + $0xd0] sm:$0xff]
    %v2863 = vld [vmem:[#allocation11 + $0xd8] sm:$0xff]
    %v2864 = vld [vmem:[#allocation11 + $0xe0] sm:$0xff]
    %v2865 = vld [vmem:[#allocation11 + $0xe8] sm:$0xff]
    %v2866 = vld [vmem:[#allocation11 + $0xf0] sm:$0xff]
    %v2867 = vld [vmem:[#allocation11 + $0xf8] sm:$0xff]
    %v2868 = vld [vmem:[%s12] sm:$0x1]
    %v2870 = vlaneseq
    %v2871 = vshrl.u32 %v2870, 7
    %v2872 = vsub.s32 0, %v2871
    %v2873 = vrot.slane %v2868, %v2872
    %2875 = vmatprep.subr.mxu0 0.0
    %2876 = vmatpush1.msra.mxu0 %v2836
    %2877 = vmatprep.subr.mxu0 0.0
    %2878 = vmatpush1.msra.mxu0 %v2837
    %2879 = vmatprep.subr.mxu0 0.0
    %2880 = vmatpush1.msra.mxu0 %v2838
    %2881 = vmatprep.subr.mxu0 0.0
    %2882 = vmatpush1.msra.mxu0 %v2839
    %2883 = vmatprep.subr.mxu0 0.0
    %2884 = vmatpush1.msra.mxu0 %v2840
    %2885 = vmatprep.subr.mxu0 0.0
    %2886 = vmatpush1.msra.mxu0 %v2841
    %2887 = vmatprep.subr.mxu0 0.0
    %2888 = vmatpush1.msra.mxu0 %v2842
    %2889 = vmatprep.subr.mxu0 0.0
    %2890 = vmatpush1.msra.mxu0 %v2843
    %2891 = vmatprep.subr.mxu0 0.0
    %2892 = vmatpush1.msra.mxu0 %v2844
    %2893 = vmatprep.subr.mxu0 0.0
    %2894 = vmatpush1.msra.mxu0 %v2845
    %2895 = vmatprep.subr.mxu0 0.0
    %2896 = vmatpush1.msra.mxu0 %v2846
    %2897 = vmatprep.subr.mxu0 0.0
    %2898 = vmatpush1.msra.mxu0 %v2847
    %2899 = vmatprep.subr.mxu0 0.0
    %2900 = vmatpush1.msra.mxu0 %v2848
    %2901 = vmatprep.subr.mxu0 0.0
    %2902 = vmatpush1.msra.mxu0 %v2849
    %2903 = vmatprep.subr.mxu0 0.0
    %2904 = vmatpush1.msra.mxu0 %v2850
    %2905 = vmatprep.subr.mxu0 0.0
    %2906 = vmatpush1.msra.mxu0 %v2851
    %2907 = vmatprep.subr.mxu0 0.0
    %2908 = vmatpush1.msra.mxu0 %v2852
    %2909 = vmatprep.subr.mxu0 0.0
    %2910 = vmatpush1.msra.mxu0 %v2853
    %2911 = vmatprep.subr.mxu0 0.0
    %2912 = vmatpush1.msra.mxu0 %v2854
    %2913 = vmatprep.subr.mxu0 0.0
    %2914 = vmatpush1.msra.mxu0 %v2855
    %2915 = vmatprep.subr.mxu0 0.0
    %2916 = vmatpush1.msra.mxu0 %v2856
    %2917 = vmatprep.subr.mxu0 0.0
    %2918 = vmatpush1.msra.mxu0 %v2857
    %2919 = vmatprep.subr.mxu0 0.0
    %2920 = vmatpush1.msra.mxu0 %v2858
    %2921 = vmatprep.subr.mxu0 0.0
    %2922 = vmatpush1.msra.mxu0 %v2859
    %2923 = vmatprep.subr.mxu0 0.0
    %2924 = vmatpush1.msra.mxu0 %v2860
    %2925 = vmatprep.subr.mxu0 0.0
    %2926 = vmatpush1.msra.mxu0 %v2861
    %2927 = vmatprep.subr.mxu0 0.0
    %2928 = vmatpush1.msra.mxu0 %v2862
    %2929 = vmatprep.subr.mxu0 0.0
    %2930 = vmatpush1.msra.mxu0 %v2863
    %2931 = vmatprep.subr.mxu0 0.0
    %2932 = vmatpush1.msra.mxu0 %v2864
    %2933 = vmatprep.subr.mxu0 0.0
    %2934 = vmatpush1.msra.mxu0 %v2865
    %2935 = vmatprep.subr.mxu0 0.0
    %2936 = vmatpush1.msra.mxu0 %v2866
    %2937 = vmatprep.subr.mxu0 0.0
    %2938 = vmatpush1.msra.mxu0 %v2867
    %2939 = vmatprep.mubr.f32.mxu0 %v2823
    %2940 = vmatmul.mubr.f32.gmra.mrb[0].mxu0 %v2822
    %v2941 = vpop.f32.mrb[0].mxu0
    %v2942 = vadd.f32 %v2873, %v2941
    %v2943 = vpop.f32.mrb[0].mxu0
    %2944 = vdwg.mxu0
    %v2945 = vld [vmem:[%s13] sm:$0x1]
    %v2946 = vld [vmem:[%s14] sm:$0x1]
    %v2947 = vsel %vm2766, %v2942, 0.0
    %2948 = vadd.xlane.f32.xlu0 %v2947
    %v2949 = vpop.xlane.xlu0 %2948
    %v2950 = vrcp.pop 128.0
    %v2951 = vmul.f32 %v2949, %v2950
    %v2952 = vsub.f32 %v2942, %v2951
    %v2953 = vmul.f32 %v2952, %v2952
    %v2954 = vsel %vm2766, %v2953, 0.0
    %2955 = vadd.xlane.f32.xlu0 %v2954
    %v2956 = vpop.xlane.xlu0 %2955
    %v2957 = vmul.f32 %v2956, %v2950
    %v2958 = vadd.f32 %v2957, 1e-05
    %v2959 = vrsqrt.pop %v2958
    %v2960 = vmul.f32 %v2952, %v2959
    %v2962 = vlaneseq
    %v2963 = vshrl.u32 %v2962, 7
    %v2964 = vsub.s32 0, %v2963
    %v2965 = vrot.slane %v2945, %v2964
    %v2967 = vmul.f32 %v2960, %v2965
    %v2969 = vlaneseq
    %v2970 = vshrl.u32 %v2969, 7
    %v2971 = vsub.s32 0, %v2970
    %v2972 = vrot.slane %v2946, %v2971
    %v2974 = vadd.f32 %v2967, %v2972
    %v2975 = vmul.f32 %v2974, 0.5
    %v2976 = vmul.f32 %v2974, 0.70710677
    %v2977 = verf.f32.pop %v2976
    %v2978 = vadd.f32 %v2977, 1.0
    %v2979 = vmul.f32 %v2975, %v2978
    %2980 = vst [vmem:[#allocation15] sm:$0x3] %v2979
    %v2981 = vld [vmem:[#allocation13] sm:$0xff]
    %v2982 = vld [vmem:[#allocation13 + $0x8] sm:$0xff]
    %v2983 = vld [vmem:[#allocation13 + $0x10] sm:$0xff]
    %v2984 = vld [vmem:[#allocation13 + $0x18] sm:$0xff]
    %v2985 = vld [vmem:[#allocation13 + $0x20] sm:$0xff]
    %v2986 = vld [vmem:[#allocation13 + $0x28] sm:$0xff]
    %v2987 = vld [vmem:[#allocation13 + $0x30] sm:$0xff]
    %v2988 = vld [vmem:[#allocation13 + $0x38] sm:$0xff]
    %v2989 = vld [vmem:[#allocation13 + $0x40] sm:$0xff]
    %v2990 = vld [vmem:[#allocation13 + $0x48] sm:$0xff]
    %v2991 = vld [vmem:[#allocation13 + $0x50] sm:$0xff]
    %v2992 = vld [vmem:[#allocation13 + $0x58] sm:$0xff]
    %v2993 = vld [vmem:[#allocation13 + $0x60] sm:$0xff]
    %v2994 = vld [vmem:[#allocation13 + $0x68] sm:$0xff]
    %v2995 = vld [vmem:[#allocation13 + $0x70] sm:$0xff]
    %v2996 = vld [vmem:[#allocation13 + $0x78] sm:$0xff]
    %v2997 = vld [vmem:[%s16] sm:$0x1]
    %v2999 = vlaneseq
    %v3000 = vshrl.u32 %v2999, 7
    %v3001 = vsub.s32 0, %v3000
    %v3002 = vrot.slane %v2997, %v3001
    %3004 = vmatprep.subr.mxu0 0.0
    %3005 = vmatpush1.msra.mxu0 %v2981
    %3006 = vmatprep.subr.mxu0 0.0
    %3007 = vmatpush1.msra.mxu0 %v2982
    %3008 = vmatprep.subr.mxu0 0.0
    %3009 = vmatpush1.msra.mxu0 %v2983
    %3010 = vmatprep.subr.mxu0 0.0
    %3011 = vmatpush1.msra.mxu0 %v2984
    %3012 = vmatprep.subr.mxu0 0.0
    %3013 = vmatpush1.msra.mxu0 %v2985
    %3014 = vmatprep.subr.mxu0 0.0
    %3015 = vmatpush1.msra.mxu0 %v2986
    %3016 = vmatprep.subr.mxu0 0.0
    %3017 = vmatpush1.msra.mxu0 %v2987
    %3018 = vmatprep.subr.mxu0 0.0
    %3019 = vmatpush1.msra.mxu0 %v2988
    %3020 = vmatprep.subr.mxu0 0.0
    %3021 = vmatpush1.msra.mxu0 %v2989
    %3022 = vmatprep.subr.mxu0 0.0
    %3023 = vmatpush1.msra.mxu0 %v2990
    %3024 = vmatprep.subr.mxu0 0.0
    %3025 = vmatpush1.msra.mxu0 %v2991
    %3026 = vmatprep.subr.mxu0 0.0
    %3027 = vmatpush1.msra.mxu0 %v2992
    %3028 = vmatprep.subr.mxu0 0.0
    %3029 = vmatpush1.msra.mxu0 %v2993
    %3030 = vmatprep.subr.mxu0 0.0
    %3031 = vmatpush1.msra.mxu0 %v2994
    %3032 = vmatprep.subr.mxu0 0.0
    %3033 = vmatpush1.msra.mxu0 %v2995
    %3034 = vmatprep.subr.mxu0 0.0
    %3035 = vmatpush1.msra.mxu0 %v2996
    %3036 = vmatprep.subr.mxu0 0.0
    %3037 = vmatpush1.msra.mxu0 0.0
    %3038 = vmatprep.subr.mxu0 0.0
    %3039 = vmatpush1.msra.mxu0 0.0
    %3040 = vmatprep.subr.mxu0 0.0
    %3041 = vmatpush1.msra.mxu0 0.0
    %3042 = vmatprep.subr.mxu0 0.0
    %3043 = vmatpush1.msra.mxu0 0.0
    %3044 = vmatprep.subr.mxu0 0.0
    %3045 = vmatpush1.msra.mxu0 0.0
    %3046 = vmatprep.subr.mxu0 0.0
    %3047 = vmatpush1.msra.mxu0 0.0
    %3048 = vmatprep.subr.mxu0 0.0
    %3049 = vmatpush1.msra.mxu0 0.0
    %3050 = vmatprep.subr.mxu0 0.0
    %3051 = vmatpush1.msra.mxu0 0.0
    %3052 = vmatprep.subr.mxu0 0.0
    %3053 = vmatpush1.msra.mxu0 0.0
    %3054 = vmatprep.subr.mxu0 0.0
    %3055 = vmatpush1.msra.mxu0 0.0
    %3056 = vmatprep.subr.mxu0 0.0
    %3057 = vmatpush1.msra.mxu0 0.0
    %3058 = vmatprep.subr.mxu0 0.0
    %3059 = vmatpush1.msra.mxu0 0.0
    %3060 = vmatprep.subr.mxu0 0.0
    %3061 = vmatpush1.msra.mxu0 0.0
    %3062 = vmatprep.subr.mxu0 0.0
    %3063 = vmatpush1.msra.mxu0 0.0
    %3064 = vmatprep.subr.mxu0 0.0
    %3065 = vmatpush1.msra.mxu0 0.0
    %3066 = vmatprep.subr.mxu0 0.0
    %3067 = vmatpush1.msra.mxu0 0.0
    %3068 = vmatprep.mubr.f32.mxu0 0.0
    %3069 = vmatmul.mubr.f32.gmra.mrb[0].mxu0 %v2979
    %v3070 = vpop.f32.mrb[0].mxu0
    %v3071 = vadd.f32 %v3002, %v3070
    %v3072 = vpop.f32.mrb[0].mxu0
    %3073 = vdwg.mxu0
    %v3074 = vmul.f32 %v3071, %v3071
    %vm3075 = vcmask 123904
    %v3076 = vsel %vm3075, %v3074, 0.0
    %3077 = vadd.xlane.f32.xlu0 %v3076
    %v3078 = vpop.xlane.xlu0 %3077
    %v3079 = vmax.f32 %v3078, 1e-24
    %v3080 = vrsqrt.pop %v3079
    %v3081 = vmul.f32 %v3071, %v3080
    %3082 = vst.msk [vmem:[#allocation14] sm:$0x3] %vm3075, %v3081
    // Predicated region
    $region98: #{_lambda_.1} parent=1 // pred_check
      _
    $region99: #{_lambda_.1} parent=1 // pred_check_branch
      %3084 = sbr.rel (0) target = $region101
    $region100: #{_lambda_.1} parent=1 // pred_region
      %s3086 = ssub.s32 32, 32
      %3087 = vsyncadd [#allocation4], %s3086
      %s3089 = sshll.u32 [#allocation14], 4
      %s3090 = int_to_ptr.vmem [resolvable:$true] %s3089
      %3092 = dma.vmem_to_hbm [thread:$0]  %s3090, 32, %s17, [#allocation4]
    $region101: #{_lambda_.1} parent=1 // pred_fallthru
      _
    // Predicated region
    $region102: #{_lambda_.1} parent=1 // pred_check
      _
    $region103: #{_lambda_.1} parent=1 // pred_check_branch
      %3094 = sbr.rel (0) target = $region105
    $region104: #{_lambda_.1} parent=1 // pred_region
      _
    $region105: #{_lambda_.1} parent=1 // pred_fallthru
      _
    // Predicated region
    $region106: #{_lambda_.1} parent=1 // pred_check
      _
    $region107: #{_lambda_.1} parent=1 // pred_check_branch
      %3096 = sbr.rel (0) target = $region109
    $region108: #{_lambda_.1} parent=1 // pred_region
      %s3098 = ssub.s32 32, 32
      %3099 = vsyncadd [#allocation16], %s3098
      %s3101 = sshll.u32 [#allocation15], 4
      %s3102 = int_to_ptr.vmem [resolvable:$true] %s3101
      %3104 = dma.vmem_to_hbm [thread:$0]  %s3102, 32, %s19, [#allocation16]
    $region109: #{_lambda_.1} parent=1 // pred_fallthru
      _
    // Predicated region
    $region110: #{_lambda_.1} parent=1 // pred_check
      _
    $region111: #{_lambda_.1} parent=1 // pred_check_branch
      %3106 = sbr.rel (0) target = $region113
    $region112: #{_lambda_.1} parent=1 // pred_region
      %3107 = dma.done [#allocation4], 32
    $region113: #{_lambda_.1} parent=1 // pred_fallthru
      _
    // Predicated region
    $region114: #{_lambda_.1} parent=1 // pred_check
      _
    $region115: #{_lambda_.1} parent=1 // pred_check_branch
      %3109 = sbr.rel (0) target = $region117
    $region116: #{_lambda_.1} parent=1 // pred_region
      _
    $region117: #{_lambda_.1} parent=1 // pred_fallthru
      _
    // Predicated region
    $region118: #{_lambda_.1} parent=1 // pred_check
      _
    $region119: #{_lambda_.1} parent=1 // pred_check_branch
      %3111 = sbr.rel (0) target = $region121
    $region120: #{_lambda_.1} parent=1 // pred_region
      %3112 = dma.done [#allocation16], 32
    $region121: #{_lambda_.1} parent=1 // pred_fallthru
      _
    %3113 = vsyncpa [#allocation3], 1
    %3114 = vsyncpa [#allocation6], 1
    %3115 = vsyncpa [#allocation9], 1
    %3116 = vsyncpa [#allocation12], 1
    %3117 = vsyncpa [#allocation4], 1
    %3118 = vsyncpa [#allocation16], 1

</llo_original>
